<compile_context>
chip_gen: v6e
topology: v6e:2x2x1
jax: 0.10.0
libtpu: 0.0.40
codegen_flags: <defaults>
</compile_context>

<pallas_src>
import jax
import jax.numpy as jnp
from jax.experimental import pallas as pl
from jax.experimental.pallas import tpu as pltpu

IN_FEATURES = 784          # 28 * 28 (full array dim -> legal lane size, no pad needed)
HIDDEN = 800
HID_PAD = 1024             # 800 padded to 8*128 lanes (full lane tiles on intermediates)
OUT_FEATURES = 10
OUT_PAD = 128              # 10 padded to one full lane group (lane-dense stores)


def _round_up(x, m):
    return (x + m - 1) // m * m


def _pick_tm(B, tm_max):
    """Largest batch tile in {1024,512,256,128} (capped by tm_max) that minimizes the
    padded batch size; tiny batches use a single round_up(B, 8) tile."""
    B8 = _round_up(B, 8)
    if B8 <= 128:
        return B8
    candidates = [c for c in (1024, 512, 256, 128) if c <= tm_max] or [128]
    best_tm, best_pad = None, None
    for tm in candidates:  # descending: ties resolve to the larger tile
        padded = _round_up(B, tm)
        if best_pad is None or padded < best_pad:
            best_tm, best_pad = tm, padded
    return best_tm


def fcnet_kernel(x_ref, w1_ref, b1_ref, w2_ref, b2_ref, w3_ref, b3_ref, o_ref):
    # fc1 + ReLU  (bf16 operands, f32 accumulate on the MXU)
    h1 = jnp.dot(x_ref[...], w1_ref[...], preferred_element_type=jnp.float32)
    h1 = jnp.maximum(h1 + b1_ref[...], 0.0)
    # fc2 + ReLU
    h2 = jnp.dot(h1.astype(jnp.bfloat16), w2_ref[...],
                 preferred_element_type=jnp.float32)
    h2 = jnp.maximum(h2 + b2_ref[...], 0.0)
    # fc3 (output lane-padded to 128; extra columns are zero weights/bias)
    h3 = jnp.dot(h2.astype(jnp.bfloat16), w3_ref[...],
                 preferred_element_type=jnp.float32)
    o_ref[...] = (h3 + b3_ref[...]).astype(o_ref.dtype)


def fcnet_forward(x, prepared_params, *, tm_max=512):
    """x: (B, 1, 28, 28) float32 (NCHW). Returns (B, 10) float32 logits."""
    w1, b1, w2, b2, w3, b3 = prepared_params
    B = x.shape[0]
    # One fused host op: reshape (== torch x.view(B, -1)) + cast to bf16 stream dtype.
    x_flat = x.reshape(B, -1).astype(jnp.bfloat16)

    TM = _pick_tm(B, tm_max)
    B_pad = _round_up(B, TM)
    if B_pad != B:
        x_flat = jnp.pad(x_flat, ((0, B_pad - B), (0, 0)))
    grid = (B_pad // TM,)

    weight_bytes = (w1.size + w2.size + w3.size) * 2 \
                   + (b1.size + b2.size + b3.size) * 4
    cost = pl.CostEstimate(
        flops=2 * B_pad * (IN_FEATURES * HID_PAD + HID_PAD * HID_PAD + HID_PAD * OUT_PAD),
        transcendentals=0,
        bytes_accessed=weight_bytes + x_flat.size * 2 + B_pad * OUT_PAD * 4,
    )

    out = pl.pallas_call(
        fcnet_kernel,
        out_shape=jax.ShapeDtypeStruct((B_pad, OUT_PAD), jnp.float32),
        grid=grid,
        in_specs=[
            # x tile streams (bf16) over the batch grid axis.
            pl.BlockSpec((TM, IN_FEATURES), lambda i: (i, 0)),
            # Weights / biases: constant block index -> DMA'd once, VMEM-resident.
            # TODO(synk): pipeline_mode=pl.Buffered(1) on these would save ~4 MB/TC on
            # v7x megacore; kept default to avoid compile-surface risk.
            pl.BlockSpec((IN_FEATURES, HID_PAD), lambda i: (0, 0)),
            pl.BlockSpec((1, HID_PAD), lambda i: (0, 0)),
            pl.BlockSpec((HID_PAD, HID_PAD), lambda i: (0, 0)),
            pl.BlockSpec((1, HID_PAD), lambda i: (0, 0)),
            pl.BlockSpec((HID_PAD, OUT_PAD), lambda i: (0, 0)),
            pl.BlockSpec((1, OUT_PAD), lambda i: (0, 0)),
        ],
        out_specs=pl.BlockSpec((TM, OUT_PAD), lambda i: (i, 0)),
        compiler_params=pltpu.CompilerParams(
            dimension_semantics=("parallel",),
            vmem_limit_bytes=48 * 1024 * 1024,
        ),
        cost_estimate=cost,
    )(x_flat, w1, b1, w2, b2, w3, b3)

    return out[:B, :OUT_FEATURES]


def init_params(key):
    """fp32 'logical' params matching nn.Linear default init (uniform +-1/sqrt(fan_in)).

    Weights stored as (in_features, out_features); biases as (1, out_features).
    """
    dims = [(IN_FEATURES, HIDDEN), (HIDDEN, HIDDEN), (HIDDEN, OUT_FEATURES)]
    params = []
    for fan_in, fan_out in dims:
        key, kw, kb = jax.random.split(key, 3)
        bound = 1.0 / (fan_in ** 0.5)
        w = jax.random.uniform(kw, (fan_in, fan_out), jnp.float32, -bound, bound)
        b = jax.random.uniform(kb, (1, fan_out), jnp.float32, -bound, bound)
        params += [w, b]
    return tuple(params)


def prepare_params(params):
    """Pad hidden/output dims to lane multiples and cast weights to bf16 (biases f32).

    Zero padding is semantics-preserving: padded hidden columns get zero weight and
    zero bias -> relu(0) == 0, and padded w2/w3 rows multiply those zeros.
    """
    w1, b1, w2, b2, w3, b3 = params
    hp = HID_PAD - HIDDEN
    w1p = jnp.pad(w1, ((0, 0), (0, hp))).astype(jnp.bfloat16)
    b1p = jnp.pad(b1, ((0, 0), (0, hp)))
    w2p = jnp.pad(w2, ((0, hp), (0, hp))).astype(jnp.bfloat16)
    b2p = jnp.pad(b2, ((0, 0), (0, hp)))
    w3p = jnp.pad(w3, ((0, hp), (0, OUT_PAD - OUT_FEATURES))).astype(jnp.bfloat16)
    b3p = jnp.pad(b3, ((0, 0), (0, OUT_PAD - OUT_FEATURES)))
    # TODO(synk): int8 (v5e/v6e) / fp8 (v7x) W1/W2 path with per-output-channel scales
    # folded into the bias-add would ~2x MXU rate on fc1/fc2; not implemented.
    return (w1p, b1p, w2p, b2p, w3p, b3p)


def fcnet_reference(x, prepared_params):
    """Plain-JAX reference using the same bf16 weights / f32 accumulate path."""
    w1, b1, w2, b2, w3, b3 = prepared_params
    h = x.reshape(x.shape[0], -1).astype(jnp.bfloat16)
    h = jnp.maximum(jnp.dot(h, w1, preferred_element_type=jnp.float32) + b1, 0.0)
    h = jnp.maximum(
        jnp.dot(h.astype(jnp.bfloat16), w2, preferred_element_type=jnp.float32) + b2, 0.0)
    out = jnp.dot(h.astype(jnp.bfloat16), w3, preferred_element_type=jnp.float32) + b3
    return out[:, :OUT_FEATURES]


if __name__ == "__main__":
    key = jax.random.PRNGKey(0)
    k_params, k_x = jax.random.split(key)

    params = prepare_params(init_params(k_params))
    # Small batch of MNIST-shaped inputs, NCHW like PyTorch.
    x = jax.random.normal(k_x, (8, 1, 28, 28), dtype=jnp.float32)

    out = jax.block_until_ready(fcnet_forward(x, params))
    ref = fcnet_reference(x, params)

    assert out.shape == (8, 10)
    assert jnp.allclose(out, ref, atol=1e-2, rtol=1e-2), float(jnp.max(jnp.abs(out - ref)))

    print("KERNEL_OK")
</pallas_src>

<mosaic_0001>
module attributes {stable_mosaic.version = 11 : i64} {
  func.func @fcnet_kernel(%arg0: i32, %arg1: memref<8x784xbf16, #tpu.memory_space<vmem>>, %arg2: memref<784x1024xbf16, #tpu.memory_space<vmem>>, %arg3: memref<1x1024xf32, #tpu.memory_space<vmem>>, %arg4: memref<1024x1024xbf16, #tpu.memory_space<vmem>>, %arg5: memref<1x1024xf32, #tpu.memory_space<vmem>>, %arg6: memref<1024x128xbf16, #tpu.memory_space<vmem>>, %arg7: memref<1x128xf32, #tpu.memory_space<vmem>>, %arg8: memref<8x128xf32, #tpu.memory_space<vmem>>) attributes {dimension_semantics = [#tpu.dimension_semantics<parallel>], iteration_bounds = array<i64: 1>, scalar_prefetch = 0 : i64, scratch_operands = 0 : i64, tpu.core_type = #tpu.core_type<tc>, window_params = [{transform_indices = @transform_0, window_bounds = array<i64: 8, 784>}, {pipeline_mode = #tpu.pipeline_mode<synchronous>, transform_indices = @transform_1, window_bounds = array<i64: 784, 1024>}, {pipeline_mode = #tpu.pipeline_mode<synchronous>, transform_indices = @transform_2, window_bounds = array<i64: 1, 1024>}, {pipeline_mode = #tpu.pipeline_mode<synchronous>, transform_indices = @transform_3, window_bounds = array<i64: 1024, 1024>}, {pipeline_mode = #tpu.pipeline_mode<synchronous>, transform_indices = @transform_4, window_bounds = array<i64: 1, 1024>}, {pipeline_mode = #tpu.pipeline_mode<synchronous>, transform_indices = @transform_5, window_bounds = array<i64: 1024, 128>}, {pipeline_mode = #tpu.pipeline_mode<synchronous>, transform_indices = @transform_6, window_bounds = array<i64: 1, 128>}, {transform_indices = @transform_7, window_bounds = array<i64: 8, 128>}]} {
    %c0 = arith.constant 0 : index
    %c0_0 = arith.constant 0 : index
    %0 = vector.load %arg1[%c0, %c0_0] : memref<8x784xbf16, #tpu.memory_space<vmem>>, vector<8x784xbf16>
    %c0_1 = arith.constant 0 : index
    %c0_2 = arith.constant 0 : index
    %1 = vector.load %arg2[%c0_1, %c0_2] : memref<784x1024xbf16, #tpu.memory_space<vmem>>, vector<784x1024xbf16>
    %cst = arith.constant dense<0.000000e+00> : vector<8x1024xf32>
    %2 = tpu.matmul %0, %1, %cst {dimension_numbers = #tpu.dot_dimension_numbers<[1], [0], [0], [1], [0, 0, 1, 1], [], []>} : vector<8x784xbf16>, vector<784x1024xbf16>, vector<8x1024xf32> -> vector<8x1024xf32>
    %c0_3 = arith.constant 0 : index
    %c0_4 = arith.constant 0 : index
    %3 = vector.load %arg3[%c0_3, %c0_4] : memref<1x1024xf32, #tpu.memory_space<vmem>>, vector<1x1024xf32>
    %4 = vector.broadcast %3 : vector<1x1024xf32> to vector<8x1024xf32>
    %5 = arith.addf %2, %4 : vector<8x1024xf32>
    %cst_5 = arith.constant 0.000000e+00 : f32
    %6 = vector.broadcast %cst_5 : f32 to vector<8x1024xf32>
    %7 = arith.maximumf %5, %6 : vector<8x1024xf32>
    %8 = arith.truncf %7 : vector<8x1024xf32> to vector<8x1024xbf16>
    %c0_6 = arith.constant 0 : index
    %c0_7 = arith.constant 0 : index
    %9 = vector.load %arg4[%c0_6, %c0_7] : memref<1024x1024xbf16, #tpu.memory_space<vmem>>, vector<1024x1024xbf16>
    %cst_8 = arith.constant dense<0.000000e+00> : vector<8x1024xf32>
    %10 = tpu.matmul %8, %9, %cst_8 {dimension_numbers = #tpu.dot_dimension_numbers<[1], [0], [0], [1], [0, 0, 1, 1], [], []>} : vector<8x1024xbf16>, vector<1024x1024xbf16>, vector<8x1024xf32> -> vector<8x1024xf32>
    %c0_9 = arith.constant 0 : index
    %c0_10 = arith.constant 0 : index
    %11 = vector.load %arg5[%c0_9, %c0_10] : memref<1x1024xf32, #tpu.memory_space<vmem>>, vector<1x1024xf32>
    %12 = vector.broadcast %11 : vector<1x1024xf32> to vector<8x1024xf32>
    %13 = arith.addf %10, %12 : vector<8x1024xf32>
    %cst_11 = arith.constant 0.000000e+00 : f32
    %14 = vector.broadcast %cst_11 : f32 to vector<8x1024xf32>
    %15 = arith.maximumf %13, %14 : vector<8x1024xf32>
    %16 = arith.truncf %15 : vector<8x1024xf32> to vector<8x1024xbf16>
    %c0_12 = arith.constant 0 : index
    %c0_13 = arith.constant 0 : index
    %17 = vector.load %arg6[%c0_12, %c0_13] : memref<1024x128xbf16, #tpu.memory_space<vmem>>, vector<1024x128xbf16>
    %cst_14 = arith.constant dense<0.000000e+00> : vector<8x128xf32>
    %18 = tpu.matmul %16, %17, %cst_14 {dimension_numbers = #tpu.dot_dimension_numbers<[1], [0], [0], [1], [0, 0, 1, 1], [], []>} : vector<8x1024xbf16>, vector<1024x128xbf16>, vector<8x128xf32> -> vector<8x128xf32>
    %c0_15 = arith.constant 0 : index
    %c0_16 = arith.constant 0 : index
    %19 = vector.load %arg7[%c0_15, %c0_16] : memref<1x128xf32, #tpu.memory_space<vmem>>, vector<1x128xf32>
    %20 = vector.broadcast %19 : vector<1x128xf32> to vector<8x128xf32>
    %21 = arith.addf %18, %20 : vector<8x128xf32>
    %c0_17 = arith.constant 0 : index
    %c0_18 = arith.constant 0 : index
    %22 = vector.load %arg8[%c0_17, %c0_18] : memref<8x128xf32, #tpu.memory_space<vmem>>, vector<8x128xf32>
    tpu.vector_store %arg8[%c0_17, %c0_18], %21 {strides = array<i32>} : memref<8x128xf32, #tpu.memory_space<vmem>>, vector<8x128xf32>,
    return
  }
  func.func @transform_0(%arg0: i32) -> (i32, i32) {
    %c0_i32 = arith.constant 0 : i32
    %c0_i32_0 = arith.constant 0 : i32
    return %arg0, %c0_i32 : i32, i32
  }
  func.func @transform_1(%arg0: i32) -> (i32, i32) {
    %c0_i32 = arith.constant 0 : i32
    %c0_i32_0 = arith.constant 0 : i32
    %c0_i32_1 = arith.constant 0 : i32
    return %c0_i32, %c0_i32_0 : i32, i32
  }
  func.func @transform_2(%arg0: i32) -> (i32, i32) {
    %c0_i32 = arith.constant 0 : i32
    %c0_i32_0 = arith.constant 0 : i32
    %c0_i32_1 = arith.constant 0 : i32
    return %c0_i32, %c0_i32_0 : i32, i32
  }
  func.func @transform_3(%arg0: i32) -> (i32, i32) {
    %c0_i32 = arith.constant 0 : i32
    %c0_i32_0 = arith.constant 0 : i32
    %c0_i32_1 = arith.constant 0 : i32
    return %c0_i32, %c0_i32_0 : i32, i32
  }
  func.func @transform_4(%arg0: i32) -> (i32, i32) {
    %c0_i32 = arith.constant 0 : i32
    %c0_i32_0 = arith.constant 0 : i32
    %c0_i32_1 = arith.constant 0 : i32
    return %c0_i32, %c0_i32_0 : i32, i32
  }
  func.func @transform_5(%arg0: i32) -> (i32, i32) {
    %c0_i32 = arith.constant 0 : i32
    %c0_i32_0 = arith.constant 0 : i32
    %c0_i32_1 = arith.constant 0 : i32
    return %c0_i32, %c0_i32_0 : i32, i32
  }
  func.func @transform_6(%arg0: i32) -> (i32, i32) {
    %c0_i32 = arith.constant 0 : i32
    %c0_i32_0 = arith.constant 0 : i32
    %c0_i32_1 = arith.constant 0 : i32
    return %c0_i32, %c0_i32_0 : i32, i32
  }
  func.func @transform_7(%arg0: i32) -> (i32, i32) {
    %c0_i32 = arith.constant 0 : i32
    %c0_i32_0 = arith.constant 0 : i32
    return %arg0, %c0_i32 : i32, i32
  }
}

</mosaic_0001>

<llo_original>
// kernel: tpu_custom_call.1
$region0: #{tpu_custom_call.1}
  #allocation0 [shape = 'u32[]', space=smem, size = 0x4, offset = 0x4, fixed_abs, tag = 'smem constant byte address 0x4 - core index']
  #allocation1 [shape = 'u32[144,128]{1,0:T(1,128)}', space=vmem, size = 0x12000, scoped, tag = 'internal scratch']
  %s0 = inlined_call_operand.hbm [shape: bf16[8,784], index: 0, kind: input, shape index: {}]
  %s1 = inlined_call_operand.hbm [shape: bf16[784,1024], index: 1, kind: input, shape index: {}]
  %s2 = inlined_call_operand.hbm [shape: f32[1,1024], index: 2, kind: input, shape index: {}]
  %s3 = inlined_call_operand.hbm [shape: bf16[1024,1024], index: 3, kind: input, shape index: {}]
  %s4 = inlined_call_operand.hbm [shape: f32[1,1024], index: 4, kind: input, shape index: {}]
  %s5 = inlined_call_operand.hbm [shape: bf16[1024,128], index: 5, kind: input, shape index: {}]
  %s6 = inlined_call_operand.hbm [shape: f32[1,128], index: 6, kind: input, shape index: {}]
  %s7 = inlined_call_operand.hbm [shape: f32[8,128], index: 7, kind: output, shape index: {}]
  %s8 = sld [smem:[#allocation0]]
  $region66: #{tpu_custom_call.1} parent=0
    _
  %s10 = ssub.s32 1, %s8
  %s11 = scalar_select 0, %s10, %s8
  $region1: #{tpu_custom_call.1} parent=0
    #allocation2 [shape = 'u8[14336]{0}', space=vmem, size = 0x3800, scoped, tag = 'input window, operand 0, single buffered']
    #allocation3 [shape = 's32[1]{0}', space=sflag, size = 0x4, scoped, tag = 'scoped memory for tpu_custom_call.1']
    #allocation4 [shape = 's32[1]{0}', space=sflag, size = 0x4, scoped, tag = 'scoped memory for tpu_custom_call.1']
    #allocation5 [shape = 'u8[1605632]{0}', space=vmem, size = 0x188000, scoped, tag = 'input window, operand 1, single buffered']
    #allocation6 [shape = 's32[1]{0}', space=sflag, size = 0x4, scoped, tag = 'scoped memory for tpu_custom_call.1']
    #allocation7 [shape = 'u8[4096]{0}', space=vmem, size = 0x1000, scoped, tag = 'input window, operand 2, single buffered']
    #allocation8 [shape = 'u8[2097152]{0}', space=vmem, size = 0x200000, scoped, tag = 'input window, operand 3, single buffered']
    #allocation9 [shape = 's32[1]{0}', space=sflag, size = 0x4, scoped, tag = 'scoped memory for tpu_custom_call.1']
    #allocation10 [shape = 'u8[4096]{0}', space=vmem, size = 0x1000, scoped, tag = 'input window, operand 4, single buffered']
    #allocation11 [shape = 'u8[262144]{0}', space=vmem, size = 0x40000, scoped, tag = 'input window, operand 5, single buffered']
    #allocation12 [shape = 's32[1]{0}', space=sflag, size = 0x4, scoped, tag = 'scoped memory for tpu_custom_call.1']
    #allocation13 [shape = 'u8[512]{0}', space=vmem, size = 0x400, scoped, tag = 'input window, operand 6, single buffered']
    #allocation14 [shape = 'u8[4096]{0}', space=vmem, size = 0x1000, scoped, tag = 'output window, operand 0, single buffered']
    %12 = vsyncpa [#allocation3], 0
    %13 = vsyncpa [#allocation6], 0
    %14 = vsyncpa [#allocation9], 0
    %15 = vsyncpa [#allocation12], 0
    %16 = vsyncpa [#allocation4], 0
    // Predicated region
    $region2: #{tpu_custom_call.1} parent=1 // pred_check
      _
    $region3: #{tpu_custom_call.1} parent=1 // pred_check_branch
      %18 = sbr.rel (0) target = $region5
    $region4: #{tpu_custom_call.1} parent=1 // pred_region
      %s20 = ssub.s32 448, 448
      %21 = vsyncadd [#allocation3], %s20
      %s23 = sshll.u32 [#allocation2], 4
      %s24 = int_to_ptr.vmem [resolvable:$true] %s23
      %26 = dma.hbm_to_vmem [thread:$0]  %s0, 448, %s24, [#allocation3]
    $region5: #{tpu_custom_call.1} parent=1 // pred_fallthru
      _
    // Predicated region
    $region6: #{tpu_custom_call.1} parent=1 // pred_check
      _
    $region7: #{tpu_custom_call.1} parent=1 // pred_check_branch
      %28 = sbr.rel (0) target = $region9
    $region8: #{tpu_custom_call.1} parent=1 // pred_region
      %s30 = ssub.s32 50176, 50176
      %31 = vsyncadd [#allocation6], %s30
      %s32 = sshll.u32 [#allocation5], 4
      %s33 = int_to_ptr.vmem [resolvable:$true] %s32
      %38 = dma.hbm_to_vmem [thread:$0]  %s1, 50176, %s33, [#allocation6], 512, 512, 32
    $region9: #{tpu_custom_call.1} parent=1 // pred_fallthru
      _
    // Predicated region
    $region10: #{tpu_custom_call.1} parent=1 // pred_check
      _
    $region11: #{tpu_custom_call.1} parent=1 // pred_check_branch
      %40 = sbr.rel (0) target = $region13
    $region12: #{tpu_custom_call.1} parent=1 // pred_region
      %s42 = ssub.s32 128, 128
      %43 = vsyncadd [#allocation6], %s42
      %s45 = sshll.u32 [#allocation7], 4
      %s46 = int_to_ptr.vmem [resolvable:$true] %s45
      %48 = dma.hbm_to_vmem [thread:$0]  %s2, 128, %s46, [#allocation6]
    $region13: #{tpu_custom_call.1} parent=1 // pred_fallthru
      _
    // Predicated region
    $region14: #{tpu_custom_call.1} parent=1 // pred_check
      _
    $region15: #{tpu_custom_call.1} parent=1 // pred_check_branch
      %50 = sbr.rel (0) target = $region17
    $region16: #{tpu_custom_call.1} parent=1 // pred_region
      %s52 = ssub.s32 65536, 65536
      %53 = vsyncadd [#allocation9], %s52
      %s54 = sshll.u32 [#allocation8], 4
      %s55 = int_to_ptr.vmem [resolvable:$true] %s54
      %60 = dma.hbm_to_vmem [thread:$0]  %s3, 65536, %s55, [#allocation9], 512, 512, 32
    $region17: #{tpu_custom_call.1} parent=1 // pred_fallthru
      _
    // Predicated region
    $region18: #{tpu_custom_call.1} parent=1 // pred_check
      _
    $region19: #{tpu_custom_call.1} parent=1 // pred_check_branch
      %62 = sbr.rel (0) target = $region21
    $region20: #{tpu_custom_call.1} parent=1 // pred_region
      %s64 = ssub.s32 128, 128
      %65 = vsyncadd [#allocation9], %s64
      %s67 = sshll.u32 [#allocation10], 4
      %s68 = int_to_ptr.vmem [resolvable:$true] %s67
      %70 = dma.hbm_to_vmem [thread:$0]  %s4, 128, %s68, [#allocation9]
    $region21: #{tpu_custom_call.1} parent=1 // pred_fallthru
      _
    // Predicated region
    $region22: #{tpu_custom_call.1} parent=1 // pred_check
      _
    $region23: #{tpu_custom_call.1} parent=1 // pred_check_branch
      %72 = sbr.rel (0) target = $region25
    $region24: #{tpu_custom_call.1} parent=1 // pred_region
      %s74 = ssub.s32 8192, 8192
      %75 = vsyncadd [#allocation12], %s74
      %s76 = sshll.u32 [#allocation11], 4
      %s77 = int_to_ptr.vmem [resolvable:$true] %s76
      %82 = dma.hbm_to_vmem [thread:$0]  %s5, 8192, %s77, [#allocation12], 64, 64, 4
    $region25: #{tpu_custom_call.1} parent=1 // pred_fallthru
      _
    // Predicated region
    $region26: #{tpu_custom_call.1} parent=1 // pred_check
      _
    $region27: #{tpu_custom_call.1} parent=1 // pred_check_branch
      %84 = sbr.rel (0) target = $region29
    $region28: #{tpu_custom_call.1} parent=1 // pred_region
      %s86 = ssub.s32 16, 16
      %87 = vsyncadd [#allocation12], %s86
      %s89 = sshll.u32 [#allocation13], 4
      %s90 = int_to_ptr.vmem [resolvable:$true] %s89
      %92 = dma.hbm_to_vmem [thread:$0]  %s6, 16, %s90, [#allocation12]
    $region29: #{tpu_custom_call.1} parent=1 // pred_fallthru
      _
    // Predicated region
    $region30: #{tpu_custom_call.1} parent=1 // pred_check
      _
    $region31: #{tpu_custom_call.1} parent=1 // pred_check_branch
      %94 = sbr.rel (0) target = $region33
    $region32: #{tpu_custom_call.1} parent=1 // pred_region
      %95 = dma.done [#allocation3], 448
    $region33: #{tpu_custom_call.1} parent=1 // pred_fallthru
      _
    // Predicated region
    $region34: #{tpu_custom_call.1} parent=1 // pred_check
      _
    $region35: #{tpu_custom_call.1} parent=1 // pred_check_branch
      %97 = sbr.rel (0) target = $region37
    $region36: #{tpu_custom_call.1} parent=1 // pred_region
      %98 = dma.done [#allocation6], 50176
    $region37: #{tpu_custom_call.1} parent=1 // pred_fallthru
      _
    // Predicated region
    $region38: #{tpu_custom_call.1} parent=1 // pred_check
      _
    $region39: #{tpu_custom_call.1} parent=1 // pred_check_branch
      %100 = sbr.rel (0) target = $region41
    $region40: #{tpu_custom_call.1} parent=1 // pred_region
      %101 = dma.done [#allocation6], 128
    $region41: #{tpu_custom_call.1} parent=1 // pred_fallthru
      _
    // Predicated region
    $region42: #{tpu_custom_call.1} parent=1 // pred_check
      _
    $region43: #{tpu_custom_call.1} parent=1 // pred_check_branch
      %103 = sbr.rel (0) target = $region45
    $region44: #{tpu_custom_call.1} parent=1 // pred_region
      %104 = dma.done [#allocation9], 65536
    $region45: #{tpu_custom_call.1} parent=1 // pred_fallthru
      _
    // Predicated region
    $region46: #{tpu_custom_call.1} parent=1 // pred_check
      _
    $region47: #{tpu_custom_call.1} parent=1 // pred_check_branch
      %106 = sbr.rel (0) target = $region49
    $region48: #{tpu_custom_call.1} parent=1 // pred_region
      %107 = dma.done [#allocation9], 128
    $region49: #{tpu_custom_call.1} parent=1 // pred_fallthru
      _
    // Predicated region
    $region50: #{tpu_custom_call.1} parent=1 // pred_check
      _
    $region51: #{tpu_custom_call.1} parent=1 // pred_check_branch
      %109 = sbr.rel (0) target = $region53
    $region52: #{tpu_custom_call.1} parent=1 // pred_region
      %110 = dma.done [#allocation12], 8192
    $region53: #{tpu_custom_call.1} parent=1 // pred_fallthru
      _
    // Predicated region
    $region54: #{tpu_custom_call.1} parent=1 // pred_check
      _
    $region55: #{tpu_custom_call.1} parent=1 // pred_check_branch
      %112 = sbr.rel (0) target = $region57
    $region56: #{tpu_custom_call.1} parent=1 // pred_region
      %113 = dma.done [#allocation12], 16
    $region57: #{tpu_custom_call.1} parent=1 // pred_fallthru
      _
    %v115 = vld [vmem:[#allocation2] sm:$0xff]
    %v116 = vld [vmem:[#allocation2 + $0x8] sm:$0xff]
    %v117 = vld [vmem:[#allocation2 + $0x10] sm:$0xff]
    %v118 = vld [vmem:[#allocation2 + $0x18] sm:$0xf]
    %v119 = vld [vmem:[#allocation5] sm:$0xff]
    %v120 = vld [vmem:[#allocation5 + $0x8] sm:$0xff]
    %v121 = vld [vmem:[#allocation5 + $0x10] sm:$0xff]
    %v122 = vld [vmem:[#allocation5 + $0x18] sm:$0xff]
    %v123 = vld [vmem:[#allocation5 + $0x20] sm:$0xff]
    %v124 = vld [vmem:[#allocation5 + $0x28] sm:$0xff]
    %v125 = vld [vmem:[#allocation5 + $0x30] sm:$0xff]
    %v126 = vld [vmem:[#allocation5 + $0x38] sm:$0xff]
    %v127 = vld [vmem:[#allocation5 + $0x40] sm:$0xff]
    %v128 = vld [vmem:[#allocation5 + $0x48] sm:$0xff]
    %v129 = vld [vmem:[#allocation5 + $0x50] sm:$0xff]
    %v130 = vld [vmem:[#allocation5 + $0x58] sm:$0xff]
    %v131 = vld [vmem:[#allocation5 + $0x60] sm:$0xff]
    %v132 = vld [vmem:[#allocation5 + $0x68] sm:$0xff]
    %v133 = vld [vmem:[#allocation5 + $0x70] sm:$0xff]
    %v134 = vld [vmem:[#allocation5 + $0x78] sm:$0xff]
    %v135 = vld [vmem:[#allocation5 + $0x80] sm:$0xff]
    %v136 = vld [vmem:[#allocation5 + $0x88] sm:$0xff]
    %v137 = vld [vmem:[#allocation5 + $0x90] sm:$0xff]
    %v138 = vld [vmem:[#allocation5 + $0x98] sm:$0xff]
    %v139 = vld [vmem:[#allocation5 + $0xa0] sm:$0xff]
    %v140 = vld [vmem:[#allocation5 + $0xa8] sm:$0xff]
    %v141 = vld [vmem:[#allocation5 + $0xb0] sm:$0xff]
    %v142 = vld [vmem:[#allocation5 + $0xb8] sm:$0xff]
    %v143 = vld [vmem:[#allocation5 + $0xc0] sm:$0xff]
    %v144 = vld [vmem:[#allocation5 + $0xc8] sm:$0xff]
    %v145 = vld [vmem:[#allocation5 + $0xd0] sm:$0xff]
    %v146 = vld [vmem:[#allocation5 + $0xd8] sm:$0xff]
    %v147 = vld [vmem:[#allocation5 + $0xe0] sm:$0xff]
    %v148 = vld [vmem:[#allocation5 + $0xe8] sm:$0xff]
    %v149 = vld [vmem:[#allocation5 + $0xf0] sm:$0xff]
    %v150 = vld [vmem:[#allocation5 + $0xf8] sm:$0xff]
    %v151 = vld [vmem:[#allocation5 + $0x100] sm:$0xff]
    %v152 = vld [vmem:[#allocation5 + $0x108] sm:$0xff]
    %v153 = vld [vmem:[#allocation5 + $0x110] sm:$0xff]
    %v154 = vld [vmem:[#allocation5 + $0x118] sm:$0xff]
    %v155 = vld [vmem:[#allocation5 + $0x120] sm:$0xff]
    %v156 = vld [vmem:[#allocation5 + $0x128] sm:$0xff]
    %v157 = vld [vmem:[#allocation5 + $0x130] sm:$0xff]
    %v158 = vld [vmem:[#allocation5 + $0x138] sm:$0xff]
    %v159 = vld [vmem:[#allocation5 + $0x140] sm:$0xff]
    %v160 = vld [vmem:[#allocation5 + $0x148] sm:$0xff]
    %v161 = vld [vmem:[#allocation5 + $0x150] sm:$0xff]
    %v162 = vld [vmem:[#allocation5 + $0x158] sm:$0xff]
    %v163 = vld [vmem:[#allocation5 + $0x160] sm:$0xff]
    %v164 = vld [vmem:[#allocation5 + $0x168] sm:$0xff]
    %v165 = vld [vmem:[#allocation5 + $0x170] sm:$0xff]
    %v166 = vld [vmem:[#allocation5 + $0x178] sm:$0xff]
    %v167 = vld [vmem:[#allocation5 + $0x180] sm:$0xff]
    %v168 = vld [vmem:[#allocation5 + $0x188] sm:$0xff]
    %v169 = vld [vmem:[#allocation5 + $0x190] sm:$0xff]
    %v170 = vld [vmem:[#allocation5 + $0x198] sm:$0xff]
    %v171 = vld [vmem:[#allocation5 + $0x1a0] sm:$0xff]
    %v172 = vld [vmem:[#allocation5 + $0x1a8] sm:$0xff]
    %v173 = vld [vmem:[#allocation5 + $0x1b0] sm:$0xff]
    %v174 = vld [vmem:[#allocation5 + $0x1b8] sm:$0xff]
    %v175 = vld [vmem:[#allocation5 + $0x1c0] sm:$0xff]
    %v176 = vld [vmem:[#allocation5 + $0x1c8] sm:$0xff]
    %v177 = vld [vmem:[#allocation5 + $0x1d0] sm:$0xff]
    %v178 = vld [vmem:[#allocation5 + $0x1d8] sm:$0xff]
    %v179 = vld [vmem:[#allocation5 + $0x1e0] sm:$0xff]
    %v180 = vld [vmem:[#allocation5 + $0x1e8] sm:$0xff]
    %v181 = vld [vmem:[#allocation5 + $0x1f0] sm:$0xff]
    %v182 = vld [vmem:[#allocation5 + $0x1f8] sm:$0xff]
    %v183 = vld [vmem:[#allocation5 + $0x200] sm:$0xff]
    %v184 = vld [vmem:[#allocation5 + $0x208] sm:$0xff]
    %v185 = vld [vmem:[#allocation5 + $0x210] sm:$0xff]
    %v186 = vld [vmem:[#allocation5 + $0x218] sm:$0xff]
    %v187 = vld [vmem:[#allocation5 + $0x220] sm:$0xff]
    %v188 = vld [vmem:[#allocation5 + $0x228] sm:$0xff]
    %v189 = vld [vmem:[#allocation5 + $0x230] sm:$0xff]
    %v190 = vld [vmem:[#allocation5 + $0x238] sm:$0xff]
    %v191 = vld [vmem:[#allocation5 + $0x240] sm:$0xff]
    %v192 = vld [vmem:[#allocation5 + $0x248] sm:$0xff]
    %v193 = vld [vmem:[#allocation5 + $0x250] sm:$0xff]
    %v194 = vld [vmem:[#allocation5 + $0x258] sm:$0xff]
    %v195 = vld [vmem:[#allocation5 + $0x260] sm:$0xff]
    %v196 = vld [vmem:[#allocation5 + $0x268] sm:$0xff]
    %v197 = vld [vmem:[#allocation5 + $0x270] sm:$0xff]
    %v198 = vld [vmem:[#allocation5 + $0x278] sm:$0xff]
    %v199 = vld [vmem:[#allocation5 + $0x280] sm:$0xff]
    %v200 = vld [vmem:[#allocation5 + $0x288] sm:$0xff]
    %v201 = vld [vmem:[#allocation5 + $0x290] sm:$0xff]
    %v202 = vld [vmem:[#allocation5 + $0x298] sm:$0xff]
    %v203 = vld [vmem:[#allocation5 + $0x2a0] sm:$0xff]
    %v204 = vld [vmem:[#allocation5 + $0x2a8] sm:$0xff]
    %v205 = vld [vmem:[#allocation5 + $0x2b0] sm:$0xff]
    %v206 = vld [vmem:[#allocation5 + $0x2b8] sm:$0xff]
    %v207 = vld [vmem:[#allocation5 + $0x2c0] sm:$0xff]
    %v208 = vld [vmem:[#allocation5 + $0x2c8] sm:$0xff]
    %v209 = vld [vmem:[#allocation5 + $0x2d0] sm:$0xff]
    %v210 = vld [vmem:[#allocation5 + $0x2d8] sm:$0xff]
    %v211 = vld [vmem:[#allocation5 + $0x2e0] sm:$0xff]
    %v212 = vld [vmem:[#allocation5 + $0x2e8] sm:$0xff]
    %v213 = vld [vmem:[#allocation5 + $0x2f0] sm:$0xff]
    %v214 = vld [vmem:[#allocation5 + $0x2f8] sm:$0xff]
    %v215 = vld [vmem:[#allocation5 + $0x300] sm:$0xff]
    %v216 = vld [vmem:[#allocation5 + $0x308] sm:$0xff]
    %v217 = vld [vmem:[#allocation5 + $0x310] sm:$0xff]
    %v218 = vld [vmem:[#allocation5 + $0x318] sm:$0xff]
    %v219 = vld [vmem:[#allocation5 + $0x320] sm:$0xff]
    %v220 = vld [vmem:[#allocation5 + $0x328] sm:$0xff]
    %v221 = vld [vmem:[#allocation5 + $0x330] sm:$0xff]
    %v222 = vld [vmem:[#allocation5 + $0x338] sm:$0xff]
    %v223 = vld [vmem:[#allocation5 + $0x340] sm:$0xff]
    %v224 = vld [vmem:[#allocation5 + $0x348] sm:$0xff]
    %v225 = vld [vmem:[#allocation5 + $0x350] sm:$0xff]
    %v226 = vld [vmem:[#allocation5 + $0x358] sm:$0xff]
    %v227 = vld [vmem:[#allocation5 + $0x360] sm:$0xff]
    %v228 = vld [vmem:[#allocation5 + $0x368] sm:$0xff]
    %v229 = vld [vmem:[#allocation5 + $0x370] sm:$0xff]
    %v230 = vld [vmem:[#allocation5 + $0x378] sm:$0xff]
    %v231 = vld [vmem:[#allocation5 + $0x380] sm:$0xff]
    %v232 = vld [vmem:[#allocation5 + $0x388] sm:$0xff]
    %v233 = vld [vmem:[#allocation5 + $0x390] sm:$0xff]
    %v234 = vld [vmem:[#allocation5 + $0x398] sm:$0xff]
    %v235 = vld [vmem:[#allocation5 + $0x3a0] sm:$0xff]
    %v236 = vld [vmem:[#allocation5 + $0x3a8] sm:$0xff]
    %v237 = vld [vmem:[#allocation5 + $0x3b0] sm:$0xff]
    %v238 = vld [vmem:[#allocation5 + $0x3b8] sm:$0xff]
    %v239 = vld [vmem:[#allocation5 + $0x3c0] sm:$0xff]
    %v240 = vld [vmem:[#allocation5 + $0x3c8] sm:$0xff]
    %v241 = vld [vmem:[#allocation5 + $0x3d0] sm:$0xff]
    %v242 = vld [vmem:[#allocation5 + $0x3d8] sm:$0xff]
    %v243 = vld [vmem:[#allocation5 + $0x3e0] sm:$0xff]
    %v244 = vld [vmem:[#allocation5 + $0x3e8] sm:$0xff]
    %v245 = vld [vmem:[#allocation5 + $0x3f0] sm:$0xff]
    %v246 = vld [vmem:[#allocation5 + $0x3f8] sm:$0xff]
    %v247 = vld [vmem:[#allocation5 + $0x400] sm:$0xff]
    %v248 = vld [vmem:[#allocation5 + $0x408] sm:$0xff]
    %v249 = vld [vmem:[#allocation5 + $0x410] sm:$0xff]
    %v250 = vld [vmem:[#allocation5 + $0x418] sm:$0xff]
    %v251 = vld [vmem:[#allocation5 + $0x420] sm:$0xff]
    %v252 = vld [vmem:[#allocation5 + $0x428] sm:$0xff]
    %v253 = vld [vmem:[#allocation5 + $0x430] sm:$0xff]
    %v254 = vld [vmem:[#allocation5 + $0x438] sm:$0xff]
    %v255 = vld [vmem:[#allocation5 + $0x440] sm:$0xff]
    %v256 = vld [vmem:[#allocation5 + $0x448] sm:$0xff]
    %v257 = vld [vmem:[#allocation5 + $0x450] sm:$0xff]
    %v258 = vld [vmem:[#allocation5 + $0x458] sm:$0xff]
    %v259 = vld [vmem:[#allocation5 + $0x460] sm:$0xff]
    %v260 = vld [vmem:[#allocation5 + $0x468] sm:$0xff]
    %v261 = vld [vmem:[#allocation5 + $0x470] sm:$0xff]
    %v262 = vld [vmem:[#allocation5 + $0x478] sm:$0xff]
    %v263 = vld [vmem:[#allocation5 + $0x480] sm:$0xff]
    %v264 = vld [vmem:[#allocation5 + $0x488] sm:$0xff]
    %v265 = vld [vmem:[#allocation5 + $0x490] sm:$0xff]
    %v266 = vld [vmem:[#allocation5 + $0x498] sm:$0xff]
    %v267 = vld [vmem:[#allocation5 + $0x4a0] sm:$0xff]
    %v268 = vld [vmem:[#allocation5 + $0x4a8] sm:$0xff]
    %v269 = vld [vmem:[#allocation5 + $0x4b0] sm:$0xff]
    %v270 = vld [vmem:[#allocation5 + $0x4b8] sm:$0xff]
    %v271 = vld [vmem:[#allocation5 + $0x4c0] sm:$0xff]
    %v272 = vld [vmem:[#allocation5 + $0x4c8] sm:$0xff]
    %v273 = vld [vmem:[#allocation5 + $0x4d0] sm:$0xff]
    %v274 = vld [vmem:[#allocation5 + $0x4d8] sm:$0xff]
    %v275 = vld [vmem:[#allocation5 + $0x4e0] sm:$0xff]
    %v276 = vld [vmem:[#allocation5 + $0x4e8] sm:$0xff]
    %v277 = vld [vmem:[#allocation5 + $0x4f0] sm:$0xff]
    %v278 = vld [vmem:[#allocation5 + $0x4f8] sm:$0xff]
    %v279 = vld [vmem:[#allocation5 + $0x500] sm:$0xff]
    %v280 = vld [vmem:[#allocation5 + $0x508] sm:$0xff]
    %v281 = vld [vmem:[#allocation5 + $0x510] sm:$0xff]
    %v282 = vld [vmem:[#allocation5 + $0x518] sm:$0xff]
    %v283 = vld [vmem:[#allocation5 + $0x520] sm:$0xff]
    %v284 = vld [vmem:[#allocation5 + $0x528] sm:$0xff]
    %v285 = vld [vmem:[#allocation5 + $0x530] sm:$0xff]
    %v286 = vld [vmem:[#allocation5 + $0x538] sm:$0xff]
    %v287 = vld [vmem:[#allocation5 + $0x540] sm:$0xff]
    %v288 = vld [vmem:[#allocation5 + $0x548] sm:$0xff]
    %v289 = vld [vmem:[#allocation5 + $0x550] sm:$0xff]
    %v290 = vld [vmem:[#allocation5 + $0x558] sm:$0xff]
    %v291 = vld [vmem:[#allocation5 + $0x560] sm:$0xff]
    %v292 = vld [vmem:[#allocation5 + $0x568] sm:$0xff]
    %v293 = vld [vmem:[#allocation5 + $0x570] sm:$0xff]
    %v294 = vld [vmem:[#allocation5 + $0x578] sm:$0xff]
    %v295 = vld [vmem:[#allocation5 + $0x580] sm:$0xff]
    %v296 = vld [vmem:[#allocation5 + $0x588] sm:$0xff]
    %v297 = vld [vmem:[#allocation5 + $0x590] sm:$0xff]
    %v298 = vld [vmem:[#allocation5 + $0x598] sm:$0xff]
    %v299 = vld [vmem:[#allocation5 + $0x5a0] sm:$0xff]
    %v300 = vld [vmem:[#allocation5 + $0x5a8] sm:$0xff]
    %v301 = vld [vmem:[#allocation5 + $0x5b0] sm:$0xff]
    %v302 = vld [vmem:[#allocation5 + $0x5b8] sm:$0xff]
    %v303 = vld [vmem:[#allocation5 + $0x5c0] sm:$0xff]
    %v304 = vld [vmem:[#allocation5 + $0x5c8] sm:$0xff]
    %v305 = vld [vmem:[#allocation5 + $0x5d0] sm:$0xff]
    %v306 = vld [vmem:[#allocation5 + $0x5d8] sm:$0xff]
    %v307 = vld [vmem:[#allocation5 + $0x5e0] sm:$0xff]
    %v308 = vld [vmem:[#allocation5 + $0x5e8] sm:$0xff]
    %v309 = vld [vmem:[#allocation5 + $0x5f0] sm:$0xff]
    %v310 = vld [vmem:[#allocation5 + $0x5f8] sm:$0xff]
    %v311 = vld [vmem:[#allocation5 + $0x600] sm:$0xff]
    %v312 = vld [vmem:[#allocation5 + $0x608] sm:$0xff]
    %v313 = vld [vmem:[#allocation5 + $0x610] sm:$0xff]
    %v314 = vld [vmem:[#allocation5 + $0x618] sm:$0xff]
    %v315 = vld [vmem:[#allocation5 + $0x620] sm:$0xff]
    %v316 = vld [vmem:[#allocation5 + $0x628] sm:$0xff]
    %v317 = vld [vmem:[#allocation5 + $0x630] sm:$0xff]
    %v318 = vld [vmem:[#allocation5 + $0x638] sm:$0xff]
    %v319 = vld [vmem:[#allocation5 + $0x640] sm:$0xff]
    %v320 = vld [vmem:[#allocation5 + $0x648] sm:$0xff]
    %v321 = vld [vmem:[#allocation5 + $0x650] sm:$0xff]
    %v322 = vld [vmem:[#allocation5 + $0x658] sm:$0xff]
    %v323 = vld [vmem:[#allocation5 + $0x660] sm:$0xff]
    %v324 = vld [vmem:[#allocation5 + $0x668] sm:$0xff]
    %v325 = vld [vmem:[#allocation5 + $0x670] sm:$0xff]
    %v326 = vld [vmem:[#allocation5 + $0x678] sm:$0xff]
    %v327 = vld [vmem:[#allocation5 + $0x680] sm:$0xff]
    %v328 = vld [vmem:[#allocation5 + $0x688] sm:$0xff]
    %v329 = vld [vmem:[#allocation5 + $0x690] sm:$0xff]
    %v330 = vld [vmem:[#allocation5 + $0x698] sm:$0xff]
    %v331 = vld [vmem:[#allocation5 + $0x6a0] sm:$0xff]
    %v332 = vld [vmem:[#allocation5 + $0x6a8] sm:$0xff]
    %v333 = vld [vmem:[#allocation5 + $0x6b0] sm:$0xff]
    %v334 = vld [vmem:[#allocation5 + $0x6b8] sm:$0xff]
    %v335 = vld [vmem:[#allocation5 + $0x6c0] sm:$0xff]
    %v336 = vld [vmem:[#allocation5 + $0x6c8] sm:$0xff]
    %v337 = vld [vmem:[#allocation5 + $0x6d0] sm:$0xff]
    %v338 = vld [vmem:[#allocation5 + $0x6d8] sm:$0xff]
    %v339 = vld [vmem:[#allocation5 + $0x6e0] sm:$0xff]
    %v340 = vld [vmem:[#allocation5 + $0x6e8] sm:$0xff]
    %v341 = vld [vmem:[#allocation5 + $0x6f0] sm:$0xff]
    %v342 = vld [vmem:[#allocation5 + $0x6f8] sm:$0xff]
    %v343 = vld [vmem:[#allocation5 + $0x700] sm:$0xff]
    %v344 = vld [vmem:[#allocation5 + $0x708] sm:$0xff]
    %v345 = vld [vmem:[#allocation5 + $0x710] sm:$0xff]
    %v346 = vld [vmem:[#allocation5 + $0x718] sm:$0xff]
    %v347 = vld [vmem:[#allocation5 + $0x720] sm:$0xff]
    %v348 = vld [vmem:[#allocation5 + $0x728] sm:$0xff]
    %v349 = vld [vmem:[#allocation5 + $0x730] sm:$0xff]
    %v350 = vld [vmem:[#allocation5 + $0x738] sm:$0xff]
    %v351 = vld [vmem:[#allocation5 + $0x740] sm:$0xff]
    %v352 = vld [vmem:[#allocation5 + $0x748] sm:$0xff]
    %v353 = vld [vmem:[#allocation5 + $0x750] sm:$0xff]
    %v354 = vld [vmem:[#allocation5 + $0x758] sm:$0xff]
    %v355 = vld [vmem:[#allocation5 + $0x760] sm:$0xff]
    %v356 = vld [vmem:[#allocation5 + $0x768] sm:$0xff]
    %v357 = vld [vmem:[#allocation5 + $0x770] sm:$0xff]
    %v358 = vld [vmem:[#allocation5 + $0x778] sm:$0xff]
    %v359 = vld [vmem:[#allocation5 + $0x780] sm:$0xff]
    %v360 = vld [vmem:[#allocation5 + $0x788] sm:$0xff]
    %v361 = vld [vmem:[#allocation5 + $0x790] sm:$0xff]
    %v362 = vld [vmem:[#allocation5 + $0x798] sm:$0xff]
    %v363 = vld [vmem:[#allocation5 + $0x7a0] sm:$0xff]
    %v364 = vld [vmem:[#allocation5 + $0x7a8] sm:$0xff]
    %v365 = vld [vmem:[#allocation5 + $0x7b0] sm:$0xff]
    %v366 = vld [vmem:[#allocation5 + $0x7b8] sm:$0xff]
    %v367 = vld [vmem:[#allocation5 + $0x7c0] sm:$0xff]
    %v368 = vld [vmem:[#allocation5 + $0x7c8] sm:$0xff]
    %v369 = vld [vmem:[#allocation5 + $0x7d0] sm:$0xff]
    %v370 = vld [vmem:[#allocation5 + $0x7d8] sm:$0xff]
    %v371 = vld [vmem:[#allocation5 + $0x7e0] sm:$0xff]
    %v372 = vld [vmem:[#allocation5 + $0x7e8] sm:$0xff]
    %v373 = vld [vmem:[#allocation5 + $0x7f0] sm:$0xff]
    %v374 = vld [vmem:[#allocation5 + $0x7f8] sm:$0xff]
    %v375 = vld [vmem:[#allocation5 + $0x800] sm:$0xff]
    %v376 = vld [vmem:[#allocation5 + $0x808] sm:$0xff]
    %v377 = vld [vmem:[#allocation5 + $0x810] sm:$0xff]
    %v378 = vld [vmem:[#allocation5 + $0x818] sm:$0xff]
    %v379 = vld [vmem:[#allocation5 + $0x820] sm:$0xff]
    %v380 = vld [vmem:[#allocation5 + $0x828] sm:$0xff]
    %v381 = vld [vmem:[#allocation5 + $0x830] sm:$0xff]
    %v382 = vld [vmem:[#allocation5 + $0x838] sm:$0xff]
    %v383 = vld [vmem:[#allocation5 + $0x840] sm:$0xff]
    %v384 = vld [vmem:[#allocation5 + $0x848] sm:$0xff]
    %v385 = vld [vmem:[#allocation5 + $0x850] sm:$0xff]
    %v386 = vld [vmem:[#allocation5 + $0x858] sm:$0xff]
    %v387 = vld [vmem:[#allocation5 + $0x860] sm:$0xff]
    %v388 = vld [vmem:[#allocation5 + $0x868] sm:$0xff]
    %v389 = vld [vmem:[#allocation5 + $0x870] sm:$0xff]
    %v390 = vld [vmem:[#allocation5 + $0x878] sm:$0xff]
    %v391 = vld [vmem:[#allocation5 + $0x880] sm:$0xff]
    %v392 = vld [vmem:[#allocation5 + $0x888] sm:$0xff]
    %v393 = vld [vmem:[#allocation5 + $0x890] sm:$0xff]
    %v394 = vld [vmem:[#allocation5 + $0x898] sm:$0xff]
    %v395 = vld [vmem:[#allocation5 + $0x8a0] sm:$0xff]
    %v396 = vld [vmem:[#allocation5 + $0x8a8] sm:$0xff]
    %v397 = vld [vmem:[#allocation5 + $0x8b0] sm:$0xff]
    %v398 = vld [vmem:[#allocation5 + $0x8b8] sm:$0xff]
    %v399 = vld [vmem:[#allocation5 + $0x8c0] sm:$0xff]
    %v400 = vld [vmem:[#allocation5 + $0x8c8] sm:$0xff]
    %v401 = vld [vmem:[#allocation5 + $0x8d0] sm:$0xff]
    %v402 = vld [vmem:[#allocation5 + $0x8d8] sm:$0xff]
    %v403 = vld [vmem:[#allocation5 + $0x8e0] sm:$0xff]
    %v404 = vld [vmem:[#allocation5 + $0x8e8] sm:$0xff]
    %v405 = vld [vmem:[#allocation5 + $0x8f0] sm:$0xff]
    %v406 = vld [vmem:[#allocation5 + $0x8f8] sm:$0xff]
    %v407 = vld [vmem:[#allocation5 + $0x900] sm:$0xff]
    %v408 = vld [vmem:[#allocation5 + $0x908] sm:$0xff]
    %v409 = vld [vmem:[#allocation5 + $0x910] sm:$0xff]
    %v410 = vld [vmem:[#allocation5 + $0x918] sm:$0xff]
    %v411 = vld [vmem:[#allocation5 + $0x920] sm:$0xff]
    %v412 = vld [vmem:[#allocation5 + $0x928] sm:$0xff]
    %v413 = vld [vmem:[#allocation5 + $0x930] sm:$0xff]
    %v414 = vld [vmem:[#allocation5 + $0x938] sm:$0xff]
    %v415 = vld [vmem:[#allocation5 + $0x940] sm:$0xff]
    %v416 = vld [vmem:[#allocation5 + $0x948] sm:$0xff]
    %v417 = vld [vmem:[#allocation5 + $0x950] sm:$0xff]
    %v418 = vld [vmem:[#allocation5 + $0x958] sm:$0xff]
    %v419 = vld [vmem:[#allocation5 + $0x960] sm:$0xff]
    %v420 = vld [vmem:[#allocation5 + $0x968] sm:$0xff]
    %v421 = vld [vmem:[#allocation5 + $0x970] sm:$0xff]
    %v422 = vld [vmem:[#allocation5 + $0x978] sm:$0xff]
    %v423 = vld [vmem:[#allocation5 + $0x980] sm:$0xff]
    %v424 = vld [vmem:[#allocation5 + $0x988] sm:$0xff]
    %v425 = vld [vmem:[#allocation5 + $0x990] sm:$0xff]
    %v426 = vld [vmem:[#allocation5 + $0x998] sm:$0xff]
    %v427 = vld [vmem:[#allocation5 + $0x9a0] sm:$0xff]
    %v428 = vld [vmem:[#allocation5 + $0x9a8] sm:$0xff]
    %v429 = vld [vmem:[#allocation5 + $0x9b0] sm:$0xff]
    %v430 = vld [vmem:[#allocation5 + $0x9b8] sm:$0xff]
    %v431 = vld [vmem:[#allocation5 + $0x9c0] sm:$0xff]
    %v432 = vld [vmem:[#allocation5 + $0x9c8] sm:$0xff]
    %v433 = vld [vmem:[#allocation5 + $0x9d0] sm:$0xff]
    %v434 = vld [vmem:[#allocation5 + $0x9d8] sm:$0xff]
    %v435 = vld [vmem:[#allocation5 + $0x9e0] sm:$0xff]
    %v436 = vld [vmem:[#allocation5 + $0x9e8] sm:$0xff]
    %v437 = vld [vmem:[#allocation5 + $0x9f0] sm:$0xff]
    %v438 = vld [vmem:[#allocation5 + $0x9f8] sm:$0xff]
    %v439 = vld [vmem:[#allocation5 + $0xa00] sm:$0xff]
    %v440 = vld [vmem:[#allocation5 + $0xa08] sm:$0xff]
    %v441 = vld [vmem:[#allocation5 + $0xa10] sm:$0xff]
    %v442 = vld [vmem:[#allocation5 + $0xa18] sm:$0xff]
    %v443 = vld [vmem:[#allocation5 + $0xa20] sm:$0xff]
    %v444 = vld [vmem:[#allocation5 + $0xa28] sm:$0xff]
    %v445 = vld [vmem:[#allocation5 + $0xa30] sm:$0xff]
    %v446 = vld [vmem:[#allocation5 + $0xa38] sm:$0xff]
    %v447 = vld [vmem:[#allocation5 + $0xa40] sm:$0xff]
    %v448 = vld [vmem:[#allocation5 + $0xa48] sm:$0xff]
    %v449 = vld [vmem:[#allocation5 + $0xa50] sm:$0xff]
    %v450 = vld [vmem:[#allocation5 + $0xa58] sm:$0xff]
    %v451 = vld [vmem:[#allocation5 + $0xa60] sm:$0xff]
    %v452 = vld [vmem:[#allocation5 + $0xa68] sm:$0xff]
    %v453 = vld [vmem:[#allocation5 + $0xa70] sm:$0xff]
    %v454 = vld [vmem:[#allocation5 + $0xa78] sm:$0xff]
    %v455 = vld [vmem:[#allocation5 + $0xa80] sm:$0xff]
    %v456 = vld [vmem:[#allocation5 + $0xa88] sm:$0xff]
    %v457 = vld [vmem:[#allocation5 + $0xa90] sm:$0xff]
    %v458 = vld [vmem:[#allocation5 + $0xa98] sm:$0xff]
    %v459 = vld [vmem:[#allocation5 + $0xaa0] sm:$0xff]
    %v460 = vld [vmem:[#allocation5 + $0xaa8] sm:$0xff]
    %v461 = vld [vmem:[#allocation5 + $0xab0] sm:$0xff]
    %v462 = vld [vmem:[#allocation5 + $0xab8] sm:$0xff]
    %v463 = vld [vmem:[#allocation5 + $0xac0] sm:$0xff]
    %v464 = vld [vmem:[#allocation5 + $0xac8] sm:$0xff]
    %v465 = vld [vmem:[#allocation5 + $0xad0] sm:$0xff]
    %v466 = vld [vmem:[#allocation5 + $0xad8] sm:$0xff]
    %v467 = vld [vmem:[#allocation5 + $0xae0] sm:$0xff]
    %v468 = vld [vmem:[#allocation5 + $0xae8] sm:$0xff]
    %v469 = vld [vmem:[#allocation5 + $0xaf0] sm:$0xff]
    %v470 = vld [vmem:[#allocation5 + $0xaf8] sm:$0xff]
    %v471 = vld [vmem:[#allocation5 + $0xb00] sm:$0xff]
    %v472 = vld [vmem:[#allocation5 + $0xb08] sm:$0xff]
    %v473 = vld [vmem:[#allocation5 + $0xb10] sm:$0xff]
    %v474 = vld [vmem:[#allocation5 + $0xb18] sm:$0xff]
    %v475 = vld [vmem:[#allocation5 + $0xb20] sm:$0xff]
    %v476 = vld [vmem:[#allocation5 + $0xb28] sm:$0xff]
    %v477 = vld [vmem:[#allocation5 + $0xb30] sm:$0xff]
    %v478 = vld [vmem:[#allocation5 + $0xb38] sm:$0xff]
    %v479 = vld [vmem:[#allocation5 + $0xb40] sm:$0xff]
    %v480 = vld [vmem:[#allocation5 + $0xb48] sm:$0xff]
    %v481 = vld [vmem:[#allocation5 + $0xb50] sm:$0xff]
    %v482 = vld [vmem:[#allocation5 + $0xb58] sm:$0xff]
    %v483 = vld [vmem:[#allocation5 + $0xb60] sm:$0xff]
    %v484 = vld [vmem:[#allocation5 + $0xb68] sm:$0xff]
    %v485 = vld [vmem:[#allocation5 + $0xb70] sm:$0xff]
    %v486 = vld [vmem:[#allocation5 + $0xb78] sm:$0xff]
    %v487 = vld [vmem:[#allocation5 + $0xb80] sm:$0xff]
    %v488 = vld [vmem:[#allocation5 + $0xb88] sm:$0xff]
    %v489 = vld [vmem:[#allocation5 + $0xb90] sm:$0xff]
    %v490 = vld [vmem:[#allocation5 + $0xb98] sm:$0xff]
    %v491 = vld [vmem:[#allocation5 + $0xba0] sm:$0xff]
    %v492 = vld [vmem:[#allocation5 + $0xba8] sm:$0xff]
    %v493 = vld [vmem:[#allocation5 + $0xbb0] sm:$0xff]
    %v494 = vld [vmem:[#allocation5 + $0xbb8] sm:$0xff]
    %v495 = vld [vmem:[#allocation5 + $0xbc0] sm:$0xff]
    %v496 = vld [vmem:[#allocation5 + $0xbc8] sm:$0xff]
    %v497 = vld [vmem:[#allocation5 + $0xbd0] sm:$0xff]
    %v498 = vld [vmem:[#allocation5 + $0xbd8] sm:$0xff]
    %v499 = vld [vmem:[#allocation5 + $0xbe0] sm:$0xff]
    %v500 = vld [vmem:[#allocation5 + $0xbe8] sm:$0xff]
    %v501 = vld [vmem:[#allocation5 + $0xbf0] sm:$0xff]
    %v502 = vld [vmem:[#allocation5 + $0xbf8] sm:$0xff]
    %v503 = vld [vmem:[#allocation5 + $0xc00] sm:$0xff]
    %v504 = vld [vmem:[#allocation5 + $0xc08] sm:$0xff]
    %v505 = vld [vmem:[#allocation5 + $0xc10] sm:$0xff]
    %v506 = vld [vmem:[#allocation5 + $0xc18] sm:$0xff]
    %v507 = vld [vmem:[#allocation5 + $0xc20] sm:$0xff]
    %v508 = vld [vmem:[#allocation5 + $0xc28] sm:$0xff]
    %v509 = vld [vmem:[#allocation5 + $0xc30] sm:$0xff]
    %v510 = vld [vmem:[#allocation5 + $0xc38] sm:$0xff]
    %v511 = vld [vmem:[#allocation7] sm:$0xff]
    %v513 = vlaneseq
    %v514 = vshrl.u32 %v513, 7
    %v515 = vsub.s32 0, %v514
    %v516 = vrot.slane %v511, %v515
    %v517 = vlaneseq
    %v518 = vshrl.u32 %v517, 7
    %v519 = vsub.s32 1, %v518
    %v520 = vrot.slane %v511, %v519
    %v521 = vlaneseq
    %v522 = vshrl.u32 %v521, 7
    %v523 = vsub.s32 2, %v522
    %v524 = vrot.slane %v511, %v523
    %v525 = vlaneseq
    %v526 = vshrl.u32 %v525, 7
    %v527 = vsub.s32 3, %v526
    %v528 = vrot.slane %v511, %v527
    %v529 = vlaneseq
    %v530 = vshrl.u32 %v529, 7
    %v531 = vsub.s32 4, %v530
    %v532 = vrot.slane %v511, %v531
    %v533 = vlaneseq
    %v534 = vshrl.u32 %v533, 7
    %v535 = vsub.s32 5, %v534
    %v536 = vrot.slane %v511, %v535
    %v537 = vlaneseq
    %v538 = vshrl.u32 %v537, 7
    %v539 = vsub.s32 6, %v538
    %v540 = vrot.slane %v511, %v539
    %v541 = vlaneseq
    %v542 = vshrl.u32 %v541, 7
    %v543 = vsub.s32 7, %v542
    %v544 = vrot.slane %v511, %v543
    %v557 = vunpack.c.l.b16 %v115
    %v558 = vunpack.c.h.b16 %v115
    %v559 = vunpack.c.l.b16 %v116
    %v560 = vunpack.c.h.b16 %v116
    %v561 = vunpack.c.l.b16 %v117
    %v562 = vunpack.c.h.b16 %v117
    %v563 = vunpack.c.l.b16 %v118
    %v564 = vpack.c.b16 %v557, %v557
    %v565 = vpack.c.b16 %v558, %v558
    %v566 = vpack.c.b16 %v559, %v559
    %v567 = vpack.c.b16 %v560, %v560
    %v568 = vpack.c.b16 %v561, %v561
    %v569 = vpack.c.b16 %v562, %v562
    %v570 = vpack.c.b16 %v563, %v563
    %v969 = vunpack.c.l.b16 %v119
    %v970 = vunpack.c.h.b16 %v119
    %v971 = vunpack.c.l.b16 %v120
    %v972 = vunpack.c.h.b16 %v120
    %v973 = vunpack.c.l.b16 %v121
    %v974 = vunpack.c.h.b16 %v121
    %v975 = vunpack.c.l.b16 %v122
    %v976 = vunpack.c.h.b16 %v122
    %v977 = vunpack.c.l.b16 %v123
    %v978 = vunpack.c.h.b16 %v123
    %v979 = vunpack.c.l.b16 %v124
    %v980 = vunpack.c.h.b16 %v124
    %v981 = vunpack.c.l.b16 %v125
    %v982 = vunpack.c.h.b16 %v125
    %v983 = vunpack.c.l.b16 %v126
    %v984 = vunpack.c.h.b16 %v126
    %v985 = vunpack.c.l.b16 %v127
    %v986 = vunpack.c.h.b16 %v127
    %v987 = vunpack.c.l.b16 %v128
    %v988 = vunpack.c.h.b16 %v128
    %v989 = vunpack.c.l.b16 %v129
    %v990 = vunpack.c.h.b16 %v129
    %v991 = vunpack.c.l.b16 %v130
    %v992 = vunpack.c.h.b16 %v130
    %v993 = vunpack.c.l.b16 %v131
    %v994 = vunpack.c.h.b16 %v131
    %v995 = vunpack.c.l.b16 %v132
    %v996 = vunpack.c.h.b16 %v132
    %v997 = vunpack.c.l.b16 %v133
    %v998 = vunpack.c.h.b16 %v133
    %v999 = vunpack.c.l.b16 %v134
    %v1000 = vunpack.c.h.b16 %v134
    %v1001 = vunpack.c.l.b16 %v135
    %v1002 = vunpack.c.h.b16 %v135
    %v1003 = vunpack.c.l.b16 %v136
    %v1004 = vunpack.c.h.b16 %v136
    %v1005 = vunpack.c.l.b16 %v137
    %v1006 = vunpack.c.h.b16 %v137
    %v1007 = vunpack.c.l.b16 %v138
    %v1008 = vunpack.c.h.b16 %v138
    %v1009 = vunpack.c.l.b16 %v139
    %v1010 = vunpack.c.h.b16 %v139
    %v1011 = vunpack.c.l.b16 %v140
    %v1012 = vunpack.c.h.b16 %v140
    %v1013 = vunpack.c.l.b16 %v141
    %v1014 = vunpack.c.h.b16 %v141
    %v1015 = vunpack.c.l.b16 %v142
    %v1016 = vunpack.c.h.b16 %v142
    %v1017 = vunpack.c.l.b16 %v143
    %v1018 = vunpack.c.h.b16 %v143
    %v1019 = vunpack.c.l.b16 %v144
    %v1020 = vunpack.c.h.b16 %v144
    %v1021 = vunpack.c.l.b16 %v145
    %v1022 = vunpack.c.h.b16 %v145
    %v1023 = vunpack.c.l.b16 %v146
    %v1024 = vunpack.c.h.b16 %v146
    %v1025 = vunpack.c.l.b16 %v147
    %v1026 = vunpack.c.h.b16 %v147
    %v1027 = vunpack.c.l.b16 %v148
    %v1028 = vunpack.c.h.b16 %v148
    %v1029 = vunpack.c.l.b16 %v149
    %v1030 = vunpack.c.h.b16 %v149
    %v1031 = vunpack.c.l.b16 %v150
    %v1032 = vunpack.c.h.b16 %v150
    %v1033 = vunpack.c.l.b16 %v151
    %v1034 = vunpack.c.h.b16 %v151
    %v1035 = vunpack.c.l.b16 %v152
    %v1036 = vunpack.c.h.b16 %v152
    %v1037 = vunpack.c.l.b16 %v153
    %v1038 = vunpack.c.h.b16 %v153
    %v1039 = vunpack.c.l.b16 %v154
    %v1040 = vunpack.c.h.b16 %v154
    %v1041 = vunpack.c.l.b16 %v155
    %v1042 = vunpack.c.h.b16 %v155
    %v1043 = vunpack.c.l.b16 %v156
    %v1044 = vunpack.c.h.b16 %v156
    %v1045 = vunpack.c.l.b16 %v157
    %v1046 = vunpack.c.h.b16 %v157
    %v1047 = vunpack.c.l.b16 %v158
    %v1048 = vunpack.c.h.b16 %v158
    %v1049 = vunpack.c.l.b16 %v159
    %v1050 = vunpack.c.h.b16 %v159
    %v1051 = vunpack.c.l.b16 %v160
    %v1052 = vunpack.c.h.b16 %v160
    %v1053 = vunpack.c.l.b16 %v161
    %v1054 = vunpack.c.h.b16 %v161
    %v1055 = vunpack.c.l.b16 %v162
    %v1056 = vunpack.c.h.b16 %v162
    %v1057 = vunpack.c.l.b16 %v163
    %v1058 = vunpack.c.h.b16 %v163
    %v1059 = vunpack.c.l.b16 %v164
    %v1060 = vunpack.c.h.b16 %v164
    %v1061 = vunpack.c.l.b16 %v165
    %v1062 = vunpack.c.h.b16 %v165
    %v1063 = vunpack.c.l.b16 %v166
    %v1064 = vunpack.c.h.b16 %v166
    %v1065 = vunpack.c.l.b16 %v167
    %v1066 = vunpack.c.h.b16 %v167
    %v1067 = vunpack.c.l.b16 %v168
    %v1068 = vunpack.c.h.b16 %v168
    %v1069 = vunpack.c.l.b16 %v169
    %v1070 = vunpack.c.h.b16 %v169
    %v1071 = vunpack.c.l.b16 %v170
    %v1072 = vunpack.c.h.b16 %v170
    %v1073 = vunpack.c.l.b16 %v171
    %v1074 = vunpack.c.h.b16 %v171
    %v1075 = vunpack.c.l.b16 %v172
    %v1076 = vunpack.c.h.b16 %v172
    %v1077 = vunpack.c.l.b16 %v173
    %v1078 = vunpack.c.h.b16 %v173
    %v1079 = vunpack.c.l.b16 %v174
    %v1080 = vunpack.c.h.b16 %v174
    %v1081 = vunpack.c.l.b16 %v175
    %v1082 = vunpack.c.h.b16 %v175
    %v1083 = vunpack.c.l.b16 %v176
    %v1084 = vunpack.c.h.b16 %v176
    %v1085 = vunpack.c.l.b16 %v177
    %v1086 = vunpack.c.h.b16 %v177
    %v1087 = vunpack.c.l.b16 %v178
    %v1088 = vunpack.c.h.b16 %v178
    %v1089 = vunpack.c.l.b16 %v179
    %v1090 = vunpack.c.h.b16 %v179
    %v1091 = vunpack.c.l.b16 %v180
    %v1092 = vunpack.c.h.b16 %v180
    %v1093 = vunpack.c.l.b16 %v181
    %v1094 = vunpack.c.h.b16 %v181
    %v1095 = vunpack.c.l.b16 %v182
    %v1096 = vunpack.c.h.b16 %v182
    %v1097 = vunpack.c.l.b16 %v183
    %v1098 = vunpack.c.h.b16 %v183
    %v1099 = vunpack.c.l.b16 %v184
    %v1100 = vunpack.c.h.b16 %v184
    %v1101 = vunpack.c.l.b16 %v185
    %v1102 = vunpack.c.h.b16 %v185
    %v1103 = vunpack.c.l.b16 %v186
    %v1104 = vunpack.c.h.b16 %v186
    %v1105 = vunpack.c.l.b16 %v187
    %v1106 = vunpack.c.h.b16 %v187
    %v1107 = vunpack.c.l.b16 %v188
    %v1108 = vunpack.c.h.b16 %v188
    %v1109 = vunpack.c.l.b16 %v189
    %v1110 = vunpack.c.h.b16 %v189
    %v1111 = vunpack.c.l.b16 %v190
    %v1112 = vunpack.c.h.b16 %v190
    %v1113 = vunpack.c.l.b16 %v191
    %v1114 = vunpack.c.h.b16 %v191
    %v1115 = vunpack.c.l.b16 %v192
    %v1116 = vunpack.c.h.b16 %v192
    %v1117 = vunpack.c.l.b16 %v193
    %v1118 = vunpack.c.h.b16 %v193
    %v1119 = vunpack.c.l.b16 %v194
    %v1120 = vunpack.c.h.b16 %v194
    %v1121 = vunpack.c.l.b16 %v195
    %v1122 = vunpack.c.h.b16 %v195
    %v1123 = vunpack.c.l.b16 %v196
    %v1124 = vunpack.c.h.b16 %v196
    %v1125 = vunpack.c.l.b16 %v197
    %v1126 = vunpack.c.h.b16 %v197
    %v1127 = vunpack.c.l.b16 %v198
    %v1128 = vunpack.c.h.b16 %v198
    %v1129 = vunpack.c.l.b16 %v199
    %v1130 = vunpack.c.h.b16 %v199
    %v1131 = vunpack.c.l.b16 %v200
    %v1132 = vunpack.c.h.b16 %v200
    %v1133 = vunpack.c.l.b16 %v201
    %v1134 = vunpack.c.h.b16 %v201
    %v1135 = vunpack.c.l.b16 %v202
    %v1136 = vunpack.c.h.b16 %v202
    %v1137 = vunpack.c.l.b16 %v203
    %v1138 = vunpack.c.h.b16 %v203
    %v1139 = vunpack.c.l.b16 %v204
    %v1140 = vunpack.c.h.b16 %v204
    %v1141 = vunpack.c.l.b16 %v205
    %v1142 = vunpack.c.h.b16 %v205
    %v1143 = vunpack.c.l.b16 %v206
    %v1144 = vunpack.c.h.b16 %v206
    %v1145 = vunpack.c.l.b16 %v207
    %v1146 = vunpack.c.h.b16 %v207
    %v1147 = vunpack.c.l.b16 %v208
    %v1148 = vunpack.c.h.b16 %v208
    %v1149 = vunpack.c.l.b16 %v209
    %v1150 = vunpack.c.h.b16 %v209
    %v1151 = vunpack.c.l.b16 %v210
    %v1152 = vunpack.c.h.b16 %v210
    %v1153 = vunpack.c.l.b16 %v211
    %v1154 = vunpack.c.h.b16 %v211
    %v1155 = vunpack.c.l.b16 %v212
    %v1156 = vunpack.c.h.b16 %v212
    %v1157 = vunpack.c.l.b16 %v213
    %v1158 = vunpack.c.h.b16 %v213
    %v1159 = vunpack.c.l.b16 %v214
    %v1160 = vunpack.c.h.b16 %v214
    %v1161 = vunpack.c.l.b16 %v215
    %v1162 = vunpack.c.h.b16 %v215
    %v1163 = vunpack.c.l.b16 %v216
    %v1164 = vunpack.c.h.b16 %v216
    %v1165 = vunpack.c.l.b16 %v217
    %v1166 = vunpack.c.h.b16 %v217
    %v1167 = vunpack.c.l.b16 %v218
    %v1168 = vunpack.c.h.b16 %v218
    %v1169 = vunpack.c.l.b16 %v219
    %v1170 = vunpack.c.h.b16 %v219
    %v1171 = vunpack.c.l.b16 %v220
    %v1172 = vunpack.c.h.b16 %v220
    %v1173 = vunpack.c.l.b16 %v221
    %v1174 = vunpack.c.h.b16 %v221
    %v1175 = vunpack.c.l.b16 %v222
    %v1176 = vunpack.c.h.b16 %v222
    %v1177 = vunpack.c.l.b16 %v223
    %v1178 = vunpack.c.h.b16 %v223
    %v1179 = vunpack.c.l.b16 %v224
    %v1180 = vunpack.c.h.b16 %v224
    %v1181 = vunpack.c.l.b16 %v225
    %v1182 = vunpack.c.h.b16 %v225
    %v1183 = vunpack.c.l.b16 %v226
    %v1184 = vunpack.c.h.b16 %v226
    %v1185 = vunpack.c.l.b16 %v227
    %v1186 = vunpack.c.h.b16 %v227
    %v1187 = vunpack.c.l.b16 %v228
    %v1188 = vunpack.c.h.b16 %v228
    %v1189 = vunpack.c.l.b16 %v229
    %v1190 = vunpack.c.h.b16 %v229
    %v1191 = vunpack.c.l.b16 %v230
    %v1192 = vunpack.c.h.b16 %v230
    %v1193 = vunpack.c.l.b16 %v231
    %v1194 = vunpack.c.h.b16 %v231
    %v1195 = vunpack.c.l.b16 %v232
    %v1196 = vunpack.c.h.b16 %v232
    %v1197 = vunpack.c.l.b16 %v233
    %v1198 = vunpack.c.h.b16 %v233
    %v1199 = vunpack.c.l.b16 %v234
    %v1200 = vunpack.c.h.b16 %v234
    %v1201 = vunpack.c.l.b16 %v235
    %v1202 = vunpack.c.h.b16 %v235
    %v1203 = vunpack.c.l.b16 %v236
    %v1204 = vunpack.c.h.b16 %v236
    %v1205 = vunpack.c.l.b16 %v237
    %v1206 = vunpack.c.h.b16 %v237
    %v1207 = vunpack.c.l.b16 %v238
    %v1208 = vunpack.c.h.b16 %v238
    %v1209 = vunpack.c.l.b16 %v239
    %v1210 = vunpack.c.h.b16 %v239
    %v1211 = vunpack.c.l.b16 %v240
    %v1212 = vunpack.c.h.b16 %v240
    %v1213 = vunpack.c.l.b16 %v241
    %v1214 = vunpack.c.h.b16 %v241
    %v1215 = vunpack.c.l.b16 %v242
    %v1216 = vunpack.c.h.b16 %v242
    %v1217 = vunpack.c.l.b16 %v243
    %v1218 = vunpack.c.h.b16 %v243
    %v1219 = vunpack.c.l.b16 %v244
    %v1220 = vunpack.c.h.b16 %v244
    %v1221 = vunpack.c.l.b16 %v245
    %v1222 = vunpack.c.h.b16 %v245
    %v1223 = vunpack.c.l.b16 %v246
    %v1224 = vunpack.c.h.b16 %v246
    %v1225 = vunpack.c.l.b16 %v247
    %v1226 = vunpack.c.h.b16 %v247
    %v1227 = vunpack.c.l.b16 %v248
    %v1228 = vunpack.c.h.b16 %v248
    %v1229 = vunpack.c.l.b16 %v249
    %v1230 = vunpack.c.h.b16 %v249
    %v1231 = vunpack.c.l.b16 %v250
    %v1232 = vunpack.c.h.b16 %v250
    %v1233 = vunpack.c.l.b16 %v251
    %v1234 = vunpack.c.h.b16 %v251
    %v1235 = vunpack.c.l.b16 %v252
    %v1236 = vunpack.c.h.b16 %v252
    %v1237 = vunpack.c.l.b16 %v253
    %v1238 = vunpack.c.h.b16 %v253
    %v1239 = vunpack.c.l.b16 %v254
    %v1240 = vunpack.c.h.b16 %v254
    %v1241 = vunpack.c.l.b16 %v255
    %v1242 = vunpack.c.h.b16 %v255
    %v1243 = vunpack.c.l.b16 %v256
    %v1244 = vunpack.c.h.b16 %v256
    %v1245 = vunpack.c.l.b16 %v257
    %v1246 = vunpack.c.h.b16 %v257
    %v1247 = vunpack.c.l.b16 %v258
    %v1248 = vunpack.c.h.b16 %v258
    %v1249 = vunpack.c.l.b16 %v259
    %v1250 = vunpack.c.h.b16 %v259
    %v1251 = vunpack.c.l.b16 %v260
    %v1252 = vunpack.c.h.b16 %v260
    %v1253 = vunpack.c.l.b16 %v261
    %v1254 = vunpack.c.h.b16 %v261
    %v1255 = vunpack.c.l.b16 %v262
    %v1256 = vunpack.c.h.b16 %v262
    %v1257 = vunpack.c.l.b16 %v263
    %v1258 = vunpack.c.h.b16 %v263
    %v1259 = vunpack.c.l.b16 %v264
    %v1260 = vunpack.c.h.b16 %v264
    %v1261 = vunpack.c.l.b16 %v265
    %v1262 = vunpack.c.h.b16 %v265
    %v1263 = vunpack.c.l.b16 %v266
    %v1264 = vunpack.c.h.b16 %v266
    %v1265 = vunpack.c.l.b16 %v267
    %v1266 = vunpack.c.h.b16 %v267
    %v1267 = vunpack.c.l.b16 %v268
    %v1268 = vunpack.c.h.b16 %v268
    %v1269 = vunpack.c.l.b16 %v269
    %v1270 = vunpack.c.h.b16 %v269
    %v1271 = vunpack.c.l.b16 %v270
    %v1272 = vunpack.c.h.b16 %v270
    %v1273 = vunpack.c.l.b16 %v271
    %v1274 = vunpack.c.h.b16 %v271
    %v1275 = vunpack.c.l.b16 %v272
    %v1276 = vunpack.c.h.b16 %v272
    %v1277 = vunpack.c.l.b16 %v273
    %v1278 = vunpack.c.h.b16 %v273
    %v1279 = vunpack.c.l.b16 %v274
    %v1280 = vunpack.c.h.b16 %v274
    %v1281 = vunpack.c.l.b16 %v275
    %v1282 = vunpack.c.h.b16 %v275
    %v1283 = vunpack.c.l.b16 %v276
    %v1284 = vunpack.c.h.b16 %v276
    %v1285 = vunpack.c.l.b16 %v277
    %v1286 = vunpack.c.h.b16 %v277
    %v1287 = vunpack.c.l.b16 %v278
    %v1288 = vunpack.c.h.b16 %v278
    %v1289 = vunpack.c.l.b16 %v279
    %v1290 = vunpack.c.h.b16 %v279
    %v1291 = vunpack.c.l.b16 %v280
    %v1292 = vunpack.c.h.b16 %v280
    %v1293 = vunpack.c.l.b16 %v281
    %v1294 = vunpack.c.h.b16 %v281
    %v1295 = vunpack.c.l.b16 %v282
    %v1296 = vunpack.c.h.b16 %v282
    %v1297 = vunpack.c.l.b16 %v283
    %v1298 = vunpack.c.h.b16 %v283
    %v1299 = vunpack.c.l.b16 %v284
    %v1300 = vunpack.c.h.b16 %v284
    %v1301 = vunpack.c.l.b16 %v285
    %v1302 = vunpack.c.h.b16 %v285
    %v1303 = vunpack.c.l.b16 %v286
    %v1304 = vunpack.c.h.b16 %v286
    %v1305 = vunpack.c.l.b16 %v287
    %v1306 = vunpack.c.h.b16 %v287
    %v1307 = vunpack.c.l.b16 %v288
    %v1308 = vunpack.c.h.b16 %v288
    %v1309 = vunpack.c.l.b16 %v289
    %v1310 = vunpack.c.h.b16 %v289
    %v1311 = vunpack.c.l.b16 %v290
    %v1312 = vunpack.c.h.b16 %v290
    %v1313 = vunpack.c.l.b16 %v291
    %v1314 = vunpack.c.h.b16 %v291
    %v1315 = vunpack.c.l.b16 %v292
    %v1316 = vunpack.c.h.b16 %v292
    %v1317 = vunpack.c.l.b16 %v293
    %v1318 = vunpack.c.h.b16 %v293
    %v1319 = vunpack.c.l.b16 %v294
    %v1320 = vunpack.c.h.b16 %v294
    %v1321 = vunpack.c.l.b16 %v295
    %v1322 = vunpack.c.h.b16 %v295
    %v1323 = vunpack.c.l.b16 %v296
    %v1324 = vunpack.c.h.b16 %v296
    %v1325 = vunpack.c.l.b16 %v297
    %v1326 = vunpack.c.h.b16 %v297
    %v1327 = vunpack.c.l.b16 %v298
    %v1328 = vunpack.c.h.b16 %v298
    %v1329 = vunpack.c.l.b16 %v299
    %v1330 = vunpack.c.h.b16 %v299
    %v1331 = vunpack.c.l.b16 %v300
    %v1332 = vunpack.c.h.b16 %v300
    %v1333 = vunpack.c.l.b16 %v301
    %v1334 = vunpack.c.h.b16 %v301
    %v1335 = vunpack.c.l.b16 %v302
    %v1336 = vunpack.c.h.b16 %v302
    %v1337 = vunpack.c.l.b16 %v303
    %v1338 = vunpack.c.h.b16 %v303
    %v1339 = vunpack.c.l.b16 %v304
    %v1340 = vunpack.c.h.b16 %v304
    %v1341 = vunpack.c.l.b16 %v305
    %v1342 = vunpack.c.h.b16 %v305
    %v1343 = vunpack.c.l.b16 %v306
    %v1344 = vunpack.c.h.b16 %v306
    %v1345 = vunpack.c.l.b16 %v307
    %v1346 = vunpack.c.h.b16 %v307
    %v1347 = vunpack.c.l.b16 %v308
    %v1348 = vunpack.c.h.b16 %v308
    %v1349 = vunpack.c.l.b16 %v309
    %v1350 = vunpack.c.h.b16 %v309
    %v1351 = vunpack.c.l.b16 %v310
    %v1352 = vunpack.c.h.b16 %v310
    %v1353 = vunpack.c.l.b16 %v311
    %v1354 = vunpack.c.h.b16 %v311
    %v1355 = vunpack.c.l.b16 %v312
    %v1356 = vunpack.c.h.b16 %v312
    %v1357 = vunpack.c.l.b16 %v313
    %v1358 = vunpack.c.h.b16 %v313
    %v1359 = vunpack.c.l.b16 %v314
    %v1360 = vunpack.c.h.b16 %v314
    %v1361 = vunpack.c.l.b16 %v315
    %v1362 = vunpack.c.h.b16 %v315
    %v1363 = vunpack.c.l.b16 %v316
    %v1364 = vunpack.c.h.b16 %v316
    %v1365 = vunpack.c.l.b16 %v317
    %v1366 = vunpack.c.h.b16 %v317
    %v1367 = vunpack.c.l.b16 %v318
    %v1368 = vunpack.c.h.b16 %v318
    %v1369 = vunpack.c.l.b16 %v319
    %v1370 = vunpack.c.h.b16 %v319
    %v1371 = vunpack.c.l.b16 %v320
    %v1372 = vunpack.c.h.b16 %v320
    %v1373 = vunpack.c.l.b16 %v321
    %v1374 = vunpack.c.h.b16 %v321
    %v1375 = vunpack.c.l.b16 %v322
    %v1376 = vunpack.c.h.b16 %v322
    %v1377 = vunpack.c.l.b16 %v323
    %v1378 = vunpack.c.h.b16 %v323
    %v1379 = vunpack.c.l.b16 %v324
    %v1380 = vunpack.c.h.b16 %v324
    %v1381 = vunpack.c.l.b16 %v325
    %v1382 = vunpack.c.h.b16 %v325
    %v1383 = vunpack.c.l.b16 %v326
    %v1384 = vunpack.c.h.b16 %v326
    %v1385 = vunpack.c.l.b16 %v327
    %v1386 = vunpack.c.h.b16 %v327
    %v1387 = vunpack.c.l.b16 %v328
    %v1388 = vunpack.c.h.b16 %v328
    %v1389 = vunpack.c.l.b16 %v329
    %v1390 = vunpack.c.h.b16 %v329
    %v1391 = vunpack.c.l.b16 %v330
    %v1392 = vunpack.c.h.b16 %v330
    %v1393 = vunpack.c.l.b16 %v331
    %v1394 = vunpack.c.h.b16 %v331
    %v1395 = vunpack.c.l.b16 %v332
    %v1396 = vunpack.c.h.b16 %v332
    %v1397 = vunpack.c.l.b16 %v333
    %v1398 = vunpack.c.h.b16 %v333
    %v1399 = vunpack.c.l.b16 %v334
    %v1400 = vunpack.c.h.b16 %v334
    %v1401 = vunpack.c.l.b16 %v335
    %v1402 = vunpack.c.h.b16 %v335
    %v1403 = vunpack.c.l.b16 %v336
    %v1404 = vunpack.c.h.b16 %v336
    %v1405 = vunpack.c.l.b16 %v337
    %v1406 = vunpack.c.h.b16 %v337
    %v1407 = vunpack.c.l.b16 %v338
    %v1408 = vunpack.c.h.b16 %v338
    %v1409 = vunpack.c.l.b16 %v339
    %v1410 = vunpack.c.h.b16 %v339
    %v1411 = vunpack.c.l.b16 %v340
    %v1412 = vunpack.c.h.b16 %v340
    %v1413 = vunpack.c.l.b16 %v341
    %v1414 = vunpack.c.h.b16 %v341
    %v1415 = vunpack.c.l.b16 %v342
    %v1416 = vunpack.c.h.b16 %v342
    %v1417 = vunpack.c.l.b16 %v343
    %v1418 = vunpack.c.h.b16 %v343
    %v1419 = vunpack.c.l.b16 %v344
    %v1420 = vunpack.c.h.b16 %v344
    %v1421 = vunpack.c.l.b16 %v345
    %v1422 = vunpack.c.h.b16 %v345
    %v1423 = vunpack.c.l.b16 %v346
    %v1424 = vunpack.c.h.b16 %v346
    %v1425 = vunpack.c.l.b16 %v347
    %v1426 = vunpack.c.h.b16 %v347
    %v1427 = vunpack.c.l.b16 %v348
    %v1428 = vunpack.c.h.b16 %v348
    %v1429 = vunpack.c.l.b16 %v349
    %v1430 = vunpack.c.h.b16 %v349
    %v1431 = vunpack.c.l.b16 %v350
    %v1432 = vunpack.c.h.b16 %v350
    %v1433 = vunpack.c.l.b16 %v351
    %v1434 = vunpack.c.h.b16 %v351
    %v1435 = vunpack.c.l.b16 %v352
    %v1436 = vunpack.c.h.b16 %v352
    %v1437 = vunpack.c.l.b16 %v353
    %v1438 = vunpack.c.h.b16 %v353
    %v1439 = vunpack.c.l.b16 %v354
    %v1440 = vunpack.c.h.b16 %v354
    %v1441 = vunpack.c.l.b16 %v355
    %v1442 = vunpack.c.h.b16 %v355
    %v1443 = vunpack.c.l.b16 %v356
    %v1444 = vunpack.c.h.b16 %v356
    %v1445 = vunpack.c.l.b16 %v357
    %v1446 = vunpack.c.h.b16 %v357
    %v1447 = vunpack.c.l.b16 %v358
    %v1448 = vunpack.c.h.b16 %v358
    %v1449 = vunpack.c.l.b16 %v359
    %v1450 = vunpack.c.h.b16 %v359
    %v1451 = vunpack.c.l.b16 %v360
    %v1452 = vunpack.c.h.b16 %v360
    %v1453 = vunpack.c.l.b16 %v361
    %v1454 = vunpack.c.h.b16 %v361
    %v1455 = vunpack.c.l.b16 %v362
    %v1456 = vunpack.c.h.b16 %v362
    %v1457 = vunpack.c.l.b16 %v363
    %v1458 = vunpack.c.h.b16 %v363
    %v1459 = vunpack.c.l.b16 %v364
    %v1460 = vunpack.c.h.b16 %v364
    %v1461 = vunpack.c.l.b16 %v365
    %v1462 = vunpack.c.h.b16 %v365
    %v1463 = vunpack.c.l.b16 %v366
    %v1464 = vunpack.c.h.b16 %v366
    %v1465 = vunpack.c.l.b16 %v367
    %v1466 = vunpack.c.h.b16 %v367
    %v1467 = vunpack.c.l.b16 %v368
    %v1468 = vunpack.c.h.b16 %v368
    %v1469 = vunpack.c.l.b16 %v369
    %v1470 = vunpack.c.h.b16 %v369
    %v1471 = vunpack.c.l.b16 %v370
    %v1472 = vunpack.c.h.b16 %v370
    %v1473 = vunpack.c.l.b16 %v371
    %v1474 = vunpack.c.h.b16 %v371
    %v1475 = vunpack.c.l.b16 %v372
    %v1476 = vunpack.c.h.b16 %v372
    %v1477 = vunpack.c.l.b16 %v373
    %v1478 = vunpack.c.h.b16 %v373
    %v1479 = vunpack.c.l.b16 %v374
    %v1480 = vunpack.c.h.b16 %v374
    %v1481 = vunpack.c.l.b16 %v375
    %v1482 = vunpack.c.h.b16 %v375
    %v1483 = vunpack.c.l.b16 %v376
    %v1484 = vunpack.c.h.b16 %v376
    %v1485 = vunpack.c.l.b16 %v377
    %v1486 = vunpack.c.h.b16 %v377
    %v1487 = vunpack.c.l.b16 %v378
    %v1488 = vunpack.c.h.b16 %v378
    %v1489 = vunpack.c.l.b16 %v379
    %v1490 = vunpack.c.h.b16 %v379
    %v1491 = vunpack.c.l.b16 %v380
    %v1492 = vunpack.c.h.b16 %v380
    %v1493 = vunpack.c.l.b16 %v381
    %v1494 = vunpack.c.h.b16 %v381
    %v1495 = vunpack.c.l.b16 %v382
    %v1496 = vunpack.c.h.b16 %v382
    %v1497 = vunpack.c.l.b16 %v383
    %v1498 = vunpack.c.h.b16 %v383
    %v1499 = vunpack.c.l.b16 %v384
    %v1500 = vunpack.c.h.b16 %v384
    %v1501 = vunpack.c.l.b16 %v385
    %v1502 = vunpack.c.h.b16 %v385
    %v1503 = vunpack.c.l.b16 %v386
    %v1504 = vunpack.c.h.b16 %v386
    %v1505 = vunpack.c.l.b16 %v387
    %v1506 = vunpack.c.h.b16 %v387
    %v1507 = vunpack.c.l.b16 %v388
    %v1508 = vunpack.c.h.b16 %v388
    %v1509 = vunpack.c.l.b16 %v389
    %v1510 = vunpack.c.h.b16 %v389
    %v1511 = vunpack.c.l.b16 %v390
    %v1512 = vunpack.c.h.b16 %v390
    %v1513 = vunpack.c.l.b16 %v391
    %v1514 = vunpack.c.h.b16 %v391
    %v1515 = vunpack.c.l.b16 %v392
    %v1516 = vunpack.c.h.b16 %v392
    %v1517 = vunpack.c.l.b16 %v393
    %v1518 = vunpack.c.h.b16 %v393
    %v1519 = vunpack.c.l.b16 %v394
    %v1520 = vunpack.c.h.b16 %v394
    %v1521 = vunpack.c.l.b16 %v395
    %v1522 = vunpack.c.h.b16 %v395
    %v1523 = vunpack.c.l.b16 %v396
    %v1524 = vunpack.c.h.b16 %v396
    %v1525 = vunpack.c.l.b16 %v397
    %v1526 = vunpack.c.h.b16 %v397
    %v1527 = vunpack.c.l.b16 %v398
    %v1528 = vunpack.c.h.b16 %v398
    %v1529 = vunpack.c.l.b16 %v399
    %v1530 = vunpack.c.h.b16 %v399
    %v1531 = vunpack.c.l.b16 %v400
    %v1532 = vunpack.c.h.b16 %v400
    %v1533 = vunpack.c.l.b16 %v401
    %v1534 = vunpack.c.h.b16 %v401
    %v1535 = vunpack.c.l.b16 %v402
    %v1536 = vunpack.c.h.b16 %v402
    %v1537 = vunpack.c.l.b16 %v403
    %v1538 = vunpack.c.h.b16 %v403
    %v1539 = vunpack.c.l.b16 %v404
    %v1540 = vunpack.c.h.b16 %v404
    %v1541 = vunpack.c.l.b16 %v405
    %v1542 = vunpack.c.h.b16 %v405
    %v1543 = vunpack.c.l.b16 %v406
    %v1544 = vunpack.c.h.b16 %v406
    %v1545 = vunpack.c.l.b16 %v407
    %v1546 = vunpack.c.h.b16 %v407
    %v1547 = vunpack.c.l.b16 %v408
    %v1548 = vunpack.c.h.b16 %v408
    %v1549 = vunpack.c.l.b16 %v409
    %v1550 = vunpack.c.h.b16 %v409
    %v1551 = vunpack.c.l.b16 %v410
    %v1552 = vunpack.c.h.b16 %v410
    %v1553 = vunpack.c.l.b16 %v411
    %v1554 = vunpack.c.h.b16 %v411
    %v1555 = vunpack.c.l.b16 %v412
    %v1556 = vunpack.c.h.b16 %v412
    %v1557 = vunpack.c.l.b16 %v413
    %v1558 = vunpack.c.h.b16 %v413
    %v1559 = vunpack.c.l.b16 %v414
    %v1560 = vunpack.c.h.b16 %v414
    %v1561 = vunpack.c.l.b16 %v415
    %v1562 = vunpack.c.h.b16 %v415
    %v1563 = vunpack.c.l.b16 %v416
    %v1564 = vunpack.c.h.b16 %v416
    %v1565 = vunpack.c.l.b16 %v417
    %v1566 = vunpack.c.h.b16 %v417
    %v1567 = vunpack.c.l.b16 %v418
    %v1568 = vunpack.c.h.b16 %v418
    %v1569 = vunpack.c.l.b16 %v419
    %v1570 = vunpack.c.h.b16 %v419
    %v1571 = vunpack.c.l.b16 %v420
    %v1572 = vunpack.c.h.b16 %v420
    %v1573 = vunpack.c.l.b16 %v421
    %v1574 = vunpack.c.h.b16 %v421
    %v1575 = vunpack.c.l.b16 %v422
    %v1576 = vunpack.c.h.b16 %v422
    %v1577 = vunpack.c.l.b16 %v423
    %v1578 = vunpack.c.h.b16 %v423
    %v1579 = vunpack.c.l.b16 %v424
    %v1580 = vunpack.c.h.b16 %v424
    %v1581 = vunpack.c.l.b16 %v425
    %v1582 = vunpack.c.h.b16 %v425
    %v1583 = vunpack.c.l.b16 %v426
    %v1584 = vunpack.c.h.b16 %v426
    %v1585 = vunpack.c.l.b16 %v427
    %v1586 = vunpack.c.h.b16 %v427
    %v1587 = vunpack.c.l.b16 %v428
    %v1588 = vunpack.c.h.b16 %v428
    %v1589 = vunpack.c.l.b16 %v429
    %v1590 = vunpack.c.h.b16 %v429
    %v1591 = vunpack.c.l.b16 %v430
    %v1592 = vunpack.c.h.b16 %v430
    %v1593 = vunpack.c.l.b16 %v431
    %v1594 = vunpack.c.h.b16 %v431
    %v1595 = vunpack.c.l.b16 %v432
    %v1596 = vunpack.c.h.b16 %v432
    %v1597 = vunpack.c.l.b16 %v433
    %v1598 = vunpack.c.h.b16 %v433
    %v1599 = vunpack.c.l.b16 %v434
    %v1600 = vunpack.c.h.b16 %v434
    %v1601 = vunpack.c.l.b16 %v435
    %v1602 = vunpack.c.h.b16 %v435
    %v1603 = vunpack.c.l.b16 %v436
    %v1604 = vunpack.c.h.b16 %v436
    %v1605 = vunpack.c.l.b16 %v437
    %v1606 = vunpack.c.h.b16 %v437
    %v1607 = vunpack.c.l.b16 %v438
    %v1608 = vunpack.c.h.b16 %v438
    %v1609 = vunpack.c.l.b16 %v439
    %v1610 = vunpack.c.h.b16 %v439
    %v1611 = vunpack.c.l.b16 %v440
    %v1612 = vunpack.c.h.b16 %v440
    %v1613 = vunpack.c.l.b16 %v441
    %v1614 = vunpack.c.h.b16 %v441
    %v1615 = vunpack.c.l.b16 %v442
    %v1616 = vunpack.c.h.b16 %v442
    %v1617 = vunpack.c.l.b16 %v443
    %v1618 = vunpack.c.h.b16 %v443
    %v1619 = vunpack.c.l.b16 %v444
    %v1620 = vunpack.c.h.b16 %v444
    %v1621 = vunpack.c.l.b16 %v445
    %v1622 = vunpack.c.h.b16 %v445
    %v1623 = vunpack.c.l.b16 %v446
    %v1624 = vunpack.c.h.b16 %v446
    %v1625 = vunpack.c.l.b16 %v447
    %v1626 = vunpack.c.h.b16 %v447
    %v1627 = vunpack.c.l.b16 %v448
    %v1628 = vunpack.c.h.b16 %v448
    %v1629 = vunpack.c.l.b16 %v449
    %v1630 = vunpack.c.h.b16 %v449
    %v1631 = vunpack.c.l.b16 %v450
    %v1632 = vunpack.c.h.b16 %v450
    %v1633 = vunpack.c.l.b16 %v451
    %v1634 = vunpack.c.h.b16 %v451
    %v1635 = vunpack.c.l.b16 %v452
    %v1636 = vunpack.c.h.b16 %v452
    %v1637 = vunpack.c.l.b16 %v453
    %v1638 = vunpack.c.h.b16 %v453
    %v1639 = vunpack.c.l.b16 %v454
    %v1640 = vunpack.c.h.b16 %v454
    %v1641 = vunpack.c.l.b16 %v455
    %v1642 = vunpack.c.h.b16 %v455
    %v1643 = vunpack.c.l.b16 %v456
    %v1644 = vunpack.c.h.b16 %v456
    %v1645 = vunpack.c.l.b16 %v457
    %v1646 = vunpack.c.h.b16 %v457
    %v1647 = vunpack.c.l.b16 %v458
    %v1648 = vunpack.c.h.b16 %v458
    %v1649 = vunpack.c.l.b16 %v459
    %v1650 = vunpack.c.h.b16 %v459
    %v1651 = vunpack.c.l.b16 %v460
    %v1652 = vunpack.c.h.b16 %v460
    %v1653 = vunpack.c.l.b16 %v461
    %v1654 = vunpack.c.h.b16 %v461
    %v1655 = vunpack.c.l.b16 %v462
    %v1656 = vunpack.c.h.b16 %v462
    %v1657 = vunpack.c.l.b16 %v463
    %v1658 = vunpack.c.h.b16 %v463
    %v1659 = vunpack.c.l.b16 %v464
    %v1660 = vunpack.c.h.b16 %v464
    %v1661 = vunpack.c.l.b16 %v465
    %v1662 = vunpack.c.h.b16 %v465
    %v1663 = vunpack.c.l.b16 %v466
    %v1664 = vunpack.c.h.b16 %v466
    %v1665 = vunpack.c.l.b16 %v467
    %v1666 = vunpack.c.h.b16 %v467
    %v1667 = vunpack.c.l.b16 %v468
    %v1668 = vunpack.c.h.b16 %v468
    %v1669 = vunpack.c.l.b16 %v469
    %v1670 = vunpack.c.h.b16 %v469
    %v1671 = vunpack.c.l.b16 %v470
    %v1672 = vunpack.c.h.b16 %v470
    %v1673 = vunpack.c.l.b16 %v471
    %v1674 = vunpack.c.h.b16 %v471
    %v1675 = vunpack.c.l.b16 %v472
    %v1676 = vunpack.c.h.b16 %v472
    %v1677 = vunpack.c.l.b16 %v473
    %v1678 = vunpack.c.h.b16 %v473
    %v1679 = vunpack.c.l.b16 %v474
    %v1680 = vunpack.c.h.b16 %v474
    %v1681 = vunpack.c.l.b16 %v475
    %v1682 = vunpack.c.h.b16 %v475
    %v1683 = vunpack.c.l.b16 %v476
    %v1684 = vunpack.c.h.b16 %v476
    %v1685 = vunpack.c.l.b16 %v477
    %v1686 = vunpack.c.h.b16 %v477
    %v1687 = vunpack.c.l.b16 %v478
    %v1688 = vunpack.c.h.b16 %v478
    %v1689 = vunpack.c.l.b16 %v479
    %v1690 = vunpack.c.h.b16 %v479
    %v1691 = vunpack.c.l.b16 %v480
    %v1692 = vunpack.c.h.b16 %v480
    %v1693 = vunpack.c.l.b16 %v481
    %v1694 = vunpack.c.h.b16 %v481
    %v1695 = vunpack.c.l.b16 %v482
    %v1696 = vunpack.c.h.b16 %v482
    %v1697 = vunpack.c.l.b16 %v483
    %v1698 = vunpack.c.h.b16 %v483
    %v1699 = vunpack.c.l.b16 %v484
    %v1700 = vunpack.c.h.b16 %v484
    %v1701 = vunpack.c.l.b16 %v485
    %v1702 = vunpack.c.h.b16 %v485
    %v1703 = vunpack.c.l.b16 %v486
    %v1704 = vunpack.c.h.b16 %v486
    %v1705 = vunpack.c.l.b16 %v487
    %v1706 = vunpack.c.h.b16 %v487
    %v1707 = vunpack.c.l.b16 %v488
    %v1708 = vunpack.c.h.b16 %v488
    %v1709 = vunpack.c.l.b16 %v489
    %v1710 = vunpack.c.h.b16 %v489
    %v1711 = vunpack.c.l.b16 %v490
    %v1712 = vunpack.c.h.b16 %v490
    %v1713 = vunpack.c.l.b16 %v491
    %v1714 = vunpack.c.h.b16 %v491
    %v1715 = vunpack.c.l.b16 %v492
    %v1716 = vunpack.c.h.b16 %v492
    %v1717 = vunpack.c.l.b16 %v493
    %v1718 = vunpack.c.h.b16 %v493
    %v1719 = vunpack.c.l.b16 %v494
    %v1720 = vunpack.c.h.b16 %v494
    %v1721 = vunpack.c.l.b16 %v495
    %v1722 = vunpack.c.h.b16 %v495
    %v1723 = vunpack.c.l.b16 %v496
    %v1724 = vunpack.c.h.b16 %v496
    %v1725 = vunpack.c.l.b16 %v497
    %v1726 = vunpack.c.h.b16 %v497
    %v1727 = vunpack.c.l.b16 %v498
    %v1728 = vunpack.c.h.b16 %v498
    %v1729 = vunpack.c.l.b16 %v499
    %v1730 = vunpack.c.h.b16 %v499
    %v1731 = vunpack.c.l.b16 %v500
    %v1732 = vunpack.c.h.b16 %v500
    %v1733 = vunpack.c.l.b16 %v501
    %v1734 = vunpack.c.h.b16 %v501
    %v1735 = vunpack.c.l.b16 %v502
    %v1736 = vunpack.c.h.b16 %v502
    %v1737 = vunpack.c.l.b16 %v503
    %v1738 = vunpack.c.h.b16 %v503
    %v1739 = vunpack.c.l.b16 %v504
    %v1740 = vunpack.c.h.b16 %v504
    %v1741 = vunpack.c.l.b16 %v505
    %v1742 = vunpack.c.h.b16 %v505
    %v1743 = vunpack.c.l.b16 %v506
    %v1744 = vunpack.c.h.b16 %v506
    %v1745 = vunpack.c.l.b16 %v507
    %v1746 = vunpack.c.h.b16 %v507
    %v1747 = vunpack.c.l.b16 %v508
    %v1748 = vunpack.c.h.b16 %v508
    %v1749 = vunpack.c.l.b16 %v509
    %v1750 = vunpack.c.h.b16 %v509
    %v1751 = vunpack.c.l.b16 %v510
    %v1752 = vunpack.c.h.b16 %v510
    %v1753 = vpack.c.b16 %v977, %v969
    %v1754 = vpack.c.b16 %v978, %v970
    %v1755 = vpack.c.b16 %v979, %v971
    %v1756 = vpack.c.b16 %v980, %v972
    %v1757 = vpack.c.b16 %v981, %v973
    %v1758 = vpack.c.b16 %v982, %v974
    %v1759 = vpack.c.b16 %v983, %v975
    %v1760 = vpack.c.b16 %v984, %v976
    %v1761 = vpack.c.b16 %v993, %v985
    %v1762 = vpack.c.b16 %v994, %v986
    %v1763 = vpack.c.b16 %v995, %v987
    %v1764 = vpack.c.b16 %v996, %v988
    %v1765 = vpack.c.b16 %v997, %v989
    %v1766 = vpack.c.b16 %v998, %v990
    %v1767 = vpack.c.b16 %v999, %v991
    %v1768 = vpack.c.b16 %v1000, %v992
    %v1769 = vpack.c.b16 %v1009, %v1001
    %v1770 = vpack.c.b16 %v1010, %v1002
    %v1771 = vpack.c.b16 %v1011, %v1003
    %v1772 = vpack.c.b16 %v1012, %v1004
    %v1773 = vpack.c.b16 %v1013, %v1005
    %v1774 = vpack.c.b16 %v1014, %v1006
    %v1775 = vpack.c.b16 %v1015, %v1007
    %v1776 = vpack.c.b16 %v1016, %v1008
    %v1777 = vpack.c.b16 %v1025, %v1017
    %v1778 = vpack.c.b16 %v1026, %v1018
    %v1779 = vpack.c.b16 %v1027, %v1019
    %v1780 = vpack.c.b16 %v1028, %v1020
    %v1781 = vpack.c.b16 %v1029, %v1021
    %v1782 = vpack.c.b16 %v1030, %v1022
    %v1783 = vpack.c.b16 %v1031, %v1023
    %v1784 = vpack.c.b16 %v1032, %v1024
    %v1785 = vpack.c.b16 %v1041, %v1033
    %v1786 = vpack.c.b16 %v1042, %v1034
    %v1787 = vpack.c.b16 %v1043, %v1035
    %v1788 = vpack.c.b16 %v1044, %v1036
    %v1789 = vpack.c.b16 %v1045, %v1037
    %v1790 = vpack.c.b16 %v1046, %v1038
    %v1791 = vpack.c.b16 %v1047, %v1039
    %v1792 = vpack.c.b16 %v1048, %v1040
    %v1793 = vpack.c.b16 %v1057, %v1049
    %v1794 = vpack.c.b16 %v1058, %v1050
    %v1795 = vpack.c.b16 %v1059, %v1051
    %v1796 = vpack.c.b16 %v1060, %v1052
    %v1797 = vpack.c.b16 %v1061, %v1053
    %v1798 = vpack.c.b16 %v1062, %v1054
    %v1799 = vpack.c.b16 %v1063, %v1055
    %v1800 = vpack.c.b16 %v1064, %v1056
    %v1801 = vpack.c.b16 %v1073, %v1065
    %v1802 = vpack.c.b16 %v1074, %v1066
    %v1803 = vpack.c.b16 %v1075, %v1067
    %v1804 = vpack.c.b16 %v1076, %v1068
    %v1805 = vpack.c.b16 %v1077, %v1069
    %v1806 = vpack.c.b16 %v1078, %v1070
    %v1807 = vpack.c.b16 %v1079, %v1071
    %v1808 = vpack.c.b16 %v1080, %v1072
    %v1809 = vpack.c.b16 %v1089, %v1081
    %v1810 = vpack.c.b16 %v1090, %v1082
    %v1811 = vpack.c.b16 %v1091, %v1083
    %v1812 = vpack.c.b16 %v1092, %v1084
    %v1813 = vpack.c.b16 %v1093, %v1085
    %v1814 = vpack.c.b16 %v1094, %v1086
    %v1815 = vpack.c.b16 %v1095, %v1087
    %v1816 = vpack.c.b16 %v1096, %v1088
    %v1817 = vpack.c.b16 %v1105, %v1097
    %v1818 = vpack.c.b16 %v1106, %v1098
    %v1819 = vpack.c.b16 %v1107, %v1099
    %v1820 = vpack.c.b16 %v1108, %v1100
    %v1821 = vpack.c.b16 %v1109, %v1101
    %v1822 = vpack.c.b16 %v1110, %v1102
    %v1823 = vpack.c.b16 %v1111, %v1103
    %v1824 = vpack.c.b16 %v1112, %v1104
    %v1825 = vpack.c.b16 %v1121, %v1113
    %v1826 = vpack.c.b16 %v1122, %v1114
    %v1827 = vpack.c.b16 %v1123, %v1115
    %v1828 = vpack.c.b16 %v1124, %v1116
    %v1829 = vpack.c.b16 %v1125, %v1117
    %v1830 = vpack.c.b16 %v1126, %v1118
    %v1831 = vpack.c.b16 %v1127, %v1119
    %v1832 = vpack.c.b16 %v1128, %v1120
    %v1833 = vpack.c.b16 %v1137, %v1129
    %v1834 = vpack.c.b16 %v1138, %v1130
    %v1835 = vpack.c.b16 %v1139, %v1131
    %v1836 = vpack.c.b16 %v1140, %v1132
    %v1837 = vpack.c.b16 %v1141, %v1133
    %v1838 = vpack.c.b16 %v1142, %v1134
    %v1839 = vpack.c.b16 %v1143, %v1135
    %v1840 = vpack.c.b16 %v1144, %v1136
    %v1841 = vpack.c.b16 %v1153, %v1145
    %v1842 = vpack.c.b16 %v1154, %v1146
    %v1843 = vpack.c.b16 %v1155, %v1147
    %v1844 = vpack.c.b16 %v1156, %v1148
    %v1845 = vpack.c.b16 %v1157, %v1149
    %v1846 = vpack.c.b16 %v1158, %v1150
    %v1847 = vpack.c.b16 %v1159, %v1151
    %v1848 = vpack.c.b16 %v1160, %v1152
    %v1849 = vpack.c.b16 %v1169, %v1161
    %v1850 = vpack.c.b16 %v1170, %v1162
    %v1851 = vpack.c.b16 %v1171, %v1163
    %v1852 = vpack.c.b16 %v1172, %v1164
    %v1853 = vpack.c.b16 %v1173, %v1165
    %v1854 = vpack.c.b16 %v1174, %v1166
    %v1855 = vpack.c.b16 %v1175, %v1167
    %v1856 = vpack.c.b16 %v1176, %v1168
    %v1857 = vpack.c.b16 %v1185, %v1177
    %v1858 = vpack.c.b16 %v1186, %v1178
    %v1859 = vpack.c.b16 %v1187, %v1179
    %v1860 = vpack.c.b16 %v1188, %v1180
    %v1861 = vpack.c.b16 %v1189, %v1181
    %v1862 = vpack.c.b16 %v1190, %v1182
    %v1863 = vpack.c.b16 %v1191, %v1183
    %v1864 = vpack.c.b16 %v1192, %v1184
    %v1865 = vpack.c.b16 %v1201, %v1193
    %v1866 = vpack.c.b16 %v1202, %v1194
    %v1867 = vpack.c.b16 %v1203, %v1195
    %v1868 = vpack.c.b16 %v1204, %v1196
    %v1869 = vpack.c.b16 %v1205, %v1197
    %v1870 = vpack.c.b16 %v1206, %v1198
    %v1871 = vpack.c.b16 %v1207, %v1199
    %v1872 = vpack.c.b16 %v1208, %v1200
    %v1873 = vpack.c.b16 %v1217, %v1209
    %v1874 = vpack.c.b16 %v1218, %v1210
    %v1875 = vpack.c.b16 %v1219, %v1211
    %v1876 = vpack.c.b16 %v1220, %v1212
    %v1877 = vpack.c.b16 %v1221, %v1213
    %v1878 = vpack.c.b16 %v1222, %v1214
    %v1879 = vpack.c.b16 %v1223, %v1215
    %v1880 = vpack.c.b16 %v1224, %v1216
    %v1881 = vpack.c.b16 %v1233, %v1225
    %v1882 = vpack.c.b16 %v1234, %v1226
    %v1883 = vpack.c.b16 %v1235, %v1227
    %v1884 = vpack.c.b16 %v1236, %v1228
    %v1885 = vpack.c.b16 %v1237, %v1229
    %v1886 = vpack.c.b16 %v1238, %v1230
    %v1887 = vpack.c.b16 %v1239, %v1231
    %v1888 = vpack.c.b16 %v1240, %v1232
    %v1889 = vpack.c.b16 %v1249, %v1241
    %v1890 = vpack.c.b16 %v1250, %v1242
    %v1891 = vpack.c.b16 %v1251, %v1243
    %v1892 = vpack.c.b16 %v1252, %v1244
    %v1893 = vpack.c.b16 %v1253, %v1245
    %v1894 = vpack.c.b16 %v1254, %v1246
    %v1895 = vpack.c.b16 %v1255, %v1247
    %v1896 = vpack.c.b16 %v1256, %v1248
    %v1897 = vpack.c.b16 %v1265, %v1257
    %v1898 = vpack.c.b16 %v1266, %v1258
    %v1899 = vpack.c.b16 %v1267, %v1259
    %v1900 = vpack.c.b16 %v1268, %v1260
    %v1901 = vpack.c.b16 %v1269, %v1261
    %v1902 = vpack.c.b16 %v1270, %v1262
    %v1903 = vpack.c.b16 %v1271, %v1263
    %v1904 = vpack.c.b16 %v1272, %v1264
    %v1905 = vpack.c.b16 %v1281, %v1273
    %v1906 = vpack.c.b16 %v1282, %v1274
    %v1907 = vpack.c.b16 %v1283, %v1275
    %v1908 = vpack.c.b16 %v1284, %v1276
    %v1909 = vpack.c.b16 %v1285, %v1277
    %v1910 = vpack.c.b16 %v1286, %v1278
    %v1911 = vpack.c.b16 %v1287, %v1279
    %v1912 = vpack.c.b16 %v1288, %v1280
    %v1913 = vpack.c.b16 %v1297, %v1289
    %v1914 = vpack.c.b16 %v1298, %v1290
    %v1915 = vpack.c.b16 %v1299, %v1291
    %v1916 = vpack.c.b16 %v1300, %v1292
    %v1917 = vpack.c.b16 %v1301, %v1293
    %v1918 = vpack.c.b16 %v1302, %v1294
    %v1919 = vpack.c.b16 %v1303, %v1295
    %v1920 = vpack.c.b16 %v1304, %v1296
    %v1921 = vpack.c.b16 %v1313, %v1305
    %v1922 = vpack.c.b16 %v1314, %v1306
    %v1923 = vpack.c.b16 %v1315, %v1307
    %v1924 = vpack.c.b16 %v1316, %v1308
    %v1925 = vpack.c.b16 %v1317, %v1309
    %v1926 = vpack.c.b16 %v1318, %v1310
    %v1927 = vpack.c.b16 %v1319, %v1311
    %v1928 = vpack.c.b16 %v1320, %v1312
    %v1929 = vpack.c.b16 %v1329, %v1321
    %v1930 = vpack.c.b16 %v1330, %v1322
    %v1931 = vpack.c.b16 %v1331, %v1323
    %v1932 = vpack.c.b16 %v1332, %v1324
    %v1933 = vpack.c.b16 %v1333, %v1325
    %v1934 = vpack.c.b16 %v1334, %v1326
    %v1935 = vpack.c.b16 %v1335, %v1327
    %v1936 = vpack.c.b16 %v1336, %v1328
    %v1937 = vpack.c.b16 %v1345, %v1337
    %v1938 = vpack.c.b16 %v1346, %v1338
    %v1939 = vpack.c.b16 %v1347, %v1339
    %v1940 = vpack.c.b16 %v1348, %v1340
    %v1941 = vpack.c.b16 %v1349, %v1341
    %v1942 = vpack.c.b16 %v1350, %v1342
    %v1943 = vpack.c.b16 %v1351, %v1343
    %v1944 = vpack.c.b16 %v1352, %v1344
    %v1945 = vpack.c.b16 %v1361, %v1353
    %v1946 = vpack.c.b16 %v1362, %v1354
    %v1947 = vpack.c.b16 %v1363, %v1355
    %v1948 = vpack.c.b16 %v1364, %v1356
    %v1949 = vpack.c.b16 %v1365, %v1357
    %v1950 = vpack.c.b16 %v1366, %v1358
    %v1951 = vpack.c.b16 %v1367, %v1359
    %v1952 = vpack.c.b16 %v1368, %v1360
    %v1953 = vpack.c.b16 %v1377, %v1369
    %v1954 = vpack.c.b16 %v1378, %v1370
    %v1955 = vpack.c.b16 %v1379, %v1371
    %v1956 = vpack.c.b16 %v1380, %v1372
    %v1957 = vpack.c.b16 %v1381, %v1373
    %v1958 = vpack.c.b16 %v1382, %v1374
    %v1959 = vpack.c.b16 %v1383, %v1375
    %v1960 = vpack.c.b16 %v1384, %v1376
    %v1961 = vpack.c.b16 %v1393, %v1385
    %v1962 = vpack.c.b16 %v1394, %v1386
    %v1963 = vpack.c.b16 %v1395, %v1387
    %v1964 = vpack.c.b16 %v1396, %v1388
    %v1965 = vpack.c.b16 %v1397, %v1389
    %v1966 = vpack.c.b16 %v1398, %v1390
    %v1967 = vpack.c.b16 %v1399, %v1391
    %v1968 = vpack.c.b16 %v1400, %v1392
    %v1969 = vpack.c.b16 %v1409, %v1401
    %v1970 = vpack.c.b16 %v1410, %v1402
    %v1971 = vpack.c.b16 %v1411, %v1403
    %v1972 = vpack.c.b16 %v1412, %v1404
    %v1973 = vpack.c.b16 %v1413, %v1405
    %v1974 = vpack.c.b16 %v1414, %v1406
    %v1975 = vpack.c.b16 %v1415, %v1407
    %v1976 = vpack.c.b16 %v1416, %v1408
    %v1977 = vpack.c.b16 %v1425, %v1417
    %v1978 = vpack.c.b16 %v1426, %v1418
    %v1979 = vpack.c.b16 %v1427, %v1419
    %v1980 = vpack.c.b16 %v1428, %v1420
    %v1981 = vpack.c.b16 %v1429, %v1421
    %v1982 = vpack.c.b16 %v1430, %v1422
    %v1983 = vpack.c.b16 %v1431, %v1423
    %v1984 = vpack.c.b16 %v1432, %v1424
    %v1985 = vpack.c.b16 %v1441, %v1433
    %v1986 = vpack.c.b16 %v1442, %v1434
    %v1987 = vpack.c.b16 %v1443, %v1435
    %v1988 = vpack.c.b16 %v1444, %v1436
    %v1989 = vpack.c.b16 %v1445, %v1437
    %v1990 = vpack.c.b16 %v1446, %v1438
    %v1991 = vpack.c.b16 %v1447, %v1439
    %v1992 = vpack.c.b16 %v1448, %v1440
    %v1993 = vpack.c.b16 %v1457, %v1449
    %v1994 = vpack.c.b16 %v1458, %v1450
    %v1995 = vpack.c.b16 %v1459, %v1451
    %v1996 = vpack.c.b16 %v1460, %v1452
    %v1997 = vpack.c.b16 %v1461, %v1453
    %v1998 = vpack.c.b16 %v1462, %v1454
    %v1999 = vpack.c.b16 %v1463, %v1455
    %v2000 = vpack.c.b16 %v1464, %v1456
    %v2001 = vpack.c.b16 %v1473, %v1465
    %v2002 = vpack.c.b16 %v1474, %v1466
    %v2003 = vpack.c.b16 %v1475, %v1467
    %v2004 = vpack.c.b16 %v1476, %v1468
    %v2005 = vpack.c.b16 %v1477, %v1469
    %v2006 = vpack.c.b16 %v1478, %v1470
    %v2007 = vpack.c.b16 %v1479, %v1471
    %v2008 = vpack.c.b16 %v1480, %v1472
    %v2009 = vpack.c.b16 %v1489, %v1481
    %v2010 = vpack.c.b16 %v1490, %v1482
    %v2011 = vpack.c.b16 %v1491, %v1483
    %v2012 = vpack.c.b16 %v1492, %v1484
    %v2013 = vpack.c.b16 %v1493, %v1485
    %v2014 = vpack.c.b16 %v1494, %v1486
    %v2015 = vpack.c.b16 %v1495, %v1487
    %v2016 = vpack.c.b16 %v1496, %v1488
    %v2017 = vpack.c.b16 %v1505, %v1497
    %v2018 = vpack.c.b16 %v1506, %v1498
    %v2019 = vpack.c.b16 %v1507, %v1499
    %v2020 = vpack.c.b16 %v1508, %v1500
    %v2021 = vpack.c.b16 %v1509, %v1501
    %v2022 = vpack.c.b16 %v1510, %v1502
    %v2023 = vpack.c.b16 %v1511, %v1503
    %v2024 = vpack.c.b16 %v1512, %v1504
    %v2025 = vpack.c.b16 %v1521, %v1513
    %v2026 = vpack.c.b16 %v1522, %v1514
    %v2027 = vpack.c.b16 %v1523, %v1515
    %v2028 = vpack.c.b16 %v1524, %v1516
    %v2029 = vpack.c.b16 %v1525, %v1517
    %v2030 = vpack.c.b16 %v1526, %v1518
    %v2031 = vpack.c.b16 %v1527, %v1519
    %v2032 = vpack.c.b16 %v1528, %v1520
    %v2033 = vpack.c.b16 %v1537, %v1529
    %v2034 = vpack.c.b16 %v1538, %v1530
    %v2035 = vpack.c.b16 %v1539, %v1531
    %v2036 = vpack.c.b16 %v1540, %v1532
    %v2037 = vpack.c.b16 %v1541, %v1533
    %v2038 = vpack.c.b16 %v1542, %v1534
    %v2039 = vpack.c.b16 %v1543, %v1535
    %v2040 = vpack.c.b16 %v1544, %v1536
    %v2041 = vpack.c.b16 %v1553, %v1545
    %v2042 = vpack.c.b16 %v1554, %v1546
    %v2043 = vpack.c.b16 %v1555, %v1547
    %v2044 = vpack.c.b16 %v1556, %v1548
    %v2045 = vpack.c.b16 %v1557, %v1549
    %v2046 = vpack.c.b16 %v1558, %v1550
    %v2047 = vpack.c.b16 %v1559, %v1551
    %v2048 = vpack.c.b16 %v1560, %v1552
    %v2049 = vpack.c.b16 %v1569, %v1561
    %v2050 = vpack.c.b16 %v1570, %v1562
    %v2051 = vpack.c.b16 %v1571, %v1563
    %v2052 = vpack.c.b16 %v1572, %v1564
    %v2053 = vpack.c.b16 %v1573, %v1565
    %v2054 = vpack.c.b16 %v1574, %v1566
    %v2055 = vpack.c.b16 %v1575, %v1567
    %v2056 = vpack.c.b16 %v1576, %v1568
    %v2057 = vpack.c.b16 %v1585, %v1577
    %v2058 = vpack.c.b16 %v1586, %v1578
    %v2059 = vpack.c.b16 %v1587, %v1579
    %v2060 = vpack.c.b16 %v1588, %v1580
    %v2061 = vpack.c.b16 %v1589, %v1581
    %v2062 = vpack.c.b16 %v1590, %v1582
    %v2063 = vpack.c.b16 %v1591, %v1583
    %v2064 = vpack.c.b16 %v1592, %v1584
    %v2065 = vpack.c.b16 %v1601, %v1593
    %v2066 = vpack.c.b16 %v1602, %v1594
    %v2067 = vpack.c.b16 %v1603, %v1595
    %v2068 = vpack.c.b16 %v1604, %v1596
    %v2069 = vpack.c.b16 %v1605, %v1597
    %v2070 = vpack.c.b16 %v1606, %v1598
    %v2071 = vpack.c.b16 %v1607, %v1599
    %v2072 = vpack.c.b16 %v1608, %v1600
    %v2073 = vpack.c.b16 %v1617, %v1609
    %v2074 = vpack.c.b16 %v1618, %v1610
    %v2075 = vpack.c.b16 %v1619, %v1611
    %v2076 = vpack.c.b16 %v1620, %v1612
    %v2077 = vpack.c.b16 %v1621, %v1613
    %v2078 = vpack.c.b16 %v1622, %v1614
    %v2079 = vpack.c.b16 %v1623, %v1615
    %v2080 = vpack.c.b16 %v1624, %v1616
    %v2081 = vpack.c.b16 %v1633, %v1625
    %v2082 = vpack.c.b16 %v1634, %v1626
    %v2083 = vpack.c.b16 %v1635, %v1627
    %v2084 = vpack.c.b16 %v1636, %v1628
    %v2085 = vpack.c.b16 %v1637, %v1629
    %v2086 = vpack.c.b16 %v1638, %v1630
    %v2087 = vpack.c.b16 %v1639, %v1631
    %v2088 = vpack.c.b16 %v1640, %v1632
    %v2089 = vpack.c.b16 %v1649, %v1641
    %v2090 = vpack.c.b16 %v1650, %v1642
    %v2091 = vpack.c.b16 %v1651, %v1643
    %v2092 = vpack.c.b16 %v1652, %v1644
    %v2093 = vpack.c.b16 %v1653, %v1645
    %v2094 = vpack.c.b16 %v1654, %v1646
    %v2095 = vpack.c.b16 %v1655, %v1647
    %v2096 = vpack.c.b16 %v1656, %v1648
    %v2097 = vpack.c.b16 %v1665, %v1657
    %v2098 = vpack.c.b16 %v1666, %v1658
    %v2099 = vpack.c.b16 %v1667, %v1659
    %v2100 = vpack.c.b16 %v1668, %v1660
    %v2101 = vpack.c.b16 %v1669, %v1661
    %v2102 = vpack.c.b16 %v1670, %v1662
    %v2103 = vpack.c.b16 %v1671, %v1663
    %v2104 = vpack.c.b16 %v1672, %v1664
    %v2105 = vpack.c.b16 %v1681, %v1673
    %v2106 = vpack.c.b16 %v1682, %v1674
    %v2107 = vpack.c.b16 %v1683, %v1675
    %v2108 = vpack.c.b16 %v1684, %v1676
    %v2109 = vpack.c.b16 %v1685, %v1677
    %v2110 = vpack.c.b16 %v1686, %v1678
    %v2111 = vpack.c.b16 %v1687, %v1679
    %v2112 = vpack.c.b16 %v1688, %v1680
    %v2113 = vpack.c.b16 %v1697, %v1689
    %v2114 = vpack.c.b16 %v1698, %v1690
    %v2115 = vpack.c.b16 %v1699, %v1691
    %v2116 = vpack.c.b16 %v1700, %v1692
    %v2117 = vpack.c.b16 %v1701, %v1693
    %v2118 = vpack.c.b16 %v1702, %v1694
    %v2119 = vpack.c.b16 %v1703, %v1695
    %v2120 = vpack.c.b16 %v1704, %v1696
    %v2121 = vpack.c.b16 %v1713, %v1705
    %v2122 = vpack.c.b16 %v1714, %v1706
    %v2123 = vpack.c.b16 %v1715, %v1707
    %v2124 = vpack.c.b16 %v1716, %v1708
    %v2125 = vpack.c.b16 %v1717, %v1709
    %v2126 = vpack.c.b16 %v1718, %v1710
    %v2127 = vpack.c.b16 %v1719, %v1711
    %v2128 = vpack.c.b16 %v1720, %v1712
    %v2129 = vpack.c.b16 %v1729, %v1721
    %v2130 = vpack.c.b16 %v1730, %v1722
    %v2131 = vpack.c.b16 %v1731, %v1723
    %v2132 = vpack.c.b16 %v1732, %v1724
    %v2133 = vpack.c.b16 %v1733, %v1725
    %v2134 = vpack.c.b16 %v1734, %v1726
    %v2135 = vpack.c.b16 %v1735, %v1727
    %v2136 = vpack.c.b16 %v1736, %v1728
    %v2137 = vpack.c.b16 %v1745, %v1737
    %v2138 = vpack.c.b16 %v1746, %v1738
    %v2139 = vpack.c.b16 %v1747, %v1739
    %v2140 = vpack.c.b16 %v1748, %v1740
    %v2141 = vpack.c.b16 %v1749, %v1741
    %v2142 = vpack.c.b16 %v1750, %v1742
    %v2143 = vpack.c.b16 %v1751, %v1743
    %v2144 = vpack.c.b16 %v1752, %v1744
    %vm2537 = vcmask 130048
    %v2539 = vsel %vm2537, %v570, 0
    %2541 = vmatprep.subr.bf16.mxu0 %v1810
    %2542 = vmatpush1.bf16.msra.mxu0 %v1809
    %2543 = vmatprep.subr.bf16.mxu0 %v1802
    %2544 = vmatpush1.bf16.msra.mxu0 %v1801
    %2545 = vmatprep.subr.bf16.mxu0 %v1794
    %2546 = vmatpush1.bf16.msra.mxu0 %v1793
    %2547 = vmatprep.subr.bf16.mxu0 %v1786
    %2548 = vmatpush1.bf16.msra.mxu0 %v1785
    %2549 = vmatprep.subr.bf16.mxu0 %v1778
    %2550 = vmatpush1.bf16.msra.mxu0 %v1777
    %2551 = vmatprep.subr.bf16.mxu0 %v1770
    %2552 = vmatpush1.bf16.msra.mxu0 %v1769
    %2553 = vmatprep.subr.bf16.mxu0 %v1762
    %2554 = vmatpush1.bf16.msra.mxu0 %v1761
    %2555 = vmatprep.subr.bf16.mxu0 %v1754
    %2556 = vmatpush1.bf16.msra.mxu0 %v1753
    %2557 = vmatprep.subr.bf16.mxu0 %v1874
    %2558 = vmatpush2.bf16.msra.mxu0 %v1873
    %2559 = vmatprep.subr.bf16.mxu0 %v1866
    %2560 = vmatpush2.bf16.msra.mxu0 %v1865
    %2561 = vmatprep.subr.bf16.mxu0 %v1858
    %2562 = vmatpush2.bf16.msra.mxu0 %v1857
    %2563 = vmatprep.subr.bf16.mxu0 %v1850
    %2564 = vmatpush2.bf16.msra.mxu0 %v1849
    %2565 = vmatprep.subr.bf16.mxu0 %v1842
    %2566 = vmatpush2.bf16.msra.mxu0 %v1841
    %2567 = vmatprep.subr.bf16.mxu0 %v1834
    %2568 = vmatpush2.bf16.msra.mxu0 %v1833
    %2569 = vmatprep.subr.bf16.mxu0 %v1826
    %2570 = vmatpush2.bf16.msra.mxu0 %v1825
    %2571 = vmatprep.subr.bf16.mxu0 %v1818
    %2572 = vmatpush2.bf16.msra.mxu0 %v1817
    %2573 = vmatprep.mubr.bf16.mxu0 %v565
    %2574 = vmatmul.mubr.bf16.gmra.mxu0 %v564
    %v2575 = vpop.f32.mrf.mxu0
    %v2576 = vadd.f32 %v516, %v2575
    %v2577 = vpop.f32.mrf.mxu0
    %v2578 = vadd.f32 %v520, %v2577
    %v2579 = vpop.f32.mrf.mxu0
    %v2580 = vpop.f32.mrf.mxu0
    %2581 = vdwg.mxu0
    %2582 = vmatprep.subr.bf16.mxu0 %v1938
    %2583 = vmatpush1.bf16.msra.mxu0 %v1937
    %2584 = vmatprep.subr.bf16.mxu0 %v1930
    %2585 = vmatpush1.bf16.msra.mxu0 %v1929
    %2586 = vmatprep.subr.bf16.mxu0 %v1922
    %2587 = vmatpush1.bf16.msra.mxu0 %v1921
    %2588 = vmatprep.subr.bf16.mxu0 %v1914
    %2589 = vmatpush1.bf16.msra.mxu0 %v1913
    %2590 = vmatprep.subr.bf16.mxu0 %v1906
    %2591 = vmatpush1.bf16.msra.mxu0 %v1905
    %2592 = vmatprep.subr.bf16.mxu0 %v1898
    %2593 = vmatpush1.bf16.msra.mxu0 %v1897
    %2594 = vmatprep.subr.bf16.mxu0 %v1890
    %2595 = vmatpush1.bf16.msra.mxu0 %v1889
    %2596 = vmatprep.subr.bf16.mxu0 %v1882
    %2597 = vmatpush1.bf16.msra.mxu0 %v1881
    %2598 = vmatprep.subr.bf16.mxu0 %v2002
    %2599 = vmatpush2.bf16.msra.mxu0 %v2001
    %2600 = vmatprep.subr.bf16.mxu0 %v1994
    %2601 = vmatpush2.bf16.msra.mxu0 %v1993
    %2602 = vmatprep.subr.bf16.mxu0 %v1986
    %2603 = vmatpush2.bf16.msra.mxu0 %v1985
    %2604 = vmatprep.subr.bf16.mxu0 %v1978
    %2605 = vmatpush2.bf16.msra.mxu0 %v1977
    %2606 = vmatprep.subr.bf16.mxu0 %v1970
    %2607 = vmatpush2.bf16.msra.mxu0 %v1969
    %2608 = vmatprep.subr.bf16.mxu0 %v1962
    %2609 = vmatpush2.bf16.msra.mxu0 %v1961
    %2610 = vmatprep.subr.bf16.mxu0 %v1954
    %2611 = vmatpush2.bf16.msra.mxu0 %v1953
    %2612 = vmatprep.subr.bf16.mxu0 %v1946
    %2613 = vmatpush2.bf16.msra.mxu0 %v1945
    %2614 = vmatprep.mubr.bf16.mxu0 %v567
    %2615 = vmatmul.mubr.bf16.gmra.mxu0 %v566
    %v2616 = vpop.f32.mrf.mxu0
    %v2617 = vadd.f32 %v2576, %v2616
    %v2618 = vpop.f32.mrf.mxu0
    %v2619 = vadd.f32 %v2578, %v2618
    %v2620 = vpop.f32.mrf.mxu0
    %v2621 = vpop.f32.mrf.mxu0
    %2622 = vdwg.mxu0
    %2623 = vmatprep.subr.bf16.mxu0 %v2066
    %2624 = vmatpush1.bf16.msra.mxu0 %v2065
    %2625 = vmatprep.subr.bf16.mxu0 %v2058
    %2626 = vmatpush1.bf16.msra.mxu0 %v2057
    %2627 = vmatprep.subr.bf16.mxu0 %v2050
    %2628 = vmatpush1.bf16.msra.mxu0 %v2049
    %2629 = vmatprep.subr.bf16.mxu0 %v2042
    %2630 = vmatpush1.bf16.msra.mxu0 %v2041
    %2631 = vmatprep.subr.bf16.mxu0 %v2034
    %2632 = vmatpush1.bf16.msra.mxu0 %v2033
    %2633 = vmatprep.subr.bf16.mxu0 %v2026
    %2634 = vmatpush1.bf16.msra.mxu0 %v2025
    %2635 = vmatprep.subr.bf16.mxu0 %v2018
    %2636 = vmatpush1.bf16.msra.mxu0 %v2017
    %2637 = vmatprep.subr.bf16.mxu0 %v2010
    %2638 = vmatpush1.bf16.msra.mxu0 %v2009
    %2639 = vmatprep.subr.bf16.mxu0 %v2130
    %2640 = vmatpush2.bf16.msra.mxu0 %v2129
    %2641 = vmatprep.subr.bf16.mxu0 %v2122
    %2642 = vmatpush2.bf16.msra.mxu0 %v2121
    %2643 = vmatprep.subr.bf16.mxu0 %v2114
    %2644 = vmatpush2.bf16.msra.mxu0 %v2113
    %2645 = vmatprep.subr.bf16.mxu0 %v2106
    %2646 = vmatpush2.bf16.msra.mxu0 %v2105
    %2647 = vmatprep.subr.bf16.mxu0 %v2098
    %2648 = vmatpush2.bf16.msra.mxu0 %v2097
    %2649 = vmatprep.subr.bf16.mxu0 %v2090
    %2650 = vmatpush2.bf16.msra.mxu0 %v2089
    %2651 = vmatprep.subr.bf16.mxu0 %v2082
    %2652 = vmatpush2.bf16.msra.mxu0 %v2081
    %2653 = vmatprep.subr.bf16.mxu0 %v2074
    %2654 = vmatpush2.bf16.msra.mxu0 %v2073
    %2655 = vmatprep.mubr.bf16.mxu0 %v569
    %2656 = vmatmul.mubr.bf16.gmra.mxu0 %v568
    %v2657 = vpop.f32.mrf.mxu0
    %v2658 = vadd.f32 %v2617, %v2657
    %v2659 = vpop.f32.mrf.mxu0
    %v2660 = vadd.f32 %v2619, %v2659
    %v2661 = vpop.f32.mrf.mxu0
    %v2662 = vpop.f32.mrf.mxu0
    %2663 = vdwg.mxu0
    %2664 = vmatprep.subr.bf16.mxu0 0
    %2665 = vmatpush1.bf16.msra.mxu0 0
    %2666 = vmatprep.subr.bf16.mxu0 0
    %2667 = vmatpush1.bf16.msra.mxu0 0
    %2668 = vmatprep.subr.bf16.mxu0 0
    %2669 = vmatpush1.bf16.msra.mxu0 0
    %2670 = vmatprep.subr.bf16.mxu0 0
    %2671 = vmatpush1.bf16.msra.mxu0 0
    %2672 = vmatprep.subr.bf16.mxu0 0
    %2673 = vmatpush1.bf16.msra.mxu0 0
    %2674 = vmatprep.subr.bf16.mxu0 0
    %2675 = vmatpush1.bf16.msra.mxu0 0
    %2676 = vmatprep.subr.bf16.mxu0 0
    %2677 = vmatpush1.bf16.msra.mxu0 0
    %2678 = vmatprep.subr.bf16.mxu0 %v2138
    %2679 = vmatpush1.bf16.msra.mxu0 %v2137
    %2680 = vmatprep.subr.bf16.mxu0 0
    %2681 = vmatpush2.bf16.msra.mxu0 0
    %2682 = vmatprep.subr.bf16.mxu0 0
    %2683 = vmatpush2.bf16.msra.mxu0 0
    %2684 = vmatprep.subr.bf16.mxu0 0
    %2685 = vmatpush2.bf16.msra.mxu0 0
    %2686 = vmatprep.subr.bf16.mxu0 0
    %2687 = vmatpush2.bf16.msra.mxu0 0
    %2688 = vmatprep.subr.bf16.mxu0 0
    %2689 = vmatpush2.bf16.msra.mxu0 0
    %2690 = vmatprep.subr.bf16.mxu0 0
    %2691 = vmatpush2.bf16.msra.mxu0 0
    %2692 = vmatprep.subr.bf16.mxu0 0
    %2693 = vmatpush2.bf16.msra.mxu0 0
    %2694 = vmatprep.subr.bf16.mxu0 0
    %2695 = vmatpush2.bf16.msra.mxu0 0
    %2696 = vmatprep.mubr.bf16.mxu0 0
    %2697 = vmatmul.mubr.bf16.gmra.mxu0 %v2539
    %v2698 = vpop.f32.mrf.mxu0
    %v2699 = vadd.f32 %v2658, %v2698
    %v2700 = vpop.f32.mrf.mxu0
    %v2701 = vadd.f32 %v2660, %v2700
    %v2702 = vpop.f32.mrf.mxu0
    %v2703 = vpop.f32.mrf.mxu0
    %2704 = vdwg.mxu0
    %2705 = vmatprep.subr.bf16.mxu0 %v1812
    %2706 = vmatpush1.bf16.msra.mxu0 %v1811
    %2707 = vmatprep.subr.bf16.mxu0 %v1804
    %2708 = vmatpush1.bf16.msra.mxu0 %v1803
    %2709 = vmatprep.subr.bf16.mxu0 %v1796
    %2710 = vmatpush1.bf16.msra.mxu0 %v1795
    %2711 = vmatprep.subr.bf16.mxu0 %v1788
    %2712 = vmatpush1.bf16.msra.mxu0 %v1787
    %2713 = vmatprep.subr.bf16.mxu0 %v1780
    %2714 = vmatpush1.bf16.msra.mxu0 %v1779
    %2715 = vmatprep.subr.bf16.mxu0 %v1772
    %2716 = vmatpush1.bf16.msra.mxu0 %v1771
    %2717 = vmatprep.subr.bf16.mxu0 %v1764
    %2718 = vmatpush1.bf16.msra.mxu0 %v1763
    %2719 = vmatprep.subr.bf16.mxu0 %v1756
    %2720 = vmatpush1.bf16.msra.mxu0 %v1755
    %2721 = vmatprep.subr.bf16.mxu0 %v1876
    %2722 = vmatpush2.bf16.msra.mxu0 %v1875
    %2723 = vmatprep.subr.bf16.mxu0 %v1868
    %2724 = vmatpush2.bf16.msra.mxu0 %v1867
    %2725 = vmatprep.subr.bf16.mxu0 %v1860
    %2726 = vmatpush2.bf16.msra.mxu0 %v1859
    %2727 = vmatprep.subr.bf16.mxu0 %v1852
    %2728 = vmatpush2.bf16.msra.mxu0 %v1851
    %2729 = vmatprep.subr.bf16.mxu0 %v1844
    %2730 = vmatpush2.bf16.msra.mxu0 %v1843
    %2731 = vmatprep.subr.bf16.mxu0 %v1836
    %2732 = vmatpush2.bf16.msra.mxu0 %v1835
    %2733 = vmatprep.subr.bf16.mxu0 %v1828
    %2734 = vmatpush2.bf16.msra.mxu0 %v1827
    %2735 = vmatprep.subr.bf16.mxu0 %v1820
    %2736 = vmatpush2.bf16.msra.mxu0 %v1819
    %2737 = vmatprep.mubr.bf16.mxu0 %v565
    %2738 = vmatmul.mubr.bf16.gmra.mxu0 %v564
    %v2739 = vpop.f32.mrf.mxu0
    %v2740 = vadd.f32 %v524, %v2739
    %v2741 = vpop.f32.mrf.mxu0
    %v2742 = vadd.f32 %v528, %v2741
    %v2743 = vpop.f32.mrf.mxu0
    %v2744 = vpop.f32.mrf.mxu0
    %2745 = vdwg.mxu0
    %2746 = vmatprep.subr.bf16.mxu0 %v1940
    %2747 = vmatpush1.bf16.msra.mxu0 %v1939
    %2748 = vmatprep.subr.bf16.mxu0 %v1932
    %2749 = vmatpush1.bf16.msra.mxu0 %v1931
    %2750 = vmatprep.subr.bf16.mxu0 %v1924
    %2751 = vmatpush1.bf16.msra.mxu0 %v1923
    %2752 = vmatprep.subr.bf16.mxu0 %v1916
    %2753 = vmatpush1.bf16.msra.mxu0 %v1915
    %2754 = vmatprep.subr.bf16.mxu0 %v1908
    %2755 = vmatpush1.bf16.msra.mxu0 %v1907
    %2756 = vmatprep.subr.bf16.mxu0 %v1900
    %2757 = vmatpush1.bf16.msra.mxu0 %v1899
    %2758 = vmatprep.subr.bf16.mxu0 %v1892
    %2759 = vmatpush1.bf16.msra.mxu0 %v1891
    %2760 = vmatprep.subr.bf16.mxu0 %v1884
    %2761 = vmatpush1.bf16.msra.mxu0 %v1883
    %2762 = vmatprep.subr.bf16.mxu0 %v2004
    %2763 = vmatpush2.bf16.msra.mxu0 %v2003
    %2764 = vmatprep.subr.bf16.mxu0 %v1996
    %2765 = vmatpush2.bf16.msra.mxu0 %v1995
    %2766 = vmatprep.subr.bf16.mxu0 %v1988
    %2767 = vmatpush2.bf16.msra.mxu0 %v1987
    %2768 = vmatprep.subr.bf16.mxu0 %v1980
    %2769 = vmatpush2.bf16.msra.mxu0 %v1979
    %2770 = vmatprep.subr.bf16.mxu0 %v1972
    %2771 = vmatpush2.bf16.msra.mxu0 %v1971
    %2772 = vmatprep.subr.bf16.mxu0 %v1964
    %2773 = vmatpush2.bf16.msra.mxu0 %v1963
    %2774 = vmatprep.subr.bf16.mxu0 %v1956
    %2775 = vmatpush2.bf16.msra.mxu0 %v1955
    %2776 = vmatprep.subr.bf16.mxu0 %v1948
    %2777 = vmatpush2.bf16.msra.mxu0 %v1947
    %2778 = vmatprep.mubr.bf16.mxu0 %v567
    %2779 = vmatmul.mubr.bf16.gmra.mxu0 %v566
    %v2780 = vpop.f32.mrf.mxu0
    %v2781 = vadd.f32 %v2740, %v2780
    %v2782 = vpop.f32.mrf.mxu0
    %v2783 = vadd.f32 %v2742, %v2782
    %v2784 = vpop.f32.mrf.mxu0
    %v2785 = vpop.f32.mrf.mxu0
    %2786 = vdwg.mxu0
    %2787 = vmatprep.subr.bf16.mxu0 %v2068
    %2788 = vmatpush1.bf16.msra.mxu0 %v2067
    %2789 = vmatprep.subr.bf16.mxu0 %v2060
    %2790 = vmatpush1.bf16.msra.mxu0 %v2059
    %2791 = vmatprep.subr.bf16.mxu0 %v2052
    %2792 = vmatpush1.bf16.msra.mxu0 %v2051
    %2793 = vmatprep.subr.bf16.mxu0 %v2044
    %2794 = vmatpush1.bf16.msra.mxu0 %v2043
    %2795 = vmatprep.subr.bf16.mxu0 %v2036
    %2796 = vmatpush1.bf16.msra.mxu0 %v2035
    %2797 = vmatprep.subr.bf16.mxu0 %v2028
    %2798 = vmatpush1.bf16.msra.mxu0 %v2027
    %2799 = vmatprep.subr.bf16.mxu0 %v2020
    %2800 = vmatpush1.bf16.msra.mxu0 %v2019
    %2801 = vmatprep.subr.bf16.mxu0 %v2012
    %2802 = vmatpush1.bf16.msra.mxu0 %v2011
    %2803 = vmatprep.subr.bf16.mxu0 %v2132
    %2804 = vmatpush2.bf16.msra.mxu0 %v2131
    %2805 = vmatprep.subr.bf16.mxu0 %v2124
    %2806 = vmatpush2.bf16.msra.mxu0 %v2123
    %2807 = vmatprep.subr.bf16.mxu0 %v2116
    %2808 = vmatpush2.bf16.msra.mxu0 %v2115
    %2809 = vmatprep.subr.bf16.mxu0 %v2108
    %2810 = vmatpush2.bf16.msra.mxu0 %v2107
    %2811 = vmatprep.subr.bf16.mxu0 %v2100
    %2812 = vmatpush2.bf16.msra.mxu0 %v2099
    %2813 = vmatprep.subr.bf16.mxu0 %v2092
    %2814 = vmatpush2.bf16.msra.mxu0 %v2091
    %2815 = vmatprep.subr.bf16.mxu0 %v2084
    %2816 = vmatpush2.bf16.msra.mxu0 %v2083
    %2817 = vmatprep.subr.bf16.mxu0 %v2076
    %2818 = vmatpush2.bf16.msra.mxu0 %v2075
    %2819 = vmatprep.mubr.bf16.mxu0 %v569
    %2820 = vmatmul.mubr.bf16.gmra.mxu0 %v568
    %v2821 = vpop.f32.mrf.mxu0
    %v2822 = vadd.f32 %v2781, %v2821
    %v2823 = vpop.f32.mrf.mxu0
    %v2824 = vadd.f32 %v2783, %v2823
    %v2825 = vpop.f32.mrf.mxu0
    %v2826 = vpop.f32.mrf.mxu0
    %2827 = vdwg.mxu0
    %2828 = vmatprep.subr.bf16.mxu0 0
    %2829 = vmatpush1.bf16.msra.mxu0 0
    %2830 = vmatprep.subr.bf16.mxu0 0
    %2831 = vmatpush1.bf16.msra.mxu0 0
    %2832 = vmatprep.subr.bf16.mxu0 0
    %2833 = vmatpush1.bf16.msra.mxu0 0
    %2834 = vmatprep.subr.bf16.mxu0 0
    %2835 = vmatpush1.bf16.msra.mxu0 0
    %2836 = vmatprep.subr.bf16.mxu0 0
    %2837 = vmatpush1.bf16.msra.mxu0 0
    %2838 = vmatprep.subr.bf16.mxu0 0
    %2839 = vmatpush1.bf16.msra.mxu0 0
    %2840 = vmatprep.subr.bf16.mxu0 0
    %2841 = vmatpush1.bf16.msra.mxu0 0
    %2842 = vmatprep.subr.bf16.mxu0 %v2140
    %2843 = vmatpush1.bf16.msra.mxu0 %v2139
    %2844 = vmatprep.subr.bf16.mxu0 0
    %2845 = vmatpush2.bf16.msra.mxu0 0
    %2846 = vmatprep.subr.bf16.mxu0 0
    %2847 = vmatpush2.bf16.msra.mxu0 0
    %2848 = vmatprep.subr.bf16.mxu0 0
    %2849 = vmatpush2.bf16.msra.mxu0 0
    %2850 = vmatprep.subr.bf16.mxu0 0
    %2851 = vmatpush2.bf16.msra.mxu0 0
    %2852 = vmatprep.subr.bf16.mxu0 0
    %2853 = vmatpush2.bf16.msra.mxu0 0
    %2854 = vmatprep.subr.bf16.mxu0 0
    %2855 = vmatpush2.bf16.msra.mxu0 0
    %2856 = vmatprep.subr.bf16.mxu0 0
    %2857 = vmatpush2.bf16.msra.mxu0 0
    %2858 = vmatprep.subr.bf16.mxu0 0
    %2859 = vmatpush2.bf16.msra.mxu0 0
    %2860 = vmatprep.mubr.bf16.mxu0 0
    %2861 = vmatmul.mubr.bf16.gmra.mxu0 %v2539
    %v2862 = vpop.f32.mrf.mxu0
    %v2863 = vadd.f32 %v2822, %v2862
    %v2864 = vpop.f32.mrf.mxu0
    %v2865 = vadd.f32 %v2824, %v2864
    %v2866 = vpop.f32.mrf.mxu0
    %v2867 = vpop.f32.mrf.mxu0
    %2868 = vdwg.mxu0
    %2869 = vmatprep.subr.bf16.mxu0 %v1814
    %2870 = vmatpush1.bf16.msra.mxu0 %v1813
    %2871 = vmatprep.subr.bf16.mxu0 %v1806
    %2872 = vmatpush1.bf16.msra.mxu0 %v1805
    %2873 = vmatprep.subr.bf16.mxu0 %v1798
    %2874 = vmatpush1.bf16.msra.mxu0 %v1797
    %2875 = vmatprep.subr.bf16.mxu0 %v1790
    %2876 = vmatpush1.bf16.msra.mxu0 %v1789
    %2877 = vmatprep.subr.bf16.mxu0 %v1782
    %2878 = vmatpush1.bf16.msra.mxu0 %v1781
    %2879 = vmatprep.subr.bf16.mxu0 %v1774
    %2880 = vmatpush1.bf16.msra.mxu0 %v1773
    %2881 = vmatprep.subr.bf16.mxu0 %v1766
    %2882 = vmatpush1.bf16.msra.mxu0 %v1765
    %2883 = vmatprep.subr.bf16.mxu0 %v1758
    %2884 = vmatpush1.bf16.msra.mxu0 %v1757
    %2885 = vmatprep.subr.bf16.mxu0 %v1878
    %2886 = vmatpush2.bf16.msra.mxu0 %v1877
    %2887 = vmatprep.subr.bf16.mxu0 %v1870
    %2888 = vmatpush2.bf16.msra.mxu0 %v1869
    %2889 = vmatprep.subr.bf16.mxu0 %v1862
    %2890 = vmatpush2.bf16.msra.mxu0 %v1861
    %2891 = vmatprep.subr.bf16.mxu0 %v1854
    %2892 = vmatpush2.bf16.msra.mxu0 %v1853
    %2893 = vmatprep.subr.bf16.mxu0 %v1846
    %2894 = vmatpush2.bf16.msra.mxu0 %v1845
    %2895 = vmatprep.subr.bf16.mxu0 %v1838
    %2896 = vmatpush2.bf16.msra.mxu0 %v1837
    %2897 = vmatprep.subr.bf16.mxu0 %v1830
    %2898 = vmatpush2.bf16.msra.mxu0 %v1829
    %2899 = vmatprep.subr.bf16.mxu0 %v1822
    %2900 = vmatpush2.bf16.msra.mxu0 %v1821
    %2901 = vmatprep.mubr.bf16.mxu0 %v565
    %2902 = vmatmul.mubr.bf16.gmra.mxu0 %v564
    %v2903 = vpop.f32.mrf.mxu0
    %v2904 = vadd.f32 %v532, %v2903
    %v2905 = vpop.f32.mrf.mxu0
    %v2906 = vadd.f32 %v536, %v2905
    %v2907 = vpop.f32.mrf.mxu0
    %v2908 = vpop.f32.mrf.mxu0
    %2909 = vdwg.mxu0
    %2910 = vmatprep.subr.bf16.mxu0 %v1942
    %2911 = vmatpush1.bf16.msra.mxu0 %v1941
    %2912 = vmatprep.subr.bf16.mxu0 %v1934
    %2913 = vmatpush1.bf16.msra.mxu0 %v1933
    %2914 = vmatprep.subr.bf16.mxu0 %v1926
    %2915 = vmatpush1.bf16.msra.mxu0 %v1925
    %2916 = vmatprep.subr.bf16.mxu0 %v1918
    %2917 = vmatpush1.bf16.msra.mxu0 %v1917
    %2918 = vmatprep.subr.bf16.mxu0 %v1910
    %2919 = vmatpush1.bf16.msra.mxu0 %v1909
    %2920 = vmatprep.subr.bf16.mxu0 %v1902
    %2921 = vmatpush1.bf16.msra.mxu0 %v1901
    %2922 = vmatprep.subr.bf16.mxu0 %v1894
    %2923 = vmatpush1.bf16.msra.mxu0 %v1893
    %2924 = vmatprep.subr.bf16.mxu0 %v1886
    %2925 = vmatpush1.bf16.msra.mxu0 %v1885
    %2926 = vmatprep.subr.bf16.mxu0 %v2006
    %2927 = vmatpush2.bf16.msra.mxu0 %v2005
    %2928 = vmatprep.subr.bf16.mxu0 %v1998
    %2929 = vmatpush2.bf16.msra.mxu0 %v1997
    %2930 = vmatprep.subr.bf16.mxu0 %v1990
    %2931 = vmatpush2.bf16.msra.mxu0 %v1989
    %2932 = vmatprep.subr.bf16.mxu0 %v1982
    %2933 = vmatpush2.bf16.msra.mxu0 %v1981
    %2934 = vmatprep.subr.bf16.mxu0 %v1974
    %2935 = vmatpush2.bf16.msra.mxu0 %v1973
    %2936 = vmatprep.subr.bf16.mxu0 %v1966
    %2937 = vmatpush2.bf16.msra.mxu0 %v1965
    %2938 = vmatprep.subr.bf16.mxu0 %v1958
    %2939 = vmatpush2.bf16.msra.mxu0 %v1957
    %2940 = vmatprep.subr.bf16.mxu0 %v1950
    %2941 = vmatpush2.bf16.msra.mxu0 %v1949
    %2942 = vmatprep.mubr.bf16.mxu0 %v567
    %2943 = vmatmul.mubr.bf16.gmra.mxu0 %v566
    %v2944 = vpop.f32.mrf.mxu0
    %v2945 = vadd.f32 %v2904, %v2944
    %v2946 = vpop.f32.mrf.mxu0
    %v2947 = vadd.f32 %v2906, %v2946
    %v2948 = vpop.f32.mrf.mxu0
    %v2949 = vpop.f32.mrf.mxu0
    %2950 = vdwg.mxu0
    %2951 = vmatprep.subr.bf16.mxu0 %v2070
    %2952 = vmatpush1.bf16.msra.mxu0 %v2069
    %2953 = vmatprep.subr.bf16.mxu0 %v2062
    %2954 = vmatpush1.bf16.msra.mxu0 %v2061
    %2955 = vmatprep.subr.bf16.mxu0 %v2054
    %2956 = vmatpush1.bf16.msra.mxu0 %v2053
    %2957 = vmatprep.subr.bf16.mxu0 %v2046
    %2958 = vmatpush1.bf16.msra.mxu0 %v2045
    %2959 = vmatprep.subr.bf16.mxu0 %v2038
    %2960 = vmatpush1.bf16.msra.mxu0 %v2037
    %2961 = vmatprep.subr.bf16.mxu0 %v2030
    %2962 = vmatpush1.bf16.msra.mxu0 %v2029
    %2963 = vmatprep.subr.bf16.mxu0 %v2022
    %2964 = vmatpush1.bf16.msra.mxu0 %v2021
    %2965 = vmatprep.subr.bf16.mxu0 %v2014
    %2966 = vmatpush1.bf16.msra.mxu0 %v2013
    %2967 = vmatprep.subr.bf16.mxu0 %v2134
    %2968 = vmatpush2.bf16.msra.mxu0 %v2133
    %2969 = vmatprep.subr.bf16.mxu0 %v2126
    %2970 = vmatpush2.bf16.msra.mxu0 %v2125
    %2971 = vmatprep.subr.bf16.mxu0 %v2118
    %2972 = vmatpush2.bf16.msra.mxu0 %v2117
    %2973 = vmatprep.subr.bf16.mxu0 %v2110
    %2974 = vmatpush2.bf16.msra.mxu0 %v2109
    %2975 = vmatprep.subr.bf16.mxu0 %v2102
    %2976 = vmatpush2.bf16.msra.mxu0 %v2101
    %2977 = vmatprep.subr.bf16.mxu0 %v2094
    %2978 = vmatpush2.bf16.msra.mxu0 %v2093
    %2979 = vmatprep.subr.bf16.mxu0 %v2086
    %2980 = vmatpush2.bf16.msra.mxu0 %v2085
    %2981 = vmatprep.subr.bf16.mxu0 %v2078
    %2982 = vmatpush2.bf16.msra.mxu0 %v2077
    %2983 = vmatprep.mubr.bf16.mxu0 %v569
    %2984 = vmatmul.mubr.bf16.gmra.mxu0 %v568
    %v2985 = vpop.f32.mrf.mxu0
    %v2986 = vadd.f32 %v2945, %v2985
    %v2987 = vpop.f32.mrf.mxu0
    %v2988 = vadd.f32 %v2947, %v2987
    %v2989 = vpop.f32.mrf.mxu0
    %v2990 = vpop.f32.mrf.mxu0
    %2991 = vdwg.mxu0
    %2992 = vmatprep.subr.bf16.mxu0 0
    %2993 = vmatpush1.bf16.msra.mxu0 0
    %2994 = vmatprep.subr.bf16.mxu0 0
    %2995 = vmatpush1.bf16.msra.mxu0 0
    %2996 = vmatprep.subr.bf16.mxu0 0
    %2997 = vmatpush1.bf16.msra.mxu0 0
    %2998 = vmatprep.subr.bf16.mxu0 0
    %2999 = vmatpush1.bf16.msra.mxu0 0
    %3000 = vmatprep.subr.bf16.mxu0 0
    %3001 = vmatpush1.bf16.msra.mxu0 0
    %3002 = vmatprep.subr.bf16.mxu0 0
    %3003 = vmatpush1.bf16.msra.mxu0 0
    %3004 = vmatprep.subr.bf16.mxu0 0
    %3005 = vmatpush1.bf16.msra.mxu0 0
    %3006 = vmatprep.subr.bf16.mxu0 %v2142
    %3007 = vmatpush1.bf16.msra.mxu0 %v2141
    %3008 = vmatprep.subr.bf16.mxu0 0
    %3009 = vmatpush2.bf16.msra.mxu0 0
    %3010 = vmatprep.subr.bf16.mxu0 0
    %3011 = vmatpush2.bf16.msra.mxu0 0
    %3012 = vmatprep.subr.bf16.mxu0 0
    %3013 = vmatpush2.bf16.msra.mxu0 0
    %3014 = vmatprep.subr.bf16.mxu0 0
    %3015 = vmatpush2.bf16.msra.mxu0 0
    %3016 = vmatprep.subr.bf16.mxu0 0
    %3017 = vmatpush2.bf16.msra.mxu0 0
    %3018 = vmatprep.subr.bf16.mxu0 0
    %3019 = vmatpush2.bf16.msra.mxu0 0
    %3020 = vmatprep.subr.bf16.mxu0 0
    %3021 = vmatpush2.bf16.msra.mxu0 0
    %3022 = vmatprep.subr.bf16.mxu0 0
    %3023 = vmatpush2.bf16.msra.mxu0 0
    %3024 = vmatprep.mubr.bf16.mxu0 0
    %3025 = vmatmul.mubr.bf16.gmra.mxu0 %v2539
    %v3026 = vpop.f32.mrf.mxu0
    %v3027 = vadd.f32 %v2986, %v3026
    %v3028 = vpop.f32.mrf.mxu0
    %v3029 = vadd.f32 %v2988, %v3028
    %v3030 = vpop.f32.mrf.mxu0
    %v3031 = vpop.f32.mrf.mxu0
    %3032 = vdwg.mxu0
    %3033 = vmatprep.subr.bf16.mxu0 %v1816
    %3034 = vmatpush1.bf16.msra.mxu0 %v1815
    %3035 = vmatprep.subr.bf16.mxu0 %v1808
    %3036 = vmatpush1.bf16.msra.mxu0 %v1807
    %3037 = vmatprep.subr.bf16.mxu0 %v1800
    %3038 = vmatpush1.bf16.msra.mxu0 %v1799
    %3039 = vmatprep.subr.bf16.mxu0 %v1792
    %3040 = vmatpush1.bf16.msra.mxu0 %v1791
    %3041 = vmatprep.subr.bf16.mxu0 %v1784
    %3042 = vmatpush1.bf16.msra.mxu0 %v1783
    %3043 = vmatprep.subr.bf16.mxu0 %v1776
    %3044 = vmatpush1.bf16.msra.mxu0 %v1775
    %3045 = vmatprep.subr.bf16.mxu0 %v1768
    %3046 = vmatpush1.bf16.msra.mxu0 %v1767
    %3047 = vmatprep.subr.bf16.mxu0 %v1760
    %3048 = vmatpush1.bf16.msra.mxu0 %v1759
    %3049 = vmatprep.subr.bf16.mxu0 %v1880
    %3050 = vmatpush2.bf16.msra.mxu0 %v1879
    %3051 = vmatprep.subr.bf16.mxu0 %v1872
    %3052 = vmatpush2.bf16.msra.mxu0 %v1871
    %3053 = vmatprep.subr.bf16.mxu0 %v1864
    %3054 = vmatpush2.bf16.msra.mxu0 %v1863
    %3055 = vmatprep.subr.bf16.mxu0 %v1856
    %3056 = vmatpush2.bf16.msra.mxu0 %v1855
    %3057 = vmatprep.subr.bf16.mxu0 %v1848
    %3058 = vmatpush2.bf16.msra.mxu0 %v1847
    %3059 = vmatprep.subr.bf16.mxu0 %v1840
    %3060 = vmatpush2.bf16.msra.mxu0 %v1839
    %3061 = vmatprep.subr.bf16.mxu0 %v1832
    %3062 = vmatpush2.bf16.msra.mxu0 %v1831
    %3063 = vmatprep.subr.bf16.mxu0 %v1824
    %3064 = vmatpush2.bf16.msra.mxu0 %v1823
    %3065 = vmatprep.mubr.bf16.mxu0 %v565
    %3066 = vmatmul.mubr.bf16.gmra.mxu0 %v564
    %v3067 = vpop.f32.mrf.mxu0
    %v3068 = vadd.f32 %v540, %v3067
    %v3069 = vpop.f32.mrf.mxu0
    %v3070 = vadd.f32 %v544, %v3069
    %v3071 = vpop.f32.mrf.mxu0
    %v3072 = vpop.f32.mrf.mxu0
    %3073 = vdwg.mxu0
    %3074 = vmatprep.subr.bf16.mxu0 %v1944
    %3075 = vmatpush1.bf16.msra.mxu0 %v1943
    %3076 = vmatprep.subr.bf16.mxu0 %v1936
    %3077 = vmatpush1.bf16.msra.mxu0 %v1935
    %3078 = vmatprep.subr.bf16.mxu0 %v1928
    %3079 = vmatpush1.bf16.msra.mxu0 %v1927
    %3080 = vmatprep.subr.bf16.mxu0 %v1920
    %3081 = vmatpush1.bf16.msra.mxu0 %v1919
    %3082 = vmatprep.subr.bf16.mxu0 %v1912
    %3083 = vmatpush1.bf16.msra.mxu0 %v1911
    %3084 = vmatprep.subr.bf16.mxu0 %v1904
    %3085 = vmatpush1.bf16.msra.mxu0 %v1903
    %3086 = vmatprep.subr.bf16.mxu0 %v1896
    %3087 = vmatpush1.bf16.msra.mxu0 %v1895
    %3088 = vmatprep.subr.bf16.mxu0 %v1888
    %3089 = vmatpush1.bf16.msra.mxu0 %v1887
    %3090 = vmatprep.subr.bf16.mxu0 %v2008
    %3091 = vmatpush2.bf16.msra.mxu0 %v2007
    %3092 = vmatprep.subr.bf16.mxu0 %v2000
    %3093 = vmatpush2.bf16.msra.mxu0 %v1999
    %3094 = vmatprep.subr.bf16.mxu0 %v1992
    %3095 = vmatpush2.bf16.msra.mxu0 %v1991
    %3096 = vmatprep.subr.bf16.mxu0 %v1984
    %3097 = vmatpush2.bf16.msra.mxu0 %v1983
    %3098 = vmatprep.subr.bf16.mxu0 %v1976
    %3099 = vmatpush2.bf16.msra.mxu0 %v1975
    %3100 = vmatprep.subr.bf16.mxu0 %v1968
    %3101 = vmatpush2.bf16.msra.mxu0 %v1967
    %3102 = vmatprep.subr.bf16.mxu0 %v1960
    %3103 = vmatpush2.bf16.msra.mxu0 %v1959
    %3104 = vmatprep.subr.bf16.mxu0 %v1952
    %3105 = vmatpush2.bf16.msra.mxu0 %v1951
    %3106 = vmatprep.mubr.bf16.mxu0 %v567
    %3107 = vmatmul.mubr.bf16.gmra.mxu0 %v566
    %v3108 = vpop.f32.mrf.mxu0
    %v3109 = vadd.f32 %v3068, %v3108
    %v3110 = vpop.f32.mrf.mxu0
    %v3111 = vadd.f32 %v3070, %v3110
    %v3112 = vpop.f32.mrf.mxu0
    %v3113 = vpop.f32.mrf.mxu0
    %3114 = vdwg.mxu0
    %3115 = vmatprep.subr.bf16.mxu0 %v2072
    %3116 = vmatpush1.bf16.msra.mxu0 %v2071
    %3117 = vmatprep.subr.bf16.mxu0 %v2064
    %3118 = vmatpush1.bf16.msra.mxu0 %v2063
    %3119 = vmatprep.subr.bf16.mxu0 %v2056
    %3120 = vmatpush1.bf16.msra.mxu0 %v2055
    %3121 = vmatprep.subr.bf16.mxu0 %v2048
    %3122 = vmatpush1.bf16.msra.mxu0 %v2047
    %3123 = vmatprep.subr.bf16.mxu0 %v2040
    %3124 = vmatpush1.bf16.msra.mxu0 %v2039
    %3125 = vmatprep.subr.bf16.mxu0 %v2032
    %3126 = vmatpush1.bf16.msra.mxu0 %v2031
    %3127 = vmatprep.subr.bf16.mxu0 %v2024
    %3128 = vmatpush1.bf16.msra.mxu0 %v2023
    %3129 = vmatprep.subr.bf16.mxu0 %v2016
    %3130 = vmatpush1.bf16.msra.mxu0 %v2015
    %3131 = vmatprep.subr.bf16.mxu0 %v2136
    %3132 = vmatpush2.bf16.msra.mxu0 %v2135
    %3133 = vmatprep.subr.bf16.mxu0 %v2128
    %3134 = vmatpush2.bf16.msra.mxu0 %v2127
    %3135 = vmatprep.subr.bf16.mxu0 %v2120
    %3136 = vmatpush2.bf16.msra.mxu0 %v2119
    %3137 = vmatprep.subr.bf16.mxu0 %v2112
    %3138 = vmatpush2.bf16.msra.mxu0 %v2111
    %3139 = vmatprep.subr.bf16.mxu0 %v2104
    %3140 = vmatpush2.bf16.msra.mxu0 %v2103
    %3141 = vmatprep.subr.bf16.mxu0 %v2096
    %3142 = vmatpush2.bf16.msra.mxu0 %v2095
    %3143 = vmatprep.subr.bf16.mxu0 %v2088
    %3144 = vmatpush2.bf16.msra.mxu0 %v2087
    %3145 = vmatprep.subr.bf16.mxu0 %v2080
    %3146 = vmatpush2.bf16.msra.mxu0 %v2079
    %3147 = vmatprep.mubr.bf16.mxu0 %v569
    %3148 = vmatmul.mubr.bf16.gmra.mxu0 %v568
    %v3149 = vpop.f32.mrf.mxu0
    %v3150 = vadd.f32 %v3109, %v3149
    %v3151 = vpop.f32.mrf.mxu0
    %v3152 = vadd.f32 %v3111, %v3151
    %v3153 = vpop.f32.mrf.mxu0
    %v3154 = vpop.f32.mrf.mxu0
    %3155 = vdwg.mxu0
    %3156 = vmatprep.subr.bf16.mxu0 0
    %3157 = vmatpush1.bf16.msra.mxu0 0
    %3158 = vmatprep.subr.bf16.mxu0 0
    %3159 = vmatpush1.bf16.msra.mxu0 0
    %3160 = vmatprep.subr.bf16.mxu0 0
    %3161 = vmatpush1.bf16.msra.mxu0 0
    %3162 = vmatprep.subr.bf16.mxu0 0
    %3163 = vmatpush1.bf16.msra.mxu0 0
    %3164 = vmatprep.subr.bf16.mxu0 0
    %3165 = vmatpush1.bf16.msra.mxu0 0
    %3166 = vmatprep.subr.bf16.mxu0 0
    %3167 = vmatpush1.bf16.msra.mxu0 0
    %3168 = vmatprep.subr.bf16.mxu0 0
    %3169 = vmatpush1.bf16.msra.mxu0 0
    %3170 = vmatprep.subr.bf16.mxu0 %v2144
    %3171 = vmatpush1.bf16.msra.mxu0 %v2143
    %3172 = vmatprep.subr.bf16.mxu0 0
    %3173 = vmatpush2.bf16.msra.mxu0 0
    %3174 = vmatprep.subr.bf16.mxu0 0
    %3175 = vmatpush2.bf16.msra.mxu0 0
    %3176 = vmatprep.subr.bf16.mxu0 0
    %3177 = vmatpush2.bf16.msra.mxu0 0
    %3178 = vmatprep.subr.bf16.mxu0 0
    %3179 = vmatpush2.bf16.msra.mxu0 0
    %3180 = vmatprep.subr.bf16.mxu0 0
    %3181 = vmatpush2.bf16.msra.mxu0 0
    %3182 = vmatprep.subr.bf16.mxu0 0
    %3183 = vmatpush2.bf16.msra.mxu0 0
    %3184 = vmatprep.subr.bf16.mxu0 0
    %3185 = vmatpush2.bf16.msra.mxu0 0
    %3186 = vmatprep.subr.bf16.mxu0 0
    %3187 = vmatpush2.bf16.msra.mxu0 0
    %3188 = vmatprep.mubr.bf16.mxu0 0
    %3189 = vmatmul.mubr.bf16.gmra.mxu0 %v2539
    %v3190 = vpop.f32.mrf.mxu0
    %v3191 = vadd.f32 %v3150, %v3190
    %v3192 = vpop.f32.mrf.mxu0
    %v3193 = vadd.f32 %v3152, %v3192
    %v3194 = vpop.f32.mrf.mxu0
    %v3195 = vpop.f32.mrf.mxu0
    %3196 = vdwg.mxu0
    %v3197 = vmax.f32 %v2699, 0.0
    %v3198 = vmax.f32 %v2701, 0.0
    %v3199 = vmax.f32 %v2863, 0.0
    %v3200 = vmax.f32 %v2865, 0.0
    %v3201 = vmax.f32 %v3027, 0.0
    %v3202 = vmax.f32 %v3029, 0.0
    %v3203 = vmax.f32 %v3191, 0.0
    %v3204 = vmax.f32 %v3193, 0.0
    %v3205 = vpack.c.bf16 %v3197, %v3197
    %v3206 = vpack.c.bf16 %v3198, %v3198
    %v3207 = vpack.c.bf16 %v3199, %v3199
    %v3208 = vpack.c.bf16 %v3200, %v3200
    %v3209 = vpack.c.bf16 %v3201, %v3201
    %v3210 = vpack.c.bf16 %v3202, %v3202
    %v3211 = vpack.c.bf16 %v3203, %v3203
    %v3212 = vpack.c.bf16 %v3204, %v3204
    %v3213 = vld [vmem:[#allocation8] sm:$0xff]
    %v3214 = vld [vmem:[#allocation8 + $0x8] sm:$0xff]
    %v3215 = vld [vmem:[#allocation8 + $0x10] sm:$0xff]
    %v3216 = vld [vmem:[#allocation8 + $0x18] sm:$0xff]
    %v3217 = vld [vmem:[#allocation8 + $0x20] sm:$0xff]
    %v3218 = vld [vmem:[#allocation8 + $0x28] sm:$0xff]
    %v3219 = vld [vmem:[#allocation8 + $0x30] sm:$0xff]
    %v3220 = vld [vmem:[#allocation8 + $0x38] sm:$0xff]
    %v3221 = vld [vmem:[#allocation8 + $0x40] sm:$0xff]
    %v3222 = vld [vmem:[#allocation8 + $0x48] sm:$0xff]
    %v3223 = vld [vmem:[#allocation8 + $0x50] sm:$0xff]
    %v3224 = vld [vmem:[#allocation8 + $0x58] sm:$0xff]
    %v3225 = vld [vmem:[#allocation8 + $0x60] sm:$0xff]
    %v3226 = vld [vmem:[#allocation8 + $0x68] sm:$0xff]
    %v3227 = vld [vmem:[#allocation8 + $0x70] sm:$0xff]
    %v3228 = vld [vmem:[#allocation8 + $0x78] sm:$0xff]
    %v3229 = vld [vmem:[#allocation8 + $0x80] sm:$0xff]
    %v3230 = vld [vmem:[#allocation8 + $0x88] sm:$0xff]
    %v3231 = vld [vmem:[#allocation8 + $0x90] sm:$0xff]
    %v3232 = vld [vmem:[#allocation8 + $0x98] sm:$0xff]
    %v3233 = vld [vmem:[#allocation8 + $0xa0] sm:$0xff]
    %v3234 = vld [vmem:[#allocation8 + $0xa8] sm:$0xff]
    %v3235 = vld [vmem:[#allocation8 + $0xb0] sm:$0xff]
    %v3236 = vld [vmem:[#allocation8 + $0xb8] sm:$0xff]
    %v3237 = vld [vmem:[#allocation8 + $0xc0] sm:$0xff]
    %v3238 = vld [vmem:[#allocation8 + $0xc8] sm:$0xff]
    %v3239 = vld [vmem:[#allocation8 + $0xd0] sm:$0xff]
    %v3240 = vld [vmem:[#allocation8 + $0xd8] sm:$0xff]
    %v3241 = vld [vmem:[#allocation8 + $0xe0] sm:$0xff]
    %v3242 = vld [vmem:[#allocation8 + $0xe8] sm:$0xff]
    %v3243 = vld [vmem:[#allocation8 + $0xf0] sm:$0xff]
    %v3244 = vld [vmem:[#allocation8 + $0xf8] sm:$0xff]
    %v3245 = vld [vmem:[#allocation8 + $0x100] sm:$0xff]
    %v3246 = vld [vmem:[#allocation8 + $0x108] sm:$0xff]
    %v3247 = vld [vmem:[#allocation8 + $0x110] sm:$0xff]
    %v3248 = vld [vmem:[#allocation8 + $0x118] sm:$0xff]
    %v3249 = vld [vmem:[#allocation8 + $0x120] sm:$0xff]
    %v3250 = vld [vmem:[#allocation8 + $0x128] sm:$0xff]
    %v3251 = vld [vmem:[#allocation8 + $0x130] sm:$0xff]
    %v3252 = vld [vmem:[#allocation8 + $0x138] sm:$0xff]
    %v3253 = vld [vmem:[#allocation8 + $0x140] sm:$0xff]
    %v3254 = vld [vmem:[#allocation8 + $0x148] sm:$0xff]
    %v3255 = vld [vmem:[#allocation8 + $0x150] sm:$0xff]
    %v3256 = vld [vmem:[#allocation8 + $0x158] sm:$0xff]
    %v3257 = vld [vmem:[#allocation8 + $0x160] sm:$0xff]
    %v3258 = vld [vmem:[#allocation8 + $0x168] sm:$0xff]
    %v3259 = vld [vmem:[#allocation8 + $0x170] sm:$0xff]
    %v3260 = vld [vmem:[#allocation8 + $0x178] sm:$0xff]
    %v3261 = vld [vmem:[#allocation8 + $0x180] sm:$0xff]
    %v3262 = vld [vmem:[#allocation8 + $0x188] sm:$0xff]
    %v3263 = vld [vmem:[#allocation8 + $0x190] sm:$0xff]
    %v3264 = vld [vmem:[#allocation8 + $0x198] sm:$0xff]
    %v3265 = vld [vmem:[#allocation8 + $0x1a0] sm:$0xff]
    %v3266 = vld [vmem:[#allocation8 + $0x1a8] sm:$0xff]
    %v3267 = vld [vmem:[#allocation8 + $0x1b0] sm:$0xff]
    %v3268 = vld [vmem:[#allocation8 + $0x1b8] sm:$0xff]
    %v3269 = vld [vmem:[#allocation8 + $0x1c0] sm:$0xff]
    %v3270 = vld [vmem:[#allocation8 + $0x1c8] sm:$0xff]
    %v3271 = vld [vmem:[#allocation8 + $0x1d0] sm:$0xff]
    %v3272 = vld [vmem:[#allocation8 + $0x1d8] sm:$0xff]
    %v3273 = vld [vmem:[#allocation8 + $0x1e0] sm:$0xff]
    %v3274 = vld [vmem:[#allocation8 + $0x1e8] sm:$0xff]
    %v3275 = vld [vmem:[#allocation8 + $0x1f0] sm:$0xff]
    %v3276 = vld [vmem:[#allocation8 + $0x1f8] sm:$0xff]
    %v3277 = vld [vmem:[#allocation8 + $0x200] sm:$0xff]
    %v3278 = vld [vmem:[#allocation8 + $0x208] sm:$0xff]
    %v3279 = vld [vmem:[#allocation8 + $0x210] sm:$0xff]
    %v3280 = vld [vmem:[#allocation8 + $0x218] sm:$0xff]
    %v3281 = vld [vmem:[#allocation8 + $0x220] sm:$0xff]
    %v3282 = vld [vmem:[#allocation8 + $0x228] sm:$0xff]
    %v3283 = vld [vmem:[#allocation8 + $0x230] sm:$0xff]
    %v3284 = vld [vmem:[#allocation8 + $0x238] sm:$0xff]
    %v3285 = vld [vmem:[#allocation8 + $0x240] sm:$0xff]
    %v3286 = vld [vmem:[#allocation8 + $0x248] sm:$0xff]
    %v3287 = vld [vmem:[#allocation8 + $0x250] sm:$0xff]
    %v3288 = vld [vmem:[#allocation8 + $0x258] sm:$0xff]
    %v3289 = vld [vmem:[#allocation8 + $0x260] sm:$0xff]
    %v3290 = vld [vmem:[#allocation8 + $0x268] sm:$0xff]
    %v3291 = vld [vmem:[#allocation8 + $0x270] sm:$0xff]
    %v3292 = vld [vmem:[#allocation8 + $0x278] sm:$0xff]
    %v3293 = vld [vmem:[#allocation8 + $0x280] sm:$0xff]
    %v3294 = vld [vmem:[#allocation8 + $0x288] sm:$0xff]
    %v3295 = vld [vmem:[#allocation8 + $0x290] sm:$0xff]
    %v3296 = vld [vmem:[#allocation8 + $0x298] sm:$0xff]
    %v3297 = vld [vmem:[#allocation8 + $0x2a0] sm:$0xff]
    %v3298 = vld [vmem:[#allocation8 + $0x2a8] sm:$0xff]
    %v3299 = vld [vmem:[#allocation8 + $0x2b0] sm:$0xff]
    %v3300 = vld [vmem:[#allocation8 + $0x2b8] sm:$0xff]
    %v3301 = vld [vmem:[#allocation8 + $0x2c0] sm:$0xff]
    %v3302 = vld [vmem:[#allocation8 + $0x2c8] sm:$0xff]
    %v3303 = vld [vmem:[#allocation8 + $0x2d0] sm:$0xff]
    %v3304 = vld [vmem:[#allocation8 + $0x2d8] sm:$0xff]
    %v3305 = vld [vmem:[#allocation8 + $0x2e0] sm:$0xff]
    %v3306 = vld [vmem:[#allocation8 + $0x2e8] sm:$0xff]
    %v3307 = vld [vmem:[#allocation8 + $0x2f0] sm:$0xff]
    %v3308 = vld [vmem:[#allocation8 + $0x2f8] sm:$0xff]
    %v3309 = vld [vmem:[#allocation8 + $0x300] sm:$0xff]
    %v3310 = vld [vmem:[#allocation8 + $0x308] sm:$0xff]
    %v3311 = vld [vmem:[#allocation8 + $0x310] sm:$0xff]
    %v3312 = vld [vmem:[#allocation8 + $0x318] sm:$0xff]
    %v3313 = vld [vmem:[#allocation8 + $0x320] sm:$0xff]
    %v3314 = vld [vmem:[#allocation8 + $0x328] sm:$0xff]
    %v3315 = vld [vmem:[#allocation8 + $0x330] sm:$0xff]
    %v3316 = vld [vmem:[#allocation8 + $0x338] sm:$0xff]
    %v3317 = vld [vmem:[#allocation8 + $0x340] sm:$0xff]
    %v3318 = vld [vmem:[#allocation8 + $0x348] sm:$0xff]
    %v3319 = vld [vmem:[#allocation8 + $0x350] sm:$0xff]
    %v3320 = vld [vmem:[#allocation8 + $0x358] sm:$0xff]
    %v3321 = vld [vmem:[#allocation8 + $0x360] sm:$0xff]
    %v3322 = vld [vmem:[#allocation8 + $0x368] sm:$0xff]
    %v3323 = vld [vmem:[#allocation8 + $0x370] sm:$0xff]
    %v3324 = vld [vmem:[#allocation8 + $0x378] sm:$0xff]
    %v3325 = vld [vmem:[#allocation8 + $0x380] sm:$0xff]
    %v3326 = vld [vmem:[#allocation8 + $0x388] sm:$0xff]
    %v3327 = vld [vmem:[#allocation8 + $0x390] sm:$0xff]
    %v3328 = vld [vmem:[#allocation8 + $0x398] sm:$0xff]
    %v3329 = vld [vmem:[#allocation8 + $0x3a0] sm:$0xff]
    %v3330 = vld [vmem:[#allocation8 + $0x3a8] sm:$0xff]
    %v3331 = vld [vmem:[#allocation8 + $0x3b0] sm:$0xff]
    %v3332 = vld [vmem:[#allocation8 + $0x3b8] sm:$0xff]
    %v3333 = vld [vmem:[#allocation8 + $0x3c0] sm:$0xff]
    %v3334 = vld [vmem:[#allocation8 + $0x3c8] sm:$0xff]
    %v3335 = vld [vmem:[#allocation8 + $0x3d0] sm:$0xff]
    %v3336 = vld [vmem:[#allocation8 + $0x3d8] sm:$0xff]
    %v3337 = vld [vmem:[#allocation8 + $0x3e0] sm:$0xff]
    %v3338 = vld [vmem:[#allocation8 + $0x3e8] sm:$0xff]
    %v3339 = vld [vmem:[#allocation8 + $0x3f0] sm:$0xff]
    %v3340 = vld [vmem:[#allocation8 + $0x3f8] sm:$0xff]
    %v3341 = vld [vmem:[#allocation8 + $0x400] sm:$0xff]
    %v3342 = vld [vmem:[#allocation8 + $0x408] sm:$0xff]
    %v3343 = vld [vmem:[#allocation8 + $0x410] sm:$0xff]
    %v3344 = vld [vmem:[#allocation8 + $0x418] sm:$0xff]
    %v3345 = vld [vmem:[#allocation8 + $0x420] sm:$0xff]
    %v3346 = vld [vmem:[#allocation8 + $0x428] sm:$0xff]
    %v3347 = vld [vmem:[#allocation8 + $0x430] sm:$0xff]
    %v3348 = vld [vmem:[#allocation8 + $0x438] sm:$0xff]
    %v3349 = vld [vmem:[#allocation8 + $0x440] sm:$0xff]
    %v3350 = vld [vmem:[#allocation8 + $0x448] sm:$0xff]
    %v3351 = vld [vmem:[#allocation8 + $0x450] sm:$0xff]
    %v3352 = vld [vmem:[#allocation8 + $0x458] sm:$0xff]
    %v3353 = vld [vmem:[#allocation8 + $0x460] sm:$0xff]
    %v3354 = vld [vmem:[#allocation8 + $0x468] sm:$0xff]
    %v3355 = vld [vmem:[#allocation8 + $0x470] sm:$0xff]
    %v3356 = vld [vmem:[#allocation8 + $0x478] sm:$0xff]
    %v3357 = vld [vmem:[#allocation8 + $0x480] sm:$0xff]
    %v3358 = vld [vmem:[#allocation8 + $0x488] sm:$0xff]
    %v3359 = vld [vmem:[#allocation8 + $0x490] sm:$0xff]
    %v3360 = vld [vmem:[#allocation8 + $0x498] sm:$0xff]
    %v3361 = vld [vmem:[#allocation8 + $0x4a0] sm:$0xff]
    %v3362 = vld [vmem:[#allocation8 + $0x4a8] sm:$0xff]
    %v3363 = vld [vmem:[#allocation8 + $0x4b0] sm:$0xff]
    %v3364 = vld [vmem:[#allocation8 + $0x4b8] sm:$0xff]
    %v3365 = vld [vmem:[#allocation8 + $0x4c0] sm:$0xff]
    %v3366 = vld [vmem:[#allocation8 + $0x4c8] sm:$0xff]
    %v3367 = vld [vmem:[#allocation8 + $0x4d0] sm:$0xff]
    %v3368 = vld [vmem:[#allocation8 + $0x4d8] sm:$0xff]
    %v3369 = vld [vmem:[#allocation8 + $0x4e0] sm:$0xff]
    %v3370 = vld [vmem:[#allocation8 + $0x4e8] sm:$0xff]
    %v3371 = vld [vmem:[#allocation8 + $0x4f0] sm:$0xff]
    %v3372 = vld [vmem:[#allocation8 + $0x4f8] sm:$0xff]
    %v3373 = vld [vmem:[#allocation8 + $0x500] sm:$0xff]
    %v3374 = vld [vmem:[#allocation8 + $0x508] sm:$0xff]
    %v3375 = vld [vmem:[#allocation8 + $0x510] sm:$0xff]
    %v3376 = vld [vmem:[#allocation8 + $0x518] sm:$0xff]
    %v3377 = vld [vmem:[#allocation8 + $0x520] sm:$0xff]
    %v3378 = vld [vmem:[#allocation8 + $0x528] sm:$0xff]
    %v3379 = vld [vmem:[#allocation8 + $0x530] sm:$0xff]
    %v3380 = vld [vmem:[#allocation8 + $0x538] sm:$0xff]
    %v3381 = vld [vmem:[#allocation8 + $0x540] sm:$0xff]
    %v3382 = vld [vmem:[#allocation8 + $0x548] sm:$0xff]
    %v3383 = vld [vmem:[#allocation8 + $0x550] sm:$0xff]
    %v3384 = vld [vmem:[#allocation8 + $0x558] sm:$0xff]
    %v3385 = vld [vmem:[#allocation8 + $0x560] sm:$0xff]
    %v3386 = vld [vmem:[#allocation8 + $0x568] sm:$0xff]
    %v3387 = vld [vmem:[#allocation8 + $0x570] sm:$0xff]
    %v3388 = vld [vmem:[#allocation8 + $0x578] sm:$0xff]
    %v3389 = vld [vmem:[#allocation8 + $0x580] sm:$0xff]
    %v3390 = vld [vmem:[#allocation8 + $0x588] sm:$0xff]
    %v3391 = vld [vmem:[#allocation8 + $0x590] sm:$0xff]
    %v3392 = vld [vmem:[#allocation8 + $0x598] sm:$0xff]
    %v3393 = vld [vmem:[#allocation8 + $0x5a0] sm:$0xff]
    %v3394 = vld [vmem:[#allocation8 + $0x5a8] sm:$0xff]
    %v3395 = vld [vmem:[#allocation8 + $0x5b0] sm:$0xff]
    %v3396 = vld [vmem:[#allocation8 + $0x5b8] sm:$0xff]
    %v3397 = vld [vmem:[#allocation8 + $0x5c0] sm:$0xff]
    %v3398 = vld [vmem:[#allocation8 + $0x5c8] sm:$0xff]
    %v3399 = vld [vmem:[#allocation8 + $0x5d0] sm:$0xff]
    %v3400 = vld [vmem:[#allocation8 + $0x5d8] sm:$0xff]
    %v3401 = vld [vmem:[#allocation8 + $0x5e0] sm:$0xff]
    %v3402 = vld [vmem:[#allocation8 + $0x5e8] sm:$0xff]
    %v3403 = vld [vmem:[#allocation8 + $0x5f0] sm:$0xff]
    %v3404 = vld [vmem:[#allocation8 + $0x5f8] sm:$0xff]
    %v3405 = vld [vmem:[#allocation8 + $0x600] sm:$0xff]
    %v3406 = vld [vmem:[#allocation8 + $0x608] sm:$0xff]
    %v3407 = vld [vmem:[#allocation8 + $0x610] sm:$0xff]
    %v3408 = vld [vmem:[#allocation8 + $0x618] sm:$0xff]
    %v3409 = vld [vmem:[#allocation8 + $0x620] sm:$0xff]
    %v3410 = vld [vmem:[#allocation8 + $0x628] sm:$0xff]
    %v3411 = vld [vmem:[#allocation8 + $0x630] sm:$0xff]
    %v3412 = vld [vmem:[#allocation8 + $0x638] sm:$0xff]
    %v3413 = vld [vmem:[#allocation8 + $0x640] sm:$0xff]
    %v3414 = vld [vmem:[#allocation8 + $0x648] sm:$0xff]
    %v3415 = vld [vmem:[#allocation8 + $0x650] sm:$0xff]
    %v3416 = vld [vmem:[#allocation8 + $0x658] sm:$0xff]
    %v3417 = vld [vmem:[#allocation8 + $0x660] sm:$0xff]
    %v3418 = vld [vmem:[#allocation8 + $0x668] sm:$0xff]
    %v3419 = vld [vmem:[#allocation8 + $0x670] sm:$0xff]
    %v3420 = vld [vmem:[#allocation8 + $0x678] sm:$0xff]
    %v3421 = vld [vmem:[#allocation8 + $0x680] sm:$0xff]
    %v3422 = vld [vmem:[#allocation8 + $0x688] sm:$0xff]
    %v3423 = vld [vmem:[#allocation8 + $0x690] sm:$0xff]
    %v3424 = vld [vmem:[#allocation8 + $0x698] sm:$0xff]
    %v3425 = vld [vmem:[#allocation8 + $0x6a0] sm:$0xff]
    %v3426 = vld [vmem:[#allocation8 + $0x6a8] sm:$0xff]
    %v3427 = vld [vmem:[#allocation8 + $0x6b0] sm:$0xff]
    %v3428 = vld [vmem:[#allocation8 + $0x6b8] sm:$0xff]
    %v3429 = vld [vmem:[#allocation8 + $0x6c0] sm:$0xff]
    %v3430 = vld [vmem:[#allocation8 + $0x6c8] sm:$0xff]
    %v3431 = vld [vmem:[#allocation8 + $0x6d0] sm:$0xff]
    %v3432 = vld [vmem:[#allocation8 + $0x6d8] sm:$0xff]
    %v3433 = vld [vmem:[#allocation8 + $0x6e0] sm:$0xff]
    %v3434 = vld [vmem:[#allocation8 + $0x6e8] sm:$0xff]
    %v3435 = vld [vmem:[#allocation8 + $0x6f0] sm:$0xff]
    %v3436 = vld [vmem:[#allocation8 + $0x6f8] sm:$0xff]
    %v3437 = vld [vmem:[#allocation8 + $0x700] sm:$0xff]
    %v3438 = vld [vmem:[#allocation8 + $0x708] sm:$0xff]
    %v3439 = vld [vmem:[#allocation8 + $0x710] sm:$0xff]
    %v3440 = vld [vmem:[#allocation8 + $0x718] sm:$0xff]
    %v3441 = vld [vmem:[#allocation8 + $0x720] sm:$0xff]
    %v3442 = vld [vmem:[#allocation8 + $0x728] sm:$0xff]
    %v3443 = vld [vmem:[#allocation8 + $0x730] sm:$0xff]
    %v3444 = vld [vmem:[#allocation8 + $0x738] sm:$0xff]
    %v3445 = vld [vmem:[#allocation8 + $0x740] sm:$0xff]
    %v3446 = vld [vmem:[#allocation8 + $0x748] sm:$0xff]
    %v3447 = vld [vmem:[#allocation8 + $0x750] sm:$0xff]
    %v3448 = vld [vmem:[#allocation8 + $0x758] sm:$0xff]
    %v3449 = vld [vmem:[#allocation8 + $0x760] sm:$0xff]
    %v3450 = vld [vmem:[#allocation8 + $0x768] sm:$0xff]
    %v3451 = vld [vmem:[#allocation8 + $0x770] sm:$0xff]
    %v3452 = vld [vmem:[#allocation8 + $0x778] sm:$0xff]
    %v3453 = vld [vmem:[#allocation8 + $0x780] sm:$0xff]
    %v3454 = vld [vmem:[#allocation8 + $0x788] sm:$0xff]
    %v3455 = vld [vmem:[#allocation8 + $0x790] sm:$0xff]
    %v3456 = vld [vmem:[#allocation8 + $0x798] sm:$0xff]
    %v3457 = vld [vmem:[#allocation8 + $0x7a0] sm:$0xff]
    %v3458 = vld [vmem:[#allocation8 + $0x7a8] sm:$0xff]
    %v3459 = vld [vmem:[#allocation8 + $0x7b0] sm:$0xff]
    %v3460 = vld [vmem:[#allocation8 + $0x7b8] sm:$0xff]
    %v3461 = vld [vmem:[#allocation8 + $0x7c0] sm:$0xff]
    %v3462 = vld [vmem:[#allocation8 + $0x7c8] sm:$0xff]
    %v3463 = vld [vmem:[#allocation8 + $0x7d0] sm:$0xff]
    %v3464 = vld [vmem:[#allocation8 + $0x7d8] sm:$0xff]
    %v3465 = vld [vmem:[#allocation8 + $0x7e0] sm:$0xff]
    %v3466 = vld [vmem:[#allocation8 + $0x7e8] sm:$0xff]
    %v3467 = vld [vmem:[#allocation8 + $0x7f0] sm:$0xff]
    %v3468 = vld [vmem:[#allocation8 + $0x7f8] sm:$0xff]
    %v3469 = vld [vmem:[#allocation8 + $0x800] sm:$0xff]
    %v3470 = vld [vmem:[#allocation8 + $0x808] sm:$0xff]
    %v3471 = vld [vmem:[#allocation8 + $0x810] sm:$0xff]
    %v3472 = vld [vmem:[#allocation8 + $0x818] sm:$0xff]
    %v3473 = vld [vmem:[#allocation8 + $0x820] sm:$0xff]
    %v3474 = vld [vmem:[#allocation8 + $0x828] sm:$0xff]
    %v3475 = vld [vmem:[#allocation8 + $0x830] sm:$0xff]
    %v3476 = vld [vmem:[#allocation8 + $0x838] sm:$0xff]
    %v3477 = vld [vmem:[#allocation8 + $0x840] sm:$0xff]
    %v3478 = vld [vmem:[#allocation8 + $0x848] sm:$0xff]
    %v3479 = vld [vmem:[#allocation8 + $0x850] sm:$0xff]
    %v3480 = vld [vmem:[#allocation8 + $0x858] sm:$0xff]
    %v3481 = vld [vmem:[#allocation8 + $0x860] sm:$0xff]
    %v3482 = vld [vmem:[#allocation8 + $0x868] sm:$0xff]
    %v3483 = vld [vmem:[#allocation8 + $0x870] sm:$0xff]
    %v3484 = vld [vmem:[#allocation8 + $0x878] sm:$0xff]
    %v3485 = vld [vmem:[#allocation8 + $0x880] sm:$0xff]
    %v3486 = vld [vmem:[#allocation8 + $0x888] sm:$0xff]
    %v3487 = vld [vmem:[#allocation8 + $0x890] sm:$0xff]
    %v3488 = vld [vmem:[#allocation8 + $0x898] sm:$0xff]
    %v3489 = vld [vmem:[#allocation8 + $0x8a0] sm:$0xff]
    %v3490 = vld [vmem:[#allocation8 + $0x8a8] sm:$0xff]
    %v3491 = vld [vmem:[#allocation8 + $0x8b0] sm:$0xff]
    %v3492 = vld [vmem:[#allocation8 + $0x8b8] sm:$0xff]
    %v3493 = vld [vmem:[#allocation8 + $0x8c0] sm:$0xff]
    %v3494 = vld [vmem:[#allocation8 + $0x8c8] sm:$0xff]
    %v3495 = vld [vmem:[#allocation8 + $0x8d0] sm:$0xff]
    %v3496 = vld [vmem:[#allocation8 + $0x8d8] sm:$0xff]
    %v3497 = vld [vmem:[#allocation8 + $0x8e0] sm:$0xff]
    %v3498 = vld [vmem:[#allocation8 + $0x8e8] sm:$0xff]
    %v3499 = vld [vmem:[#allocation8 + $0x8f0] sm:$0xff]
    %v3500 = vld [vmem:[#allocation8 + $0x8f8] sm:$0xff]
    %v3501 = vld [vmem:[#allocation8 + $0x900] sm:$0xff]
    %v3502 = vld [vmem:[#allocation8 + $0x908] sm:$0xff]
    %v3503 = vld [vmem:[#allocation8 + $0x910] sm:$0xff]
    %v3504 = vld [vmem:[#allocation8 + $0x918] sm:$0xff]
    %v3505 = vld [vmem:[#allocation8 + $0x920] sm:$0xff]
    %v3506 = vld [vmem:[#allocation8 + $0x928] sm:$0xff]
    %v3507 = vld [vmem:[#allocation8 + $0x930] sm:$0xff]
    %v3508 = vld [vmem:[#allocation8 + $0x938] sm:$0xff]
    %v3509 = vld [vmem:[#allocation8 + $0x940] sm:$0xff]
    %v3510 = vld [vmem:[#allocation8 + $0x948] sm:$0xff]
    %v3511 = vld [vmem:[#allocation8 + $0x950] sm:$0xff]
    %v3512 = vld [vmem:[#allocation8 + $0x958] sm:$0xff]
    %v3513 = vld [vmem:[#allocation8 + $0x960] sm:$0xff]
    %v3514 = vld [vmem:[#allocation8 + $0x968] sm:$0xff]
    %v3515 = vld [vmem:[#allocation8 + $0x970] sm:$0xff]
    %v3516 = vld [vmem:[#allocation8 + $0x978] sm:$0xff]
    %v3517 = vld [vmem:[#allocation8 + $0x980] sm:$0xff]
    %v3518 = vld [vmem:[#allocation8 + $0x988] sm:$0xff]
    %v3519 = vld [vmem:[#allocation8 + $0x990] sm:$0xff]
    %v3520 = vld [vmem:[#allocation8 + $0x998] sm:$0xff]
    %v3521 = vld [vmem:[#allocation8 + $0x9a0] sm:$0xff]
    %v3522 = vld [vmem:[#allocation8 + $0x9a8] sm:$0xff]
    %v3523 = vld [vmem:[#allocation8 + $0x9b0] sm:$0xff]
    %v3524 = vld [vmem:[#allocation8 + $0x9b8] sm:$0xff]
    %v3525 = vld [vmem:[#allocation8 + $0x9c0] sm:$0xff]
    %v3526 = vld [vmem:[#allocation8 + $0x9c8] sm:$0xff]
    %v3527 = vld [vmem:[#allocation8 + $0x9d0] sm:$0xff]
    %v3528 = vld [vmem:[#allocation8 + $0x9d8] sm:$0xff]
    %v3529 = vld [vmem:[#allocation8 + $0x9e0] sm:$0xff]
    %v3530 = vld [vmem:[#allocation8 + $0x9e8] sm:$0xff]
    %v3531 = vld [vmem:[#allocation8 + $0x9f0] sm:$0xff]
    %v3532 = vld [vmem:[#allocation8 + $0x9f8] sm:$0xff]
    %v3533 = vld [vmem:[#allocation8 + $0xa00] sm:$0xff]
    %v3534 = vld [vmem:[#allocation8 + $0xa08] sm:$0xff]
    %v3535 = vld [vmem:[#allocation8 + $0xa10] sm:$0xff]
    %v3536 = vld [vmem:[#allocation8 + $0xa18] sm:$0xff]
    %v3537 = vld [vmem:[#allocation8 + $0xa20] sm:$0xff]
    %v3538 = vld [vmem:[#allocation8 + $0xa28] sm:$0xff]
    %v3539 = vld [vmem:[#allocation8 + $0xa30] sm:$0xff]
    %v3540 = vld [vmem:[#allocation8 + $0xa38] sm:$0xff]
    %v3541 = vld [vmem:[#allocation8 + $0xa40] sm:$0xff]
    %v3542 = vld [vmem:[#allocation8 + $0xa48] sm:$0xff]
    %v3543 = vld [vmem:[#allocation8 + $0xa50] sm:$0xff]
    %v3544 = vld [vmem:[#allocation8 + $0xa58] sm:$0xff]
    %v3545 = vld [vmem:[#allocation8 + $0xa60] sm:$0xff]
    %v3546 = vld [vmem:[#allocation8 + $0xa68] sm:$0xff]
    %v3547 = vld [vmem:[#allocation8 + $0xa70] sm:$0xff]
    %v3548 = vld [vmem:[#allocation8 + $0xa78] sm:$0xff]
    %v3549 = vld [vmem:[#allocation8 + $0xa80] sm:$0xff]
    %v3550 = vld [vmem:[#allocation8 + $0xa88] sm:$0xff]
    %v3551 = vld [vmem:[#allocation8 + $0xa90] sm:$0xff]
    %v3552 = vld [vmem:[#allocation8 + $0xa98] sm:$0xff]
    %v3553 = vld [vmem:[#allocation8 + $0xaa0] sm:$0xff]
    %v3554 = vld [vmem:[#allocation8 + $0xaa8] sm:$0xff]
    %v3555 = vld [vmem:[#allocation8 + $0xab0] sm:$0xff]
    %v3556 = vld [vmem:[#allocation8 + $0xab8] sm:$0xff]
    %v3557 = vld [vmem:[#allocation8 + $0xac0] sm:$0xff]
    %v3558 = vld [vmem:[#allocation8 + $0xac8] sm:$0xff]
    %v3559 = vld [vmem:[#allocation8 + $0xad0] sm:$0xff]
    %v3560 = vld [vmem:[#allocation8 + $0xad8] sm:$0xff]
    %v3561 = vld [vmem:[#allocation8 + $0xae0] sm:$0xff]
    %v3562 = vld [vmem:[#allocation8 + $0xae8] sm:$0xff]
    %v3563 = vld [vmem:[#allocation8 + $0xaf0] sm:$0xff]
    %v3564 = vld [vmem:[#allocation8 + $0xaf8] sm:$0xff]
    %v3565 = vld [vmem:[#allocation8 + $0xb00] sm:$0xff]
    %v3566 = vld [vmem:[#allocation8 + $0xb08] sm:$0xff]
    %v3567 = vld [vmem:[#allocation8 + $0xb10] sm:$0xff]
    %v3568 = vld [vmem:[#allocation8 + $0xb18] sm:$0xff]
    %v3569 = vld [vmem:[#allocation8 + $0xb20] sm:$0xff]
    %v3570 = vld [vmem:[#allocation8 + $0xb28] sm:$0xff]
    %v3571 = vld [vmem:[#allocation8 + $0xb30] sm:$0xff]
    %v3572 = vld [vmem:[#allocation8 + $0xb38] sm:$0xff]
    %v3573 = vld [vmem:[#allocation8 + $0xb40] sm:$0xff]
    %v3574 = vld [vmem:[#allocation8 + $0xb48] sm:$0xff]
    %v3575 = vld [vmem:[#allocation8 + $0xb50] sm:$0xff]
    %v3576 = vld [vmem:[#allocation8 + $0xb58] sm:$0xff]
    %v3577 = vld [vmem:[#allocation8 + $0xb60] sm:$0xff]
    %v3578 = vld [vmem:[#allocation8 + $0xb68] sm:$0xff]
    %v3579 = vld [vmem:[#allocation8 + $0xb70] sm:$0xff]
    %v3580 = vld [vmem:[#allocation8 + $0xb78] sm:$0xff]
    %v3581 = vld [vmem:[#allocation8 + $0xb80] sm:$0xff]
    %v3582 = vld [vmem:[#allocation8 + $0xb88] sm:$0xff]
    %v3583 = vld [vmem:[#allocation8 + $0xb90] sm:$0xff]
    %v3584 = vld [vmem:[#allocation8 + $0xb98] sm:$0xff]
    %v3585 = vld [vmem:[#allocation8 + $0xba0] sm:$0xff]
    %v3586 = vld [vmem:[#allocation8 + $0xba8] sm:$0xff]
    %v3587 = vld [vmem:[#allocation8 + $0xbb0] sm:$0xff]
    %v3588 = vld [vmem:[#allocation8 + $0xbb8] sm:$0xff]
    %v3589 = vld [vmem:[#allocation8 + $0xbc0] sm:$0xff]
    %v3590 = vld [vmem:[#allocation8 + $0xbc8] sm:$0xff]
    %v3591 = vld [vmem:[#allocation8 + $0xbd0] sm:$0xff]
    %v3592 = vld [vmem:[#allocation8 + $0xbd8] sm:$0xff]
    %v3593 = vld [vmem:[#allocation8 + $0xbe0] sm:$0xff]
    %v3594 = vld [vmem:[#allocation8 + $0xbe8] sm:$0xff]
    %v3595 = vld [vmem:[#allocation8 + $0xbf0] sm:$0xff]
    %v3596 = vld [vmem:[#allocation8 + $0xbf8] sm:$0xff]
    %v3597 = vld [vmem:[#allocation8 + $0xc00] sm:$0xff]
    %v3598 = vld [vmem:[#allocation8 + $0xc08] sm:$0xff]
    %v3599 = vld [vmem:[#allocation8 + $0xc10] sm:$0xff]
    %v3600 = vld [vmem:[#allocation8 + $0xc18] sm:$0xff]
    %v3601 = vld [vmem:[#allocation8 + $0xc20] sm:$0xff]
    %v3602 = vld [vmem:[#allocation8 + $0xc28] sm:$0xff]
    %v3603 = vld [vmem:[#allocation8 + $0xc30] sm:$0xff]
    %v3604 = vld [vmem:[#allocation8 + $0xc38] sm:$0xff]
    %v3605 = vld [vmem:[#allocation8 + $0xc40] sm:$0xff]
    %v3606 = vld [vmem:[#allocation8 + $0xc48] sm:$0xff]
    %v3607 = vld [vmem:[#allocation8 + $0xc50] sm:$0xff]
    %v3608 = vld [vmem:[#allocation8 + $0xc58] sm:$0xff]
    %v3609 = vld [vmem:[#allocation8 + $0xc60] sm:$0xff]
    %v3610 = vld [vmem:[#allocation8 + $0xc68] sm:$0xff]
    %v3611 = vld [vmem:[#allocation8 + $0xc70] sm:$0xff]
    %v3612 = vld [vmem:[#allocation8 + $0xc78] sm:$0xff]
    %v3613 = vld [vmem:[#allocation8 + $0xc80] sm:$0xff]
    %v3614 = vld [vmem:[#allocation8 + $0xc88] sm:$0xff]
    %v3615 = vld [vmem:[#allocation8 + $0xc90] sm:$0xff]
    %v3616 = vld [vmem:[#allocation8 + $0xc98] sm:$0xff]
    %v3617 = vld [vmem:[#allocation8 + $0xca0] sm:$0xff]
    %v3618 = vld [vmem:[#allocation8 + $0xca8] sm:$0xff]
    %v3619 = vld [vmem:[#allocation8 + $0xcb0] sm:$0xff]
    %v3620 = vld [vmem:[#allocation8 + $0xcb8] sm:$0xff]
    %v3621 = vld [vmem:[#allocation8 + $0xcc0] sm:$0xff]
    %v3622 = vld [vmem:[#allocation8 + $0xcc8] sm:$0xff]
    %v3623 = vld [vmem:[#allocation8 + $0xcd0] sm:$0xff]
    %v3624 = vld [vmem:[#allocation8 + $0xcd8] sm:$0xff]
    %v3625 = vld [vmem:[#allocation8 + $0xce0] sm:$0xff]
    %v3626 = vld [vmem:[#allocation8 + $0xce8] sm:$0xff]
    %v3627 = vld [vmem:[#allocation8 + $0xcf0] sm:$0xff]
    %v3628 = vld [vmem:[#allocation8 + $0xcf8] sm:$0xff]
    %v3629 = vld [vmem:[#allocation8 + $0xd00] sm:$0xff]
    %v3630 = vld [vmem:[#allocation8 + $0xd08] sm:$0xff]
    %v3631 = vld [vmem:[#allocation8 + $0xd10] sm:$0xff]
    %v3632 = vld [vmem:[#allocation8 + $0xd18] sm:$0xff]
    %v3633 = vld [vmem:[#allocation8 + $0xd20] sm:$0xff]
    %v3634 = vld [vmem:[#allocation8 + $0xd28] sm:$0xff]
    %v3635 = vld [vmem:[#allocation8 + $0xd30] sm:$0xff]
    %v3636 = vld [vmem:[#allocation8 + $0xd38] sm:$0xff]
    %v3637 = vld [vmem:[#allocation8 + $0xd40] sm:$0xff]
    %v3638 = vld [vmem:[#allocation8 + $0xd48] sm:$0xff]
    %v3639 = vld [vmem:[#allocation8 + $0xd50] sm:$0xff]
    %v3640 = vld [vmem:[#allocation8 + $0xd58] sm:$0xff]
    %v3641 = vld [vmem:[#allocation8 + $0xd60] sm:$0xff]
    %v3642 = vld [vmem:[#allocation8 + $0xd68] sm:$0xff]
    %v3643 = vld [vmem:[#allocation8 + $0xd70] sm:$0xff]
    %v3644 = vld [vmem:[#allocation8 + $0xd78] sm:$0xff]
    %v3645 = vld [vmem:[#allocation8 + $0xd80] sm:$0xff]
    %v3646 = vld [vmem:[#allocation8 + $0xd88] sm:$0xff]
    %v3647 = vld [vmem:[#allocation8 + $0xd90] sm:$0xff]
    %v3648 = vld [vmem:[#allocation8 + $0xd98] sm:$0xff]
    %v3649 = vld [vmem:[#allocation8 + $0xda0] sm:$0xff]
    %v3650 = vld [vmem:[#allocation8 + $0xda8] sm:$0xff]
    %v3651 = vld [vmem:[#allocation8 + $0xdb0] sm:$0xff]
    %v3652 = vld [vmem:[#allocation8 + $0xdb8] sm:$0xff]
    %v3653 = vld [vmem:[#allocation8 + $0xdc0] sm:$0xff]
    %v3654 = vld [vmem:[#allocation8 + $0xdc8] sm:$0xff]
    %v3655 = vld [vmem:[#allocation8 + $0xdd0] sm:$0xff]
    %v3656 = vld [vmem:[#allocation8 + $0xdd8] sm:$0xff]
    %v3657 = vld [vmem:[#allocation8 + $0xde0] sm:$0xff]
    %v3658 = vld [vmem:[#allocation8 + $0xde8] sm:$0xff]
    %v3659 = vld [vmem:[#allocation8 + $0xdf0] sm:$0xff]
    %v3660 = vld [vmem:[#allocation8 + $0xdf8] sm:$0xff]
    %v3661 = vld [vmem:[#allocation8 + $0xe00] sm:$0xff]
    %v3662 = vld [vmem:[#allocation8 + $0xe08] sm:$0xff]
    %v3663 = vld [vmem:[#allocation8 + $0xe10] sm:$0xff]
    %v3664 = vld [vmem:[#allocation8 + $0xe18] sm:$0xff]
    %v3665 = vld [vmem:[#allocation8 + $0xe20] sm:$0xff]
    %v3666 = vld [vmem:[#allocation8 + $0xe28] sm:$0xff]
    %v3667 = vld [vmem:[#allocation8 + $0xe30] sm:$0xff]
    %v3668 = vld [vmem:[#allocation8 + $0xe38] sm:$0xff]
    %v3669 = vld [vmem:[#allocation8 + $0xe40] sm:$0xff]
    %v3670 = vld [vmem:[#allocation8 + $0xe48] sm:$0xff]
    %v3671 = vld [vmem:[#allocation8 + $0xe50] sm:$0xff]
    %v3672 = vld [vmem:[#allocation8 + $0xe58] sm:$0xff]
    %v3673 = vld [vmem:[#allocation8 + $0xe60] sm:$0xff]
    %v3674 = vld [vmem:[#allocation8 + $0xe68] sm:$0xff]
    %v3675 = vld [vmem:[#allocation8 + $0xe70] sm:$0xff]
    %v3676 = vld [vmem:[#allocation8 + $0xe78] sm:$0xff]
    %v3677 = vld [vmem:[#allocation8 + $0xe80] sm:$0xff]
    %v3678 = vld [vmem:[#allocation8 + $0xe88] sm:$0xff]
    %v3679 = vld [vmem:[#allocation8 + $0xe90] sm:$0xff]
    %v3680 = vld [vmem:[#allocation8 + $0xe98] sm:$0xff]
    %v3681 = vld [vmem:[#allocation8 + $0xea0] sm:$0xff]
    %v3682 = vld [vmem:[#allocation8 + $0xea8] sm:$0xff]
    %v3683 = vld [vmem:[#allocation8 + $0xeb0] sm:$0xff]
    %v3684 = vld [vmem:[#allocation8 + $0xeb8] sm:$0xff]
    %v3685 = vld [vmem:[#allocation8 + $0xec0] sm:$0xff]
    %v3686 = vld [vmem:[#allocation8 + $0xec8] sm:$0xff]
    %v3687 = vld [vmem:[#allocation8 + $0xed0] sm:$0xff]
    %v3688 = vld [vmem:[#allocation8 + $0xed8] sm:$0xff]
    %v3689 = vld [vmem:[#allocation8 + $0xee0] sm:$0xff]
    %v3690 = vld [vmem:[#allocation8 + $0xee8] sm:$0xff]
    %v3691 = vld [vmem:[#allocation8 + $0xef0] sm:$0xff]
    %v3692 = vld [vmem:[#allocation8 + $0xef8] sm:$0xff]
    %v3693 = vld [vmem:[#allocation8 + $0xf00] sm:$0xff]
    %v3694 = vld [vmem:[#allocation8 + $0xf08] sm:$0xff]
    %v3695 = vld [vmem:[#allocation8 + $0xf10] sm:$0xff]
    %v3696 = vld [vmem:[#allocation8 + $0xf18] sm:$0xff]
    %v3697 = vld [vmem:[#allocation8 + $0xf20] sm:$0xff]
    %v3698 = vld [vmem:[#allocation8 + $0xf28] sm:$0xff]
    %v3699 = vld [vmem:[#allocation8 + $0xf30] sm:$0xff]
    %v3700 = vld [vmem:[#allocation8 + $0xf38] sm:$0xff]
    %v3701 = vld [vmem:[#allocation8 + $0xf40] sm:$0xff]
    %v3702 = vld [vmem:[#allocation8 + $0xf48] sm:$0xff]
    %v3703 = vld [vmem:[#allocation8 + $0xf50] sm:$0xff]
    %v3704 = vld [vmem:[#allocation8 + $0xf58] sm:$0xff]
    %v3705 = vld [vmem:[#allocation8 + $0xf60] sm:$0xff]
    %v3706 = vld [vmem:[#allocation8 + $0xf68] sm:$0xff]
    %v3707 = vld [vmem:[#allocation8 + $0xf70] sm:$0xff]
    %v3708 = vld [vmem:[#allocation8 + $0xf78] sm:$0xff]
    %v3709 = vld [vmem:[#allocation8 + $0xf80] sm:$0xff]
    %v3710 = vld [vmem:[#allocation8 + $0xf88] sm:$0xff]
    %v3711 = vld [vmem:[#allocation8 + $0xf90] sm:$0xff]
    %v3712 = vld [vmem:[#allocation8 + $0xf98] sm:$0xff]
    %v3713 = vld [vmem:[#allocation8 + $0xfa0] sm:$0xff]
    %v3714 = vld [vmem:[#allocation8 + $0xfa8] sm:$0xff]
    %v3715 = vld [vmem:[#allocation8 + $0xfb0] sm:$0xff]
    %v3716 = vld [vmem:[#allocation8 + $0xfb8] sm:$0xff]
    %v3717 = vld [vmem:[#allocation8 + $0xfc0] sm:$0xff]
    %v3718 = vld [vmem:[#allocation8 + $0xfc8] sm:$0xff]
    %v3719 = vld [vmem:[#allocation8 + $0xfd0] sm:$0xff]
    %v3720 = vld [vmem:[#allocation8 + $0xfd8] sm:$0xff]
    %v3721 = vld [vmem:[#allocation8 + $0xfe0] sm:$0xff]
    %v3722 = vld [vmem:[#allocation8 + $0xfe8] sm:$0xff]
    %v3723 = vld [vmem:[#allocation8 + $0xff0] sm:$0xff]
    %v3724 = vld [vmem:[#allocation8 + $0xff8] sm:$0xff]
    %v3725 = vld [vmem:[#allocation10] sm:$0xff]
    %v3727 = vlaneseq
    %v3728 = vshrl.u32 %v3727, 7
    %v3729 = vsub.s32 0, %v3728
    %v3730 = vrot.slane %v3725, %v3729
    %v3731 = vlaneseq
    %v3732 = vshrl.u32 %v3731, 7
    %v3733 = vsub.s32 1, %v3732
    %v3734 = vrot.slane %v3725, %v3733
    %v3735 = vlaneseq
    %v3736 = vshrl.u32 %v3735, 7
    %v3737 = vsub.s32 2, %v3736
    %v3738 = vrot.slane %v3725, %v3737
    %v3739 = vlaneseq
    %v3740 = vshrl.u32 %v3739, 7
    %v3741 = vsub.s32 3, %v3740
    %v3742 = vrot.slane %v3725, %v3741
    %v3743 = vlaneseq
    %v3744 = vshrl.u32 %v3743, 7
    %v3745 = vsub.s32 4, %v3744
    %v3746 = vrot.slane %v3725, %v3745
    %v3747 = vlaneseq
    %v3748 = vshrl.u32 %v3747, 7
    %v3749 = vsub.s32 5, %v3748
    %v3750 = vrot.slane %v3725, %v3749
    %v3751 = vlaneseq
    %v3752 = vshrl.u32 %v3751, 7
    %v3753 = vsub.s32 6, %v3752
    %v3754 = vrot.slane %v3725, %v3753
    %v3755 = vlaneseq
    %v3756 = vshrl.u32 %v3755, 7
    %v3757 = vsub.s32 7, %v3756
    %v3758 = vrot.slane %v3725, %v3757
    %v4279 = vunpack.c.l.b16 %v3213
    %v4280 = vunpack.c.h.b16 %v3213
    %v4281 = vunpack.c.l.b16 %v3214
    %v4282 = vunpack.c.h.b16 %v3214
    %v4283 = vunpack.c.l.b16 %v3215
    %v4284 = vunpack.c.h.b16 %v3215
    %v4285 = vunpack.c.l.b16 %v3216
    %v4286 = vunpack.c.h.b16 %v3216
    %v4287 = vunpack.c.l.b16 %v3217
    %v4288 = vunpack.c.h.b16 %v3217
    %v4289 = vunpack.c.l.b16 %v3218
    %v4290 = vunpack.c.h.b16 %v3218
    %v4291 = vunpack.c.l.b16 %v3219
    %v4292 = vunpack.c.h.b16 %v3219
    %v4293 = vunpack.c.l.b16 %v3220
    %v4294 = vunpack.c.h.b16 %v3220
    %v4295 = vunpack.c.l.b16 %v3221
    %v4296 = vunpack.c.h.b16 %v3221
    %v4297 = vunpack.c.l.b16 %v3222
    %v4298 = vunpack.c.h.b16 %v3222
    %v4299 = vunpack.c.l.b16 %v3223
    %v4300 = vunpack.c.h.b16 %v3223
    %v4301 = vunpack.c.l.b16 %v3224
    %v4302 = vunpack.c.h.b16 %v3224
    %v4303 = vunpack.c.l.b16 %v3225
    %v4304 = vunpack.c.h.b16 %v3225
    %v4305 = vunpack.c.l.b16 %v3226
    %v4306 = vunpack.c.h.b16 %v3226
    %v4307 = vunpack.c.l.b16 %v3227
    %v4308 = vunpack.c.h.b16 %v3227
    %v4309 = vunpack.c.l.b16 %v3228
    %v4310 = vunpack.c.h.b16 %v3228
    %v4311 = vunpack.c.l.b16 %v3229
    %v4312 = vunpack.c.h.b16 %v3229
    %v4313 = vunpack.c.l.b16 %v3230
    %v4314 = vunpack.c.h.b16 %v3230
    %v4315 = vunpack.c.l.b16 %v3231
    %v4316 = vunpack.c.h.b16 %v3231
    %v4317 = vunpack.c.l.b16 %v3232
    %v4318 = vunpack.c.h.b16 %v3232
    %v4319 = vunpack.c.l.b16 %v3233
    %v4320 = vunpack.c.h.b16 %v3233
    %v4321 = vunpack.c.l.b16 %v3234
    %v4322 = vunpack.c.h.b16 %v3234
    %v4323 = vunpack.c.l.b16 %v3235
    %v4324 = vunpack.c.h.b16 %v3235
    %v4325 = vunpack.c.l.b16 %v3236
    %v4326 = vunpack.c.h.b16 %v3236
    %v4327 = vunpack.c.l.b16 %v3237
    %v4328 = vunpack.c.h.b16 %v3237
    %v4329 = vunpack.c.l.b16 %v3238
    %v4330 = vunpack.c.h.b16 %v3238
    %v4331 = vunpack.c.l.b16 %v3239
    %v4332 = vunpack.c.h.b16 %v3239
    %v4333 = vunpack.c.l.b16 %v3240
    %v4334 = vunpack.c.h.b16 %v3240
    %v4335 = vunpack.c.l.b16 %v3241
    %v4336 = vunpack.c.h.b16 %v3241
    %v4337 = vunpack.c.l.b16 %v3242
    %v4338 = vunpack.c.h.b16 %v3242
    %v4339 = vunpack.c.l.b16 %v3243
    %v4340 = vunpack.c.h.b16 %v3243
    %v4341 = vunpack.c.l.b16 %v3244
    %v4342 = vunpack.c.h.b16 %v3244
    %v4343 = vunpack.c.l.b16 %v3245
    %v4344 = vunpack.c.h.b16 %v3245
    %v4345 = vunpack.c.l.b16 %v3246
    %v4346 = vunpack.c.h.b16 %v3246
    %v4347 = vunpack.c.l.b16 %v3247
    %v4348 = vunpack.c.h.b16 %v3247
    %v4349 = vunpack.c.l.b16 %v3248
    %v4350 = vunpack.c.h.b16 %v3248
    %v4351 = vunpack.c.l.b16 %v3249
    %v4352 = vunpack.c.h.b16 %v3249
    %v4353 = vunpack.c.l.b16 %v3250
    %v4354 = vunpack.c.h.b16 %v3250
    %v4355 = vunpack.c.l.b16 %v3251
    %v4356 = vunpack.c.h.b16 %v3251
    %v4357 = vunpack.c.l.b16 %v3252
    %v4358 = vunpack.c.h.b16 %v3252
    %v4359 = vunpack.c.l.b16 %v3253
    %v4360 = vunpack.c.h.b16 %v3253
    %v4361 = vunpack.c.l.b16 %v3254
    %v4362 = vunpack.c.h.b16 %v3254
    %v4363 = vunpack.c.l.b16 %v3255
    %v4364 = vunpack.c.h.b16 %v3255
    %v4365 = vunpack.c.l.b16 %v3256
    %v4366 = vunpack.c.h.b16 %v3256
    %v4367 = vunpack.c.l.b16 %v3257
    %v4368 = vunpack.c.h.b16 %v3257
    %v4369 = vunpack.c.l.b16 %v3258
    %v4370 = vunpack.c.h.b16 %v3258
    %v4371 = vunpack.c.l.b16 %v3259
    %v4372 = vunpack.c.h.b16 %v3259
    %v4373 = vunpack.c.l.b16 %v3260
    %v4374 = vunpack.c.h.b16 %v3260
    %v4375 = vunpack.c.l.b16 %v3261
    %v4376 = vunpack.c.h.b16 %v3261
    %v4377 = vunpack.c.l.b16 %v3262
    %v4378 = vunpack.c.h.b16 %v3262
    %v4379 = vunpack.c.l.b16 %v3263
    %v4380 = vunpack.c.h.b16 %v3263
    %v4381 = vunpack.c.l.b16 %v3264
    %v4382 = vunpack.c.h.b16 %v3264
    %v4383 = vunpack.c.l.b16 %v3265
    %v4384 = vunpack.c.h.b16 %v3265
    %v4385 = vunpack.c.l.b16 %v3266
    %v4386 = vunpack.c.h.b16 %v3266
    %v4387 = vunpack.c.l.b16 %v3267
    %v4388 = vunpack.c.h.b16 %v3267
    %v4389 = vunpack.c.l.b16 %v3268
    %v4390 = vunpack.c.h.b16 %v3268
    %v4391 = vunpack.c.l.b16 %v3269
    %v4392 = vunpack.c.h.b16 %v3269
    %v4393 = vunpack.c.l.b16 %v3270
    %v4394 = vunpack.c.h.b16 %v3270
    %v4395 = vunpack.c.l.b16 %v3271
    %v4396 = vunpack.c.h.b16 %v3271
    %v4397 = vunpack.c.l.b16 %v3272
    %v4398 = vunpack.c.h.b16 %v3272
    %v4399 = vunpack.c.l.b16 %v3273
    %v4400 = vunpack.c.h.b16 %v3273
    %v4401 = vunpack.c.l.b16 %v3274
    %v4402 = vunpack.c.h.b16 %v3274
    %v4403 = vunpack.c.l.b16 %v3275
    %v4404 = vunpack.c.h.b16 %v3275
    %v4405 = vunpack.c.l.b16 %v3276
    %v4406 = vunpack.c.h.b16 %v3276
    %v4407 = vunpack.c.l.b16 %v3277
    %v4408 = vunpack.c.h.b16 %v3277
    %v4409 = vunpack.c.l.b16 %v3278
    %v4410 = vunpack.c.h.b16 %v3278
    %v4411 = vunpack.c.l.b16 %v3279
    %v4412 = vunpack.c.h.b16 %v3279
    %v4413 = vunpack.c.l.b16 %v3280
    %v4414 = vunpack.c.h.b16 %v3280
    %v4415 = vunpack.c.l.b16 %v3281
    %v4416 = vunpack.c.h.b16 %v3281
    %v4417 = vunpack.c.l.b16 %v3282
    %v4418 = vunpack.c.h.b16 %v3282
    %v4419 = vunpack.c.l.b16 %v3283
    %v4420 = vunpack.c.h.b16 %v3283
    %v4421 = vunpack.c.l.b16 %v3284
    %v4422 = vunpack.c.h.b16 %v3284
    %v4423 = vunpack.c.l.b16 %v3285
    %v4424 = vunpack.c.h.b16 %v3285
    %v4425 = vunpack.c.l.b16 %v3286
    %v4426 = vunpack.c.h.b16 %v3286
    %v4427 = vunpack.c.l.b16 %v3287
    %v4428 = vunpack.c.h.b16 %v3287
    %v4429 = vunpack.c.l.b16 %v3288
    %v4430 = vunpack.c.h.b16 %v3288
    %v4431 = vunpack.c.l.b16 %v3289
    %v4432 = vunpack.c.h.b16 %v3289
    %v4433 = vunpack.c.l.b16 %v3290
    %v4434 = vunpack.c.h.b16 %v3290
    %v4435 = vunpack.c.l.b16 %v3291
    %v4436 = vunpack.c.h.b16 %v3291
    %v4437 = vunpack.c.l.b16 %v3292
    %v4438 = vunpack.c.h.b16 %v3292
    %v4439 = vunpack.c.l.b16 %v3293
    %v4440 = vunpack.c.h.b16 %v3293
    %v4441 = vunpack.c.l.b16 %v3294
    %v4442 = vunpack.c.h.b16 %v3294
    %v4443 = vunpack.c.l.b16 %v3295
    %v4444 = vunpack.c.h.b16 %v3295
    %v4445 = vunpack.c.l.b16 %v3296
    %v4446 = vunpack.c.h.b16 %v3296
    %v4447 = vunpack.c.l.b16 %v3297
    %v4448 = vunpack.c.h.b16 %v3297
    %v4449 = vunpack.c.l.b16 %v3298
    %v4450 = vunpack.c.h.b16 %v3298
    %v4451 = vunpack.c.l.b16 %v3299
    %v4452 = vunpack.c.h.b16 %v3299
    %v4453 = vunpack.c.l.b16 %v3300
    %v4454 = vunpack.c.h.b16 %v3300
    %v4455 = vunpack.c.l.b16 %v3301
    %v4456 = vunpack.c.h.b16 %v3301
    %v4457 = vunpack.c.l.b16 %v3302
    %v4458 = vunpack.c.h.b16 %v3302
    %v4459 = vunpack.c.l.b16 %v3303
    %v4460 = vunpack.c.h.b16 %v3303
    %v4461 = vunpack.c.l.b16 %v3304
    %v4462 = vunpack.c.h.b16 %v3304
    %v4463 = vunpack.c.l.b16 %v3305
    %v4464 = vunpack.c.h.b16 %v3305
    %v4465 = vunpack.c.l.b16 %v3306
    %v4466 = vunpack.c.h.b16 %v3306
    %v4467 = vunpack.c.l.b16 %v3307
    %v4468 = vunpack.c.h.b16 %v3307
    %v4469 = vunpack.c.l.b16 %v3308
    %v4470 = vunpack.c.h.b16 %v3308
    %v4471 = vunpack.c.l.b16 %v3309
    %v4472 = vunpack.c.h.b16 %v3309
    %v4473 = vunpack.c.l.b16 %v3310
    %v4474 = vunpack.c.h.b16 %v3310
    %v4475 = vunpack.c.l.b16 %v3311
    %v4476 = vunpack.c.h.b16 %v3311
    %v4477 = vunpack.c.l.b16 %v3312
    %v4478 = vunpack.c.h.b16 %v3312
    %v4479 = vunpack.c.l.b16 %v3313
    %v4480 = vunpack.c.h.b16 %v3313
    %v4481 = vunpack.c.l.b16 %v3314
    %v4482 = vunpack.c.h.b16 %v3314
    %v4483 = vunpack.c.l.b16 %v3315
    %v4484 = vunpack.c.h.b16 %v3315
    %v4485 = vunpack.c.l.b16 %v3316
    %v4486 = vunpack.c.h.b16 %v3316
    %v4487 = vunpack.c.l.b16 %v3317
    %v4488 = vunpack.c.h.b16 %v3317
    %v4489 = vunpack.c.l.b16 %v3318
    %v4490 = vunpack.c.h.b16 %v3318
    %v4491 = vunpack.c.l.b16 %v3319
    %v4492 = vunpack.c.h.b16 %v3319
    %v4493 = vunpack.c.l.b16 %v3320
    %v4494 = vunpack.c.h.b16 %v3320
    %v4495 = vunpack.c.l.b16 %v3321
    %v4496 = vunpack.c.h.b16 %v3321
    %v4497 = vunpack.c.l.b16 %v3322
    %v4498 = vunpack.c.h.b16 %v3322
    %v4499 = vunpack.c.l.b16 %v3323
    %v4500 = vunpack.c.h.b16 %v3323
    %v4501 = vunpack.c.l.b16 %v3324
    %v4502 = vunpack.c.h.b16 %v3324
    %v4503 = vunpack.c.l.b16 %v3325
    %v4504 = vunpack.c.h.b16 %v3325
    %v4505 = vunpack.c.l.b16 %v3326
    %v4506 = vunpack.c.h.b16 %v3326
    %v4507 = vunpack.c.l.b16 %v3327
    %v4508 = vunpack.c.h.b16 %v3327
    %v4509 = vunpack.c.l.b16 %v3328
    %v4510 = vunpack.c.h.b16 %v3328
    %v4511 = vunpack.c.l.b16 %v3329
    %v4512 = vunpack.c.h.b16 %v3329
    %v4513 = vunpack.c.l.b16 %v3330
    %v4514 = vunpack.c.h.b16 %v3330
    %v4515 = vunpack.c.l.b16 %v3331
    %v4516 = vunpack.c.h.b16 %v3331
    %v4517 = vunpack.c.l.b16 %v3332
    %v4518 = vunpack.c.h.b16 %v3332
    %v4519 = vunpack.c.l.b16 %v3333
    %v4520 = vunpack.c.h.b16 %v3333
    %v4521 = vunpack.c.l.b16 %v3334
    %v4522 = vunpack.c.h.b16 %v3334
    %v4523 = vunpack.c.l.b16 %v3335
    %v4524 = vunpack.c.h.b16 %v3335
    %v4525 = vunpack.c.l.b16 %v3336
    %v4526 = vunpack.c.h.b16 %v3336
    %v4527 = vunpack.c.l.b16 %v3337
    %v4528 = vunpack.c.h.b16 %v3337
    %v4529 = vunpack.c.l.b16 %v3338
    %v4530 = vunpack.c.h.b16 %v3338
    %v4531 = vunpack.c.l.b16 %v3339
    %v4532 = vunpack.c.h.b16 %v3339
    %v4533 = vunpack.c.l.b16 %v3340
    %v4534 = vunpack.c.h.b16 %v3340
    %v4535 = vunpack.c.l.b16 %v3341
    %v4536 = vunpack.c.h.b16 %v3341
    %v4537 = vunpack.c.l.b16 %v3342
    %v4538 = vunpack.c.h.b16 %v3342
    %v4539 = vunpack.c.l.b16 %v3343
    %v4540 = vunpack.c.h.b16 %v3343
    %v4541 = vunpack.c.l.b16 %v3344
    %v4542 = vunpack.c.h.b16 %v3344
    %v4543 = vunpack.c.l.b16 %v3345
    %v4544 = vunpack.c.h.b16 %v3345
    %v4545 = vunpack.c.l.b16 %v3346
    %v4546 = vunpack.c.h.b16 %v3346
    %v4547 = vunpack.c.l.b16 %v3347
    %v4548 = vunpack.c.h.b16 %v3347
    %v4549 = vunpack.c.l.b16 %v3348
    %v4550 = vunpack.c.h.b16 %v3348
    %v4551 = vunpack.c.l.b16 %v3349
    %v4552 = vunpack.c.h.b16 %v3349
    %v4553 = vunpack.c.l.b16 %v3350
    %v4554 = vunpack.c.h.b16 %v3350
    %v4555 = vunpack.c.l.b16 %v3351
    %v4556 = vunpack.c.h.b16 %v3351
    %v4557 = vunpack.c.l.b16 %v3352
    %v4558 = vunpack.c.h.b16 %v3352
    %v4559 = vunpack.c.l.b16 %v3353
    %v4560 = vunpack.c.h.b16 %v3353
    %v4561 = vunpack.c.l.b16 %v3354
    %v4562 = vunpack.c.h.b16 %v3354
    %v4563 = vunpack.c.l.b16 %v3355
    %v4564 = vunpack.c.h.b16 %v3355
    %v4565 = vunpack.c.l.b16 %v3356
    %v4566 = vunpack.c.h.b16 %v3356
    %v4567 = vunpack.c.l.b16 %v3357
    %v4568 = vunpack.c.h.b16 %v3357
    %v4569 = vunpack.c.l.b16 %v3358
    %v4570 = vunpack.c.h.b16 %v3358
    %v4571 = vunpack.c.l.b16 %v3359
    %v4572 = vunpack.c.h.b16 %v3359
    %v4573 = vunpack.c.l.b16 %v3360
    %v4574 = vunpack.c.h.b16 %v3360
    %v4575 = vunpack.c.l.b16 %v3361
    %v4576 = vunpack.c.h.b16 %v3361
    %v4577 = vunpack.c.l.b16 %v3362
    %v4578 = vunpack.c.h.b16 %v3362
    %v4579 = vunpack.c.l.b16 %v3363
    %v4580 = vunpack.c.h.b16 %v3363
    %v4581 = vunpack.c.l.b16 %v3364
    %v4582 = vunpack.c.h.b16 %v3364
    %v4583 = vunpack.c.l.b16 %v3365
    %v4584 = vunpack.c.h.b16 %v3365
    %v4585 = vunpack.c.l.b16 %v3366
    %v4586 = vunpack.c.h.b16 %v3366
    %v4587 = vunpack.c.l.b16 %v3367
    %v4588 = vunpack.c.h.b16 %v3367
    %v4589 = vunpack.c.l.b16 %v3368
    %v4590 = vunpack.c.h.b16 %v3368
    %v4591 = vunpack.c.l.b16 %v3369
    %v4592 = vunpack.c.h.b16 %v3369
    %v4593 = vunpack.c.l.b16 %v3370
    %v4594 = vunpack.c.h.b16 %v3370
    %v4595 = vunpack.c.l.b16 %v3371
    %v4596 = vunpack.c.h.b16 %v3371
    %v4597 = vunpack.c.l.b16 %v3372
    %v4598 = vunpack.c.h.b16 %v3372
    %v4599 = vunpack.c.l.b16 %v3373
    %v4600 = vunpack.c.h.b16 %v3373
    %v4601 = vunpack.c.l.b16 %v3374
    %v4602 = vunpack.c.h.b16 %v3374
    %v4603 = vunpack.c.l.b16 %v3375
    %v4604 = vunpack.c.h.b16 %v3375
    %v4605 = vunpack.c.l.b16 %v3376
    %v4606 = vunpack.c.h.b16 %v3376
    %v4607 = vunpack.c.l.b16 %v3377
    %v4608 = vunpack.c.h.b16 %v3377
    %v4609 = vunpack.c.l.b16 %v3378
    %v4610 = vunpack.c.h.b16 %v3378
    %v4611 = vunpack.c.l.b16 %v3379
    %v4612 = vunpack.c.h.b16 %v3379
    %v4613 = vunpack.c.l.b16 %v3380
    %v4614 = vunpack.c.h.b16 %v3380
    %v4615 = vunpack.c.l.b16 %v3381
    %v4616 = vunpack.c.h.b16 %v3381
    %v4617 = vunpack.c.l.b16 %v3382
    %v4618 = vunpack.c.h.b16 %v3382
    %v4619 = vunpack.c.l.b16 %v3383
    %v4620 = vunpack.c.h.b16 %v3383
    %v4621 = vunpack.c.l.b16 %v3384
    %v4622 = vunpack.c.h.b16 %v3384
    %v4623 = vunpack.c.l.b16 %v3385
    %v4624 = vunpack.c.h.b16 %v3385
    %v4625 = vunpack.c.l.b16 %v3386
    %v4626 = vunpack.c.h.b16 %v3386
    %v4627 = vunpack.c.l.b16 %v3387
    %v4628 = vunpack.c.h.b16 %v3387
    %v4629 = vunpack.c.l.b16 %v3388
    %v4630 = vunpack.c.h.b16 %v3388
    %v4631 = vunpack.c.l.b16 %v3389
    %v4632 = vunpack.c.h.b16 %v3389
    %v4633 = vunpack.c.l.b16 %v3390
    %v4634 = vunpack.c.h.b16 %v3390
    %v4635 = vunpack.c.l.b16 %v3391
    %v4636 = vunpack.c.h.b16 %v3391
    %v4637 = vunpack.c.l.b16 %v3392
    %v4638 = vunpack.c.h.b16 %v3392
    %v4639 = vunpack.c.l.b16 %v3393
    %v4640 = vunpack.c.h.b16 %v3393
    %v4641 = vunpack.c.l.b16 %v3394
    %v4642 = vunpack.c.h.b16 %v3394
    %v4643 = vunpack.c.l.b16 %v3395
    %v4644 = vunpack.c.h.b16 %v3395
    %v4645 = vunpack.c.l.b16 %v3396
    %v4646 = vunpack.c.h.b16 %v3396
    %v4647 = vunpack.c.l.b16 %v3397
    %v4648 = vunpack.c.h.b16 %v3397
    %v4649 = vunpack.c.l.b16 %v3398
    %v4650 = vunpack.c.h.b16 %v3398
    %v4651 = vunpack.c.l.b16 %v3399
    %v4652 = vunpack.c.h.b16 %v3399
    %v4653 = vunpack.c.l.b16 %v3400
    %v4654 = vunpack.c.h.b16 %v3400
    %v4655 = vunpack.c.l.b16 %v3401
    %v4656 = vunpack.c.h.b16 %v3401
    %v4657 = vunpack.c.l.b16 %v3402
    %v4658 = vunpack.c.h.b16 %v3402
    %v4659 = vunpack.c.l.b16 %v3403
    %v4660 = vunpack.c.h.b16 %v3403
    %v4661 = vunpack.c.l.b16 %v3404
    %v4662 = vunpack.c.h.b16 %v3404
    %v4663 = vunpack.c.l.b16 %v3405
    %v4664 = vunpack.c.h.b16 %v3405
    %v4665 = vunpack.c.l.b16 %v3406
    %v4666 = vunpack.c.h.b16 %v3406
    %v4667 = vunpack.c.l.b16 %v3407
    %v4668 = vunpack.c.h.b16 %v3407
    %v4669 = vunpack.c.l.b16 %v3408
    %v4670 = vunpack.c.h.b16 %v3408
    %v4671 = vunpack.c.l.b16 %v3409
    %v4672 = vunpack.c.h.b16 %v3409
    %v4673 = vunpack.c.l.b16 %v3410
    %v4674 = vunpack.c.h.b16 %v3410
    %v4675 = vunpack.c.l.b16 %v3411
    %v4676 = vunpack.c.h.b16 %v3411
    %v4677 = vunpack.c.l.b16 %v3412
    %v4678 = vunpack.c.h.b16 %v3412
    %v4679 = vunpack.c.l.b16 %v3413
    %v4680 = vunpack.c.h.b16 %v3413
    %v4681 = vunpack.c.l.b16 %v3414
    %v4682 = vunpack.c.h.b16 %v3414
    %v4683 = vunpack.c.l.b16 %v3415
    %v4684 = vunpack.c.h.b16 %v3415
    %v4685 = vunpack.c.l.b16 %v3416
    %v4686 = vunpack.c.h.b16 %v3416
    %v4687 = vunpack.c.l.b16 %v3417
    %v4688 = vunpack.c.h.b16 %v3417
    %v4689 = vunpack.c.l.b16 %v3418
    %v4690 = vunpack.c.h.b16 %v3418
    %v4691 = vunpack.c.l.b16 %v3419
    %v4692 = vunpack.c.h.b16 %v3419
    %v4693 = vunpack.c.l.b16 %v3420
    %v4694 = vunpack.c.h.b16 %v3420
    %v4695 = vunpack.c.l.b16 %v3421
    %v4696 = vunpack.c.h.b16 %v3421
    %v4697 = vunpack.c.l.b16 %v3422
    %v4698 = vunpack.c.h.b16 %v3422
    %v4699 = vunpack.c.l.b16 %v3423
    %v4700 = vunpack.c.h.b16 %v3423
    %v4701 = vunpack.c.l.b16 %v3424
    %v4702 = vunpack.c.h.b16 %v3424
    %v4703 = vunpack.c.l.b16 %v3425
    %v4704 = vunpack.c.h.b16 %v3425
    %v4705 = vunpack.c.l.b16 %v3426
    %v4706 = vunpack.c.h.b16 %v3426
    %v4707 = vunpack.c.l.b16 %v3427
    %v4708 = vunpack.c.h.b16 %v3427
    %v4709 = vunpack.c.l.b16 %v3428
    %v4710 = vunpack.c.h.b16 %v3428
    %v4711 = vunpack.c.l.b16 %v3429
    %v4712 = vunpack.c.h.b16 %v3429
    %v4713 = vunpack.c.l.b16 %v3430
    %v4714 = vunpack.c.h.b16 %v3430
    %v4715 = vunpack.c.l.b16 %v3431
    %v4716 = vunpack.c.h.b16 %v3431
    %v4717 = vunpack.c.l.b16 %v3432
    %v4718 = vunpack.c.h.b16 %v3432
    %v4719 = vunpack.c.l.b16 %v3433
    %v4720 = vunpack.c.h.b16 %v3433
    %v4721 = vunpack.c.l.b16 %v3434
    %v4722 = vunpack.c.h.b16 %v3434
    %v4723 = vunpack.c.l.b16 %v3435
    %v4724 = vunpack.c.h.b16 %v3435
    %v4725 = vunpack.c.l.b16 %v3436
    %v4726 = vunpack.c.h.b16 %v3436
    %v4727 = vunpack.c.l.b16 %v3437
    %v4728 = vunpack.c.h.b16 %v3437
    %v4729 = vunpack.c.l.b16 %v3438
    %v4730 = vunpack.c.h.b16 %v3438
    %v4731 = vunpack.c.l.b16 %v3439
    %v4732 = vunpack.c.h.b16 %v3439
    %v4733 = vunpack.c.l.b16 %v3440
    %v4734 = vunpack.c.h.b16 %v3440
    %v4735 = vunpack.c.l.b16 %v3441
    %v4736 = vunpack.c.h.b16 %v3441
    %v4737 = vunpack.c.l.b16 %v3442
    %v4738 = vunpack.c.h.b16 %v3442
    %v4739 = vunpack.c.l.b16 %v3443
    %v4740 = vunpack.c.h.b16 %v3443
    %v4741 = vunpack.c.l.b16 %v3444
    %v4742 = vunpack.c.h.b16 %v3444
    %v4743 = vunpack.c.l.b16 %v3445
    %v4744 = vunpack.c.h.b16 %v3445
    %v4745 = vunpack.c.l.b16 %v3446
    %v4746 = vunpack.c.h.b16 %v3446
    %v4747 = vunpack.c.l.b16 %v3447
    %v4748 = vunpack.c.h.b16 %v3447
    %v4749 = vunpack.c.l.b16 %v3448
    %v4750 = vunpack.c.h.b16 %v3448
    %v4751 = vunpack.c.l.b16 %v3449
    %v4752 = vunpack.c.h.b16 %v3449
    %v4753 = vunpack.c.l.b16 %v3450
    %v4754 = vunpack.c.h.b16 %v3450
    %v4755 = vunpack.c.l.b16 %v3451
    %v4756 = vunpack.c.h.b16 %v3451
    %v4757 = vunpack.c.l.b16 %v3452
    %v4758 = vunpack.c.h.b16 %v3452
    %v4759 = vunpack.c.l.b16 %v3453
    %v4760 = vunpack.c.h.b16 %v3453
    %v4761 = vunpack.c.l.b16 %v3454
    %v4762 = vunpack.c.h.b16 %v3454
    %v4763 = vunpack.c.l.b16 %v3455
    %v4764 = vunpack.c.h.b16 %v3455
    %v4765 = vunpack.c.l.b16 %v3456
    %v4766 = vunpack.c.h.b16 %v3456
    %v4767 = vunpack.c.l.b16 %v3457
    %v4768 = vunpack.c.h.b16 %v3457
    %v4769 = vunpack.c.l.b16 %v3458
    %v4770 = vunpack.c.h.b16 %v3458
    %v4771 = vunpack.c.l.b16 %v3459
    %v4772 = vunpack.c.h.b16 %v3459
    %v4773 = vunpack.c.l.b16 %v3460
    %v4774 = vunpack.c.h.b16 %v3460
    %v4775 = vunpack.c.l.b16 %v3461
    %v4776 = vunpack.c.h.b16 %v3461
    %v4777 = vunpack.c.l.b16 %v3462
    %v4778 = vunpack.c.h.b16 %v3462
    %v4779 = vunpack.c.l.b16 %v3463
    %v4780 = vunpack.c.h.b16 %v3463
    %v4781 = vunpack.c.l.b16 %v3464
    %v4782 = vunpack.c.h.b16 %v3464
    %v4783 = vunpack.c.l.b16 %v3465
    %v4784 = vunpack.c.h.b16 %v3465
    %v4785 = vunpack.c.l.b16 %v3466
    %v4786 = vunpack.c.h.b16 %v3466
    %v4787 = vunpack.c.l.b16 %v3467
    %v4788 = vunpack.c.h.b16 %v3467
    %v4789 = vunpack.c.l.b16 %v3468
    %v4790 = vunpack.c.h.b16 %v3468
    %v4791 = vunpack.c.l.b16 %v3469
    %v4792 = vunpack.c.h.b16 %v3469
    %v4793 = vunpack.c.l.b16 %v3470
    %v4794 = vunpack.c.h.b16 %v3470
    %v4795 = vunpack.c.l.b16 %v3471
    %v4796 = vunpack.c.h.b16 %v3471
    %v4797 = vunpack.c.l.b16 %v3472
    %v4798 = vunpack.c.h.b16 %v3472
    %v4799 = vunpack.c.l.b16 %v3473
    %v4800 = vunpack.c.h.b16 %v3473
    %v4801 = vunpack.c.l.b16 %v3474
    %v4802 = vunpack.c.h.b16 %v3474
    %v4803 = vunpack.c.l.b16 %v3475
    %v4804 = vunpack.c.h.b16 %v3475
    %v4805 = vunpack.c.l.b16 %v3476
    %v4806 = vunpack.c.h.b16 %v3476
    %v4807 = vunpack.c.l.b16 %v3477
    %v4808 = vunpack.c.h.b16 %v3477
    %v4809 = vunpack.c.l.b16 %v3478
    %v4810 = vunpack.c.h.b16 %v3478
    %v4811 = vunpack.c.l.b16 %v3479
    %v4812 = vunpack.c.h.b16 %v3479
    %v4813 = vunpack.c.l.b16 %v3480
    %v4814 = vunpack.c.h.b16 %v3480
    %v4815 = vunpack.c.l.b16 %v3481
    %v4816 = vunpack.c.h.b16 %v3481
    %v4817 = vunpack.c.l.b16 %v3482
    %v4818 = vunpack.c.h.b16 %v3482
    %v4819 = vunpack.c.l.b16 %v3483
    %v4820 = vunpack.c.h.b16 %v3483
    %v4821 = vunpack.c.l.b16 %v3484
    %v4822 = vunpack.c.h.b16 %v3484
    %v4823 = vunpack.c.l.b16 %v3485
    %v4824 = vunpack.c.h.b16 %v3485
    %v4825 = vunpack.c.l.b16 %v3486
    %v4826 = vunpack.c.h.b16 %v3486
    %v4827 = vunpack.c.l.b16 %v3487
    %v4828 = vunpack.c.h.b16 %v3487
    %v4829 = vunpack.c.l.b16 %v3488
    %v4830 = vunpack.c.h.b16 %v3488
    %v4831 = vunpack.c.l.b16 %v3489
    %v4832 = vunpack.c.h.b16 %v3489
    %v4833 = vunpack.c.l.b16 %v3490
    %v4834 = vunpack.c.h.b16 %v3490
    %v4835 = vunpack.c.l.b16 %v3491
    %v4836 = vunpack.c.h.b16 %v3491
    %v4837 = vunpack.c.l.b16 %v3492
    %v4838 = vunpack.c.h.b16 %v3492
    %v4839 = vunpack.c.l.b16 %v3493
    %v4840 = vunpack.c.h.b16 %v3493
    %v4841 = vunpack.c.l.b16 %v3494
    %v4842 = vunpack.c.h.b16 %v3494
    %v4843 = vunpack.c.l.b16 %v3495
    %v4844 = vunpack.c.h.b16 %v3495
    %v4845 = vunpack.c.l.b16 %v3496
    %v4846 = vunpack.c.h.b16 %v3496
    %v4847 = vunpack.c.l.b16 %v3497
    %v4848 = vunpack.c.h.b16 %v3497
    %v4849 = vunpack.c.l.b16 %v3498
    %v4850 = vunpack.c.h.b16 %v3498
    %v4851 = vunpack.c.l.b16 %v3499
    %v4852 = vunpack.c.h.b16 %v3499
    %v4853 = vunpack.c.l.b16 %v3500
    %v4854 = vunpack.c.h.b16 %v3500
    %v4855 = vunpack.c.l.b16 %v3501
    %v4856 = vunpack.c.h.b16 %v3501
    %v4857 = vunpack.c.l.b16 %v3502
    %v4858 = vunpack.c.h.b16 %v3502
    %v4859 = vunpack.c.l.b16 %v3503
    %v4860 = vunpack.c.h.b16 %v3503
    %v4861 = vunpack.c.l.b16 %v3504
    %v4862 = vunpack.c.h.b16 %v3504
    %v4863 = vunpack.c.l.b16 %v3505
    %v4864 = vunpack.c.h.b16 %v3505
    %v4865 = vunpack.c.l.b16 %v3506
    %v4866 = vunpack.c.h.b16 %v3506
    %v4867 = vunpack.c.l.b16 %v3507
    %v4868 = vunpack.c.h.b16 %v3507
    %v4869 = vunpack.c.l.b16 %v3508
    %v4870 = vunpack.c.h.b16 %v3508
    %v4871 = vunpack.c.l.b16 %v3509
    %v4872 = vunpack.c.h.b16 %v3509
    %v4873 = vunpack.c.l.b16 %v3510
    %v4874 = vunpack.c.h.b16 %v3510
    %v4875 = vunpack.c.l.b16 %v3511
    %v4876 = vunpack.c.h.b16 %v3511
    %v4877 = vunpack.c.l.b16 %v3512
    %v4878 = vunpack.c.h.b16 %v3512
    %v4879 = vunpack.c.l.b16 %v3513
    %v4880 = vunpack.c.h.b16 %v3513
    %v4881 = vunpack.c.l.b16 %v3514
    %v4882 = vunpack.c.h.b16 %v3514
    %v4883 = vunpack.c.l.b16 %v3515
    %v4884 = vunpack.c.h.b16 %v3515
    %v4885 = vunpack.c.l.b16 %v3516
    %v4886 = vunpack.c.h.b16 %v3516
    %v4887 = vunpack.c.l.b16 %v3517
    %v4888 = vunpack.c.h.b16 %v3517
    %v4889 = vunpack.c.l.b16 %v3518
    %v4890 = vunpack.c.h.b16 %v3518
    %v4891 = vunpack.c.l.b16 %v3519
    %v4892 = vunpack.c.h.b16 %v3519
    %v4893 = vunpack.c.l.b16 %v3520
    %v4894 = vunpack.c.h.b16 %v3520
    %v4895 = vunpack.c.l.b16 %v3521
    %v4896 = vunpack.c.h.b16 %v3521
    %v4897 = vunpack.c.l.b16 %v3522
    %v4898 = vunpack.c.h.b16 %v3522
    %v4899 = vunpack.c.l.b16 %v3523
    %v4900 = vunpack.c.h.b16 %v3523
    %v4901 = vunpack.c.l.b16 %v3524
    %v4902 = vunpack.c.h.b16 %v3524
    %v4903 = vunpack.c.l.b16 %v3525
    %v4904 = vunpack.c.h.b16 %v3525
    %v4905 = vunpack.c.l.b16 %v3526
    %v4906 = vunpack.c.h.b16 %v3526
    %v4907 = vunpack.c.l.b16 %v3527
    %v4908 = vunpack.c.h.b16 %v3527
    %v4909 = vunpack.c.l.b16 %v3528
    %v4910 = vunpack.c.h.b16 %v3528
    %v4911 = vunpack.c.l.b16 %v3529
    %v4912 = vunpack.c.h.b16 %v3529
    %v4913 = vunpack.c.l.b16 %v3530
    %v4914 = vunpack.c.h.b16 %v3530
    %v4915 = vunpack.c.l.b16 %v3531
    %v4916 = vunpack.c.h.b16 %v3531
    %v4917 = vunpack.c.l.b16 %v3532
    %v4918 = vunpack.c.h.b16 %v3532
    %v4919 = vunpack.c.l.b16 %v3533
    %v4920 = vunpack.c.h.b16 %v3533
    %v4921 = vunpack.c.l.b16 %v3534
    %v4922 = vunpack.c.h.b16 %v3534
    %v4923 = vunpack.c.l.b16 %v3535
    %v4924 = vunpack.c.h.b16 %v3535
    %v4925 = vunpack.c.l.b16 %v3536
    %v4926 = vunpack.c.h.b16 %v3536
    %v4927 = vunpack.c.l.b16 %v3537
    %v4928 = vunpack.c.h.b16 %v3537
    %v4929 = vunpack.c.l.b16 %v3538
    %v4930 = vunpack.c.h.b16 %v3538
    %v4931 = vunpack.c.l.b16 %v3539
    %v4932 = vunpack.c.h.b16 %v3539
    %v4933 = vunpack.c.l.b16 %v3540
    %v4934 = vunpack.c.h.b16 %v3540
    %v4935 = vunpack.c.l.b16 %v3541
    %v4936 = vunpack.c.h.b16 %v3541
    %v4937 = vunpack.c.l.b16 %v3542
    %v4938 = vunpack.c.h.b16 %v3542
    %v4939 = vunpack.c.l.b16 %v3543
    %v4940 = vunpack.c.h.b16 %v3543
    %v4941 = vunpack.c.l.b16 %v3544
    %v4942 = vunpack.c.h.b16 %v3544
    %v4943 = vunpack.c.l.b16 %v3545
    %v4944 = vunpack.c.h.b16 %v3545
    %v4945 = vunpack.c.l.b16 %v3546
    %v4946 = vunpack.c.h.b16 %v3546
    %v4947 = vunpack.c.l.b16 %v3547
    %v4948 = vunpack.c.h.b16 %v3547
    %v4949 = vunpack.c.l.b16 %v3548
    %v4950 = vunpack.c.h.b16 %v3548
    %v4951 = vunpack.c.l.b16 %v3549
    %v4952 = vunpack.c.h.b16 %v3549
    %v4953 = vunpack.c.l.b16 %v3550
    %v4954 = vunpack.c.h.b16 %v3550
    %v4955 = vunpack.c.l.b16 %v3551
    %v4956 = vunpack.c.h.b16 %v3551
    %v4957 = vunpack.c.l.b16 %v3552
    %v4958 = vunpack.c.h.b16 %v3552
    %v4959 = vunpack.c.l.b16 %v3553
    %v4960 = vunpack.c.h.b16 %v3553
    %v4961 = vunpack.c.l.b16 %v3554
    %v4962 = vunpack.c.h.b16 %v3554
    %v4963 = vunpack.c.l.b16 %v3555
    %v4964 = vunpack.c.h.b16 %v3555
    %v4965 = vunpack.c.l.b16 %v3556
    %v4966 = vunpack.c.h.b16 %v3556
    %v4967 = vunpack.c.l.b16 %v3557
    %v4968 = vunpack.c.h.b16 %v3557
    %v4969 = vunpack.c.l.b16 %v3558
    %v4970 = vunpack.c.h.b16 %v3558
    %v4971 = vunpack.c.l.b16 %v3559
    %v4972 = vunpack.c.h.b16 %v3559
    %v4973 = vunpack.c.l.b16 %v3560
    %v4974 = vunpack.c.h.b16 %v3560
    %v4975 = vunpack.c.l.b16 %v3561
    %v4976 = vunpack.c.h.b16 %v3561
    %v4977 = vunpack.c.l.b16 %v3562
    %v4978 = vunpack.c.h.b16 %v3562
    %v4979 = vunpack.c.l.b16 %v3563
    %v4980 = vunpack.c.h.b16 %v3563
    %v4981 = vunpack.c.l.b16 %v3564
    %v4982 = vunpack.c.h.b16 %v3564
    %v4983 = vunpack.c.l.b16 %v3565
    %v4984 = vunpack.c.h.b16 %v3565
    %v4985 = vunpack.c.l.b16 %v3566
    %v4986 = vunpack.c.h.b16 %v3566
    %v4987 = vunpack.c.l.b16 %v3567
    %v4988 = vunpack.c.h.b16 %v3567
    %v4989 = vunpack.c.l.b16 %v3568
    %v4990 = vunpack.c.h.b16 %v3568
    %v4991 = vunpack.c.l.b16 %v3569
    %v4992 = vunpack.c.h.b16 %v3569
    %v4993 = vunpack.c.l.b16 %v3570
    %v4994 = vunpack.c.h.b16 %v3570
    %v4995 = vunpack.c.l.b16 %v3571
    %v4996 = vunpack.c.h.b16 %v3571
    %v4997 = vunpack.c.l.b16 %v3572
    %v4998 = vunpack.c.h.b16 %v3572
    %v4999 = vunpack.c.l.b16 %v3573
    %v5000 = vunpack.c.h.b16 %v3573
    %v5001 = vunpack.c.l.b16 %v3574
    %v5002 = vunpack.c.h.b16 %v3574
    %v5003 = vunpack.c.l.b16 %v3575
    %v5004 = vunpack.c.h.b16 %v3575
    %v5005 = vunpack.c.l.b16 %v3576
    %v5006 = vunpack.c.h.b16 %v3576
    %v5007 = vunpack.c.l.b16 %v3577
    %v5008 = vunpack.c.h.b16 %v3577
    %v5009 = vunpack.c.l.b16 %v3578
    %v5010 = vunpack.c.h.b16 %v3578
    %v5011 = vunpack.c.l.b16 %v3579
    %v5012 = vunpack.c.h.b16 %v3579
    %v5013 = vunpack.c.l.b16 %v3580
    %v5014 = vunpack.c.h.b16 %v3580
    %v5015 = vunpack.c.l.b16 %v3581
    %v5016 = vunpack.c.h.b16 %v3581
    %v5017 = vunpack.c.l.b16 %v3582
    %v5018 = vunpack.c.h.b16 %v3582
    %v5019 = vunpack.c.l.b16 %v3583
    %v5020 = vunpack.c.h.b16 %v3583
    %v5021 = vunpack.c.l.b16 %v3584
    %v5022 = vunpack.c.h.b16 %v3584
    %v5023 = vunpack.c.l.b16 %v3585
    %v5024 = vunpack.c.h.b16 %v3585
    %v5025 = vunpack.c.l.b16 %v3586
    %v5026 = vunpack.c.h.b16 %v3586
    %v5027 = vunpack.c.l.b16 %v3587
    %v5028 = vunpack.c.h.b16 %v3587
    %v5029 = vunpack.c.l.b16 %v3588
    %v5030 = vunpack.c.h.b16 %v3588
    %v5031 = vunpack.c.l.b16 %v3589
    %v5032 = vunpack.c.h.b16 %v3589
    %v5033 = vunpack.c.l.b16 %v3590
    %v5034 = vunpack.c.h.b16 %v3590
    %v5035 = vunpack.c.l.b16 %v3591
    %v5036 = vunpack.c.h.b16 %v3591
    %v5037 = vunpack.c.l.b16 %v3592
    %v5038 = vunpack.c.h.b16 %v3592
    %v5039 = vunpack.c.l.b16 %v3593
    %v5040 = vunpack.c.h.b16 %v3593
    %v5041 = vunpack.c.l.b16 %v3594
    %v5042 = vunpack.c.h.b16 %v3594
    %v5043 = vunpack.c.l.b16 %v3595
    %v5044 = vunpack.c.h.b16 %v3595
    %v5045 = vunpack.c.l.b16 %v3596
    %v5046 = vunpack.c.h.b16 %v3596
    %v5047 = vunpack.c.l.b16 %v3597
    %v5048 = vunpack.c.h.b16 %v3597
    %v5049 = vunpack.c.l.b16 %v3598
    %v5050 = vunpack.c.h.b16 %v3598
    %v5051 = vunpack.c.l.b16 %v3599
    %v5052 = vunpack.c.h.b16 %v3599
    %v5053 = vunpack.c.l.b16 %v3600
    %v5054 = vunpack.c.h.b16 %v3600
    %v5055 = vunpack.c.l.b16 %v3601
    %v5056 = vunpack.c.h.b16 %v3601
    %v5057 = vunpack.c.l.b16 %v3602
    %v5058 = vunpack.c.h.b16 %v3602
    %v5059 = vunpack.c.l.b16 %v3603
    %v5060 = vunpack.c.h.b16 %v3603
    %v5061 = vunpack.c.l.b16 %v3604
    %v5062 = vunpack.c.h.b16 %v3604
    %v5063 = vunpack.c.l.b16 %v3605
    %v5064 = vunpack.c.h.b16 %v3605
    %v5065 = vunpack.c.l.b16 %v3606
    %v5066 = vunpack.c.h.b16 %v3606
    %v5067 = vunpack.c.l.b16 %v3607
    %v5068 = vunpack.c.h.b16 %v3607
    %v5069 = vunpack.c.l.b16 %v3608
    %v5070 = vunpack.c.h.b16 %v3608
    %v5071 = vunpack.c.l.b16 %v3609
    %v5072 = vunpack.c.h.b16 %v3609
    %v5073 = vunpack.c.l.b16 %v3610
    %v5074 = vunpack.c.h.b16 %v3610
    %v5075 = vunpack.c.l.b16 %v3611
    %v5076 = vunpack.c.h.b16 %v3611
    %v5077 = vunpack.c.l.b16 %v3612
    %v5078 = vunpack.c.h.b16 %v3612
    %v5079 = vunpack.c.l.b16 %v3613
    %v5080 = vunpack.c.h.b16 %v3613
    %v5081 = vunpack.c.l.b16 %v3614
    %v5082 = vunpack.c.h.b16 %v3614
    %v5083 = vunpack.c.l.b16 %v3615
    %v5084 = vunpack.c.h.b16 %v3615
    %v5085 = vunpack.c.l.b16 %v3616
    %v5086 = vunpack.c.h.b16 %v3616
    %v5087 = vunpack.c.l.b16 %v3617
    %v5088 = vunpack.c.h.b16 %v3617
    %v5089 = vunpack.c.l.b16 %v3618
    %v5090 = vunpack.c.h.b16 %v3618
    %v5091 = vunpack.c.l.b16 %v3619
    %v5092 = vunpack.c.h.b16 %v3619
    %v5093 = vunpack.c.l.b16 %v3620
    %v5094 = vunpack.c.h.b16 %v3620
    %v5095 = vunpack.c.l.b16 %v3621
    %v5096 = vunpack.c.h.b16 %v3621
    %v5097 = vunpack.c.l.b16 %v3622
    %v5098 = vunpack.c.h.b16 %v3622
    %v5099 = vunpack.c.l.b16 %v3623
    %v5100 = vunpack.c.h.b16 %v3623
    %v5101 = vunpack.c.l.b16 %v3624
    %v5102 = vunpack.c.h.b16 %v3624
    %v5103 = vunpack.c.l.b16 %v3625
    %v5104 = vunpack.c.h.b16 %v3625
    %v5105 = vunpack.c.l.b16 %v3626
    %v5106 = vunpack.c.h.b16 %v3626
    %v5107 = vunpack.c.l.b16 %v3627
    %v5108 = vunpack.c.h.b16 %v3627
    %v5109 = vunpack.c.l.b16 %v3628
    %v5110 = vunpack.c.h.b16 %v3628
    %v5111 = vunpack.c.l.b16 %v3629
    %v5112 = vunpack.c.h.b16 %v3629
    %v5113 = vunpack.c.l.b16 %v3630
    %v5114 = vunpack.c.h.b16 %v3630
    %v5115 = vunpack.c.l.b16 %v3631
    %v5116 = vunpack.c.h.b16 %v3631
    %v5117 = vunpack.c.l.b16 %v3632
    %v5118 = vunpack.c.h.b16 %v3632
    %v5119 = vunpack.c.l.b16 %v3633
    %v5120 = vunpack.c.h.b16 %v3633
    %v5121 = vunpack.c.l.b16 %v3634
    %v5122 = vunpack.c.h.b16 %v3634
    %v5123 = vunpack.c.l.b16 %v3635
    %v5124 = vunpack.c.h.b16 %v3635
    %v5125 = vunpack.c.l.b16 %v3636
    %v5126 = vunpack.c.h.b16 %v3636
    %v5127 = vunpack.c.l.b16 %v3637
    %v5128 = vunpack.c.h.b16 %v3637
    %v5129 = vunpack.c.l.b16 %v3638
    %v5130 = vunpack.c.h.b16 %v3638
    %v5131 = vunpack.c.l.b16 %v3639
    %v5132 = vunpack.c.h.b16 %v3639
    %v5133 = vunpack.c.l.b16 %v3640
    %v5134 = vunpack.c.h.b16 %v3640
    %v5135 = vunpack.c.l.b16 %v3641
    %v5136 = vunpack.c.h.b16 %v3641
    %v5137 = vunpack.c.l.b16 %v3642
    %v5138 = vunpack.c.h.b16 %v3642
    %v5139 = vunpack.c.l.b16 %v3643
    %v5140 = vunpack.c.h.b16 %v3643
    %v5141 = vunpack.c.l.b16 %v3644
    %v5142 = vunpack.c.h.b16 %v3644
    %v5143 = vunpack.c.l.b16 %v3645
    %v5144 = vunpack.c.h.b16 %v3645
    %v5145 = vunpack.c.l.b16 %v3646
    %v5146 = vunpack.c.h.b16 %v3646
    %v5147 = vunpack.c.l.b16 %v3647
    %v5148 = vunpack.c.h.b16 %v3647
    %v5149 = vunpack.c.l.b16 %v3648
    %v5150 = vunpack.c.h.b16 %v3648
    %v5151 = vunpack.c.l.b16 %v3649
    %v5152 = vunpack.c.h.b16 %v3649
    %v5153 = vunpack.c.l.b16 %v3650
    %v5154 = vunpack.c.h.b16 %v3650
    %v5155 = vunpack.c.l.b16 %v3651
    %v5156 = vunpack.c.h.b16 %v3651
    %v5157 = vunpack.c.l.b16 %v3652
    %v5158 = vunpack.c.h.b16 %v3652
    %v5159 = vunpack.c.l.b16 %v3653
    %v5160 = vunpack.c.h.b16 %v3653
    %v5161 = vunpack.c.l.b16 %v3654
    %v5162 = vunpack.c.h.b16 %v3654
    %v5163 = vunpack.c.l.b16 %v3655
    %v5164 = vunpack.c.h.b16 %v3655
    %v5165 = vunpack.c.l.b16 %v3656
    %v5166 = vunpack.c.h.b16 %v3656
    %v5167 = vunpack.c.l.b16 %v3657
    %v5168 = vunpack.c.h.b16 %v3657
    %v5169 = vunpack.c.l.b16 %v3658
    %v5170 = vunpack.c.h.b16 %v3658
    %v5171 = vunpack.c.l.b16 %v3659
    %v5172 = vunpack.c.h.b16 %v3659
    %v5173 = vunpack.c.l.b16 %v3660
    %v5174 = vunpack.c.h.b16 %v3660
    %v5175 = vunpack.c.l.b16 %v3661
    %v5176 = vunpack.c.h.b16 %v3661
    %v5177 = vunpack.c.l.b16 %v3662
    %v5178 = vunpack.c.h.b16 %v3662
    %v5179 = vunpack.c.l.b16 %v3663
    %v5180 = vunpack.c.h.b16 %v3663
    %v5181 = vunpack.c.l.b16 %v3664
    %v5182 = vunpack.c.h.b16 %v3664
    %v5183 = vunpack.c.l.b16 %v3665
    %v5184 = vunpack.c.h.b16 %v3665
    %v5185 = vunpack.c.l.b16 %v3666
    %v5186 = vunpack.c.h.b16 %v3666
    %v5187 = vunpack.c.l.b16 %v3667
    %v5188 = vunpack.c.h.b16 %v3667
    %v5189 = vunpack.c.l.b16 %v3668
    %v5190 = vunpack.c.h.b16 %v3668
    %v5191 = vunpack.c.l.b16 %v3669
    %v5192 = vunpack.c.h.b16 %v3669
    %v5193 = vunpack.c.l.b16 %v3670
    %v5194 = vunpack.c.h.b16 %v3670
    %v5195 = vunpack.c.l.b16 %v3671
    %v5196 = vunpack.c.h.b16 %v3671
    %v5197 = vunpack.c.l.b16 %v3672
    %v5198 = vunpack.c.h.b16 %v3672
    %v5199 = vunpack.c.l.b16 %v3673
    %v5200 = vunpack.c.h.b16 %v3673
    %v5201 = vunpack.c.l.b16 %v3674
    %v5202 = vunpack.c.h.b16 %v3674
    %v5203 = vunpack.c.l.b16 %v3675
    %v5204 = vunpack.c.h.b16 %v3675
    %v5205 = vunpack.c.l.b16 %v3676
    %v5206 = vunpack.c.h.b16 %v3676
    %v5207 = vunpack.c.l.b16 %v3677
    %v5208 = vunpack.c.h.b16 %v3677
    %v5209 = vunpack.c.l.b16 %v3678
    %v5210 = vunpack.c.h.b16 %v3678
    %v5211 = vunpack.c.l.b16 %v3679
    %v5212 = vunpack.c.h.b16 %v3679
    %v5213 = vunpack.c.l.b16 %v3680
    %v5214 = vunpack.c.h.b16 %v3680
    %v5215 = vunpack.c.l.b16 %v3681
    %v5216 = vunpack.c.h.b16 %v3681
    %v5217 = vunpack.c.l.b16 %v3682
    %v5218 = vunpack.c.h.b16 %v3682
    %v5219 = vunpack.c.l.b16 %v3683
    %v5220 = vunpack.c.h.b16 %v3683
    %v5221 = vunpack.c.l.b16 %v3684
    %v5222 = vunpack.c.h.b16 %v3684
    %v5223 = vunpack.c.l.b16 %v3685
    %v5224 = vunpack.c.h.b16 %v3685
    %v5225 = vunpack.c.l.b16 %v3686
    %v5226 = vunpack.c.h.b16 %v3686
    %v5227 = vunpack.c.l.b16 %v3687
    %v5228 = vunpack.c.h.b16 %v3687
    %v5229 = vunpack.c.l.b16 %v3688
    %v5230 = vunpack.c.h.b16 %v3688
    %v5231 = vunpack.c.l.b16 %v3689
    %v5232 = vunpack.c.h.b16 %v3689
    %v5233 = vunpack.c.l.b16 %v3690
    %v5234 = vunpack.c.h.b16 %v3690
    %v5235 = vunpack.c.l.b16 %v3691
    %v5236 = vunpack.c.h.b16 %v3691
    %v5237 = vunpack.c.l.b16 %v3692
    %v5238 = vunpack.c.h.b16 %v3692
    %v5239 = vunpack.c.l.b16 %v3693
    %v5240 = vunpack.c.h.b16 %v3693
    %v5241 = vunpack.c.l.b16 %v3694
    %v5242 = vunpack.c.h.b16 %v3694
    %v5243 = vunpack.c.l.b16 %v3695
    %v5244 = vunpack.c.h.b16 %v3695
    %v5245 = vunpack.c.l.b16 %v3696
    %v5246 = vunpack.c.h.b16 %v3696
    %v5247 = vunpack.c.l.b16 %v3697
    %v5248 = vunpack.c.h.b16 %v3697
    %v5249 = vunpack.c.l.b16 %v3698
    %v5250 = vunpack.c.h.b16 %v3698
    %v5251 = vunpack.c.l.b16 %v3699
    %v5252 = vunpack.c.h.b16 %v3699
    %v5253 = vunpack.c.l.b16 %v3700
    %v5254 = vunpack.c.h.b16 %v3700
    %v5255 = vunpack.c.l.b16 %v3701
    %v5256 = vunpack.c.h.b16 %v3701
    %v5257 = vunpack.c.l.b16 %v3702
    %v5258 = vunpack.c.h.b16 %v3702
    %v5259 = vunpack.c.l.b16 %v3703
    %v5260 = vunpack.c.h.b16 %v3703
    %v5261 = vunpack.c.l.b16 %v3704
    %v5262 = vunpack.c.h.b16 %v3704
    %v5263 = vunpack.c.l.b16 %v3705
    %v5264 = vunpack.c.h.b16 %v3705
    %v5265 = vunpack.c.l.b16 %v3706
    %v5266 = vunpack.c.h.b16 %v3706
    %v5267 = vunpack.c.l.b16 %v3707
    %v5268 = vunpack.c.h.b16 %v3707
    %v5269 = vunpack.c.l.b16 %v3708
    %v5270 = vunpack.c.h.b16 %v3708
    %v5271 = vunpack.c.l.b16 %v3709
    %v5272 = vunpack.c.h.b16 %v3709
    %v5273 = vunpack.c.l.b16 %v3710
    %v5274 = vunpack.c.h.b16 %v3710
    %v5275 = vunpack.c.l.b16 %v3711
    %v5276 = vunpack.c.h.b16 %v3711
    %v5277 = vunpack.c.l.b16 %v3712
    %v5278 = vunpack.c.h.b16 %v3712
    %v5279 = vunpack.c.l.b16 %v3713
    %v5280 = vunpack.c.h.b16 %v3713
    %v5281 = vunpack.c.l.b16 %v3714
    %v5282 = vunpack.c.h.b16 %v3714
    %v5283 = vunpack.c.l.b16 %v3715
    %v5284 = vunpack.c.h.b16 %v3715
    %v5285 = vunpack.c.l.b16 %v3716
    %v5286 = vunpack.c.h.b16 %v3716
    %v5287 = vunpack.c.l.b16 %v3717
    %v5288 = vunpack.c.h.b16 %v3717
    %v5289 = vunpack.c.l.b16 %v3718
    %v5290 = vunpack.c.h.b16 %v3718
    %v5291 = vunpack.c.l.b16 %v3719
    %v5292 = vunpack.c.h.b16 %v3719
    %v5293 = vunpack.c.l.b16 %v3720
    %v5294 = vunpack.c.h.b16 %v3720
    %v5295 = vunpack.c.l.b16 %v3721
    %v5296 = vunpack.c.h.b16 %v3721
    %v5297 = vunpack.c.l.b16 %v3722
    %v5298 = vunpack.c.h.b16 %v3722
    %v5299 = vunpack.c.l.b16 %v3723
    %v5300 = vunpack.c.h.b16 %v3723
    %v5301 = vunpack.c.l.b16 %v3724
    %v5302 = vunpack.c.h.b16 %v3724
    %v5303 = vpack.c.b16 %v4287, %v4279
    %v5304 = vpack.c.b16 %v4288, %v4280
    %v5305 = vpack.c.b16 %v4289, %v4281
    %v5306 = vpack.c.b16 %v4290, %v4282
    %v5307 = vpack.c.b16 %v4291, %v4283
    %v5308 = vpack.c.b16 %v4292, %v4284
    %v5309 = vpack.c.b16 %v4293, %v4285
    %v5310 = vpack.c.b16 %v4294, %v4286
    %v5311 = vpack.c.b16 %v4303, %v4295
    %v5312 = vpack.c.b16 %v4304, %v4296
    %v5313 = vpack.c.b16 %v4305, %v4297
    %v5314 = vpack.c.b16 %v4306, %v4298
    %v5315 = vpack.c.b16 %v4307, %v4299
    %v5316 = vpack.c.b16 %v4308, %v4300
    %v5317 = vpack.c.b16 %v4309, %v4301
    %v5318 = vpack.c.b16 %v4310, %v4302
    %v5319 = vpack.c.b16 %v4319, %v4311
    %v5320 = vpack.c.b16 %v4320, %v4312
    %v5321 = vpack.c.b16 %v4321, %v4313
    %v5322 = vpack.c.b16 %v4322, %v4314
    %v5323 = vpack.c.b16 %v4323, %v4315
    %v5324 = vpack.c.b16 %v4324, %v4316
    %v5325 = vpack.c.b16 %v4325, %v4317
    %v5326 = vpack.c.b16 %v4326, %v4318
    %v5327 = vpack.c.b16 %v4335, %v4327
    %v5328 = vpack.c.b16 %v4336, %v4328
    %v5329 = vpack.c.b16 %v4337, %v4329
    %v5330 = vpack.c.b16 %v4338, %v4330
    %v5331 = vpack.c.b16 %v4339, %v4331
    %v5332 = vpack.c.b16 %v4340, %v4332
    %v5333 = vpack.c.b16 %v4341, %v4333
    %v5334 = vpack.c.b16 %v4342, %v4334
    %v5335 = vpack.c.b16 %v4351, %v4343
    %v5336 = vpack.c.b16 %v4352, %v4344
    %v5337 = vpack.c.b16 %v4353, %v4345
    %v5338 = vpack.c.b16 %v4354, %v4346
    %v5339 = vpack.c.b16 %v4355, %v4347
    %v5340 = vpack.c.b16 %v4356, %v4348
    %v5341 = vpack.c.b16 %v4357, %v4349
    %v5342 = vpack.c.b16 %v4358, %v4350
    %v5343 = vpack.c.b16 %v4367, %v4359
    %v5344 = vpack.c.b16 %v4368, %v4360
    %v5345 = vpack.c.b16 %v4369, %v4361
    %v5346 = vpack.c.b16 %v4370, %v4362
    %v5347 = vpack.c.b16 %v4371, %v4363
    %v5348 = vpack.c.b16 %v4372, %v4364
    %v5349 = vpack.c.b16 %v4373, %v4365
    %v5350 = vpack.c.b16 %v4374, %v4366
    %v5351 = vpack.c.b16 %v4383, %v4375
    %v5352 = vpack.c.b16 %v4384, %v4376
    %v5353 = vpack.c.b16 %v4385, %v4377
    %v5354 = vpack.c.b16 %v4386, %v4378
    %v5355 = vpack.c.b16 %v4387, %v4379
    %v5356 = vpack.c.b16 %v4388, %v4380
    %v5357 = vpack.c.b16 %v4389, %v4381
    %v5358 = vpack.c.b16 %v4390, %v4382
    %v5359 = vpack.c.b16 %v4399, %v4391
    %v5360 = vpack.c.b16 %v4400, %v4392
    %v5361 = vpack.c.b16 %v4401, %v4393
    %v5362 = vpack.c.b16 %v4402, %v4394
    %v5363 = vpack.c.b16 %v4403, %v4395
    %v5364 = vpack.c.b16 %v4404, %v4396
    %v5365 = vpack.c.b16 %v4405, %v4397
    %v5366 = vpack.c.b16 %v4406, %v4398
    %v5367 = vpack.c.b16 %v4415, %v4407
    %v5368 = vpack.c.b16 %v4416, %v4408
    %v5369 = vpack.c.b16 %v4417, %v4409
    %v5370 = vpack.c.b16 %v4418, %v4410
    %v5371 = vpack.c.b16 %v4419, %v4411
    %v5372 = vpack.c.b16 %v4420, %v4412
    %v5373 = vpack.c.b16 %v4421, %v4413
    %v5374 = vpack.c.b16 %v4422, %v4414
    %v5375 = vpack.c.b16 %v4431, %v4423
    %v5376 = vpack.c.b16 %v4432, %v4424
    %v5377 = vpack.c.b16 %v4433, %v4425
    %v5378 = vpack.c.b16 %v4434, %v4426
    %v5379 = vpack.c.b16 %v4435, %v4427
    %v5380 = vpack.c.b16 %v4436, %v4428
    %v5381 = vpack.c.b16 %v4437, %v4429
    %v5382 = vpack.c.b16 %v4438, %v4430
    %v5383 = vpack.c.b16 %v4447, %v4439
    %v5384 = vpack.c.b16 %v4448, %v4440
    %v5385 = vpack.c.b16 %v4449, %v4441
    %v5386 = vpack.c.b16 %v4450, %v4442
    %v5387 = vpack.c.b16 %v4451, %v4443
    %v5388 = vpack.c.b16 %v4452, %v4444
    %v5389 = vpack.c.b16 %v4453, %v4445
    %v5390 = vpack.c.b16 %v4454, %v4446
    %v5391 = vpack.c.b16 %v4463, %v4455
    %v5392 = vpack.c.b16 %v4464, %v4456
    %v5393 = vpack.c.b16 %v4465, %v4457
    %v5394 = vpack.c.b16 %v4466, %v4458
    %v5395 = vpack.c.b16 %v4467, %v4459
    %v5396 = vpack.c.b16 %v4468, %v4460
    %v5397 = vpack.c.b16 %v4469, %v4461
    %v5398 = vpack.c.b16 %v4470, %v4462
    %v5399 = vpack.c.b16 %v4479, %v4471
    %v5400 = vpack.c.b16 %v4480, %v4472
    %v5401 = vpack.c.b16 %v4481, %v4473
    %v5402 = vpack.c.b16 %v4482, %v4474
    %v5403 = vpack.c.b16 %v4483, %v4475
    %v5404 = vpack.c.b16 %v4484, %v4476
    %v5405 = vpack.c.b16 %v4485, %v4477
    %v5406 = vpack.c.b16 %v4486, %v4478
    %v5407 = vpack.c.b16 %v4495, %v4487
    %v5408 = vpack.c.b16 %v4496, %v4488
    %v5409 = vpack.c.b16 %v4497, %v4489
    %v5410 = vpack.c.b16 %v4498, %v4490
    %v5411 = vpack.c.b16 %v4499, %v4491
    %v5412 = vpack.c.b16 %v4500, %v4492
    %v5413 = vpack.c.b16 %v4501, %v4493
    %v5414 = vpack.c.b16 %v4502, %v4494
    %v5415 = vpack.c.b16 %v4511, %v4503
    %v5416 = vpack.c.b16 %v4512, %v4504
    %v5417 = vpack.c.b16 %v4513, %v4505
    %v5418 = vpack.c.b16 %v4514, %v4506
    %v5419 = vpack.c.b16 %v4515, %v4507
    %v5420 = vpack.c.b16 %v4516, %v4508
    %v5421 = vpack.c.b16 %v4517, %v4509
    %v5422 = vpack.c.b16 %v4518, %v4510
    %v5423 = vpack.c.b16 %v4527, %v4519
    %v5424 = vpack.c.b16 %v4528, %v4520
    %v5425 = vpack.c.b16 %v4529, %v4521
    %v5426 = vpack.c.b16 %v4530, %v4522
    %v5427 = vpack.c.b16 %v4531, %v4523
    %v5428 = vpack.c.b16 %v4532, %v4524
    %v5429 = vpack.c.b16 %v4533, %v4525
    %v5430 = vpack.c.b16 %v4534, %v4526
    %v5431 = vpack.c.b16 %v4543, %v4535
    %v5432 = vpack.c.b16 %v4544, %v4536
    %v5433 = vpack.c.b16 %v4545, %v4537
    %v5434 = vpack.c.b16 %v4546, %v4538
    %v5435 = vpack.c.b16 %v4547, %v4539
    %v5436 = vpack.c.b16 %v4548, %v4540
    %v5437 = vpack.c.b16 %v4549, %v4541
    %v5438 = vpack.c.b16 %v4550, %v4542
    %v5439 = vpack.c.b16 %v4559, %v4551
    %v5440 = vpack.c.b16 %v4560, %v4552
    %v5441 = vpack.c.b16 %v4561, %v4553
    %v5442 = vpack.c.b16 %v4562, %v4554
    %v5443 = vpack.c.b16 %v4563, %v4555
    %v5444 = vpack.c.b16 %v4564, %v4556
    %v5445 = vpack.c.b16 %v4565, %v4557
    %v5446 = vpack.c.b16 %v4566, %v4558
    %v5447 = vpack.c.b16 %v4575, %v4567
    %v5448 = vpack.c.b16 %v4576, %v4568
    %v5449 = vpack.c.b16 %v4577, %v4569
    %v5450 = vpack.c.b16 %v4578, %v4570
    %v5451 = vpack.c.b16 %v4579, %v4571
    %v5452 = vpack.c.b16 %v4580, %v4572
    %v5453 = vpack.c.b16 %v4581, %v4573
    %v5454 = vpack.c.b16 %v4582, %v4574
    %v5455 = vpack.c.b16 %v4591, %v4583
    %v5456 = vpack.c.b16 %v4592, %v4584
    %v5457 = vpack.c.b16 %v4593, %v4585
    %v5458 = vpack.c.b16 %v4594, %v4586
    %v5459 = vpack.c.b16 %v4595, %v4587
    %v5460 = vpack.c.b16 %v4596, %v4588
    %v5461 = vpack.c.b16 %v4597, %v4589
    %v5462 = vpack.c.b16 %v4598, %v4590
    %v5463 = vpack.c.b16 %v4607, %v4599
    %v5464 = vpack.c.b16 %v4608, %v4600
    %v5465 = vpack.c.b16 %v4609, %v4601
    %v5466 = vpack.c.b16 %v4610, %v4602
    %v5467 = vpack.c.b16 %v4611, %v4603
    %v5468 = vpack.c.b16 %v4612, %v4604
    %v5469 = vpack.c.b16 %v4613, %v4605
    %v5470 = vpack.c.b16 %v4614, %v4606
    %v5471 = vpack.c.b16 %v4623, %v4615
    %v5472 = vpack.c.b16 %v4624, %v4616
    %v5473 = vpack.c.b16 %v4625, %v4617
    %v5474 = vpack.c.b16 %v4626, %v4618
    %v5475 = vpack.c.b16 %v4627, %v4619
    %v5476 = vpack.c.b16 %v4628, %v4620
    %v5477 = vpack.c.b16 %v4629, %v4621
    %v5478 = vpack.c.b16 %v4630, %v4622
    %v5479 = vpack.c.b16 %v4639, %v4631
    %v5480 = vpack.c.b16 %v4640, %v4632
    %v5481 = vpack.c.b16 %v4641, %v4633
    %v5482 = vpack.c.b16 %v4642, %v4634
    %v5483 = vpack.c.b16 %v4643, %v4635
    %v5484 = vpack.c.b16 %v4644, %v4636
    %v5485 = vpack.c.b16 %v4645, %v4637
    %v5486 = vpack.c.b16 %v4646, %v4638
    %v5487 = vpack.c.b16 %v4655, %v4647
    %v5488 = vpack.c.b16 %v4656, %v4648
    %v5489 = vpack.c.b16 %v4657, %v4649
    %v5490 = vpack.c.b16 %v4658, %v4650
    %v5491 = vpack.c.b16 %v4659, %v4651
    %v5492 = vpack.c.b16 %v4660, %v4652
    %v5493 = vpack.c.b16 %v4661, %v4653
    %v5494 = vpack.c.b16 %v4662, %v4654
    %v5495 = vpack.c.b16 %v4671, %v4663
    %v5496 = vpack.c.b16 %v4672, %v4664
    %v5497 = vpack.c.b16 %v4673, %v4665
    %v5498 = vpack.c.b16 %v4674, %v4666
    %v5499 = vpack.c.b16 %v4675, %v4667
    %v5500 = vpack.c.b16 %v4676, %v4668
    %v5501 = vpack.c.b16 %v4677, %v4669
    %v5502 = vpack.c.b16 %v4678, %v4670
    %v5503 = vpack.c.b16 %v4687, %v4679
    %v5504 = vpack.c.b16 %v4688, %v4680
    %v5505 = vpack.c.b16 %v4689, %v4681
    %v5506 = vpack.c.b16 %v4690, %v4682
    %v5507 = vpack.c.b16 %v4691, %v4683
    %v5508 = vpack.c.b16 %v4692, %v4684
    %v5509 = vpack.c.b16 %v4693, %v4685
    %v5510 = vpack.c.b16 %v4694, %v4686
    %v5511 = vpack.c.b16 %v4703, %v4695
    %v5512 = vpack.c.b16 %v4704, %v4696
    %v5513 = vpack.c.b16 %v4705, %v4697
    %v5514 = vpack.c.b16 %v4706, %v4698
    %v5515 = vpack.c.b16 %v4707, %v4699
    %v5516 = vpack.c.b16 %v4708, %v4700
    %v5517 = vpack.c.b16 %v4709, %v4701
    %v5518 = vpack.c.b16 %v4710, %v4702
    %v5519 = vpack.c.b16 %v4719, %v4711
    %v5520 = vpack.c.b16 %v4720, %v4712
    %v5521 = vpack.c.b16 %v4721, %v4713
    %v5522 = vpack.c.b16 %v4722, %v4714
    %v5523 = vpack.c.b16 %v4723, %v4715
    %v5524 = vpack.c.b16 %v4724, %v4716
    %v5525 = vpack.c.b16 %v4725, %v4717
    %v5526 = vpack.c.b16 %v4726, %v4718
    %v5527 = vpack.c.b16 %v4735, %v4727
    %v5528 = vpack.c.b16 %v4736, %v4728
    %v5529 = vpack.c.b16 %v4737, %v4729
    %v5530 = vpack.c.b16 %v4738, %v4730
    %v5531 = vpack.c.b16 %v4739, %v4731
    %v5532 = vpack.c.b16 %v4740, %v4732
    %v5533 = vpack.c.b16 %v4741, %v4733
    %v5534 = vpack.c.b16 %v4742, %v4734
    %v5535 = vpack.c.b16 %v4751, %v4743
    %v5536 = vpack.c.b16 %v4752, %v4744
    %v5537 = vpack.c.b16 %v4753, %v4745
    %v5538 = vpack.c.b16 %v4754, %v4746
    %v5539 = vpack.c.b16 %v4755, %v4747
    %v5540 = vpack.c.b16 %v4756, %v4748
    %v5541 = vpack.c.b16 %v4757, %v4749
    %v5542 = vpack.c.b16 %v4758, %v4750
    %v5543 = vpack.c.b16 %v4767, %v4759
    %v5544 = vpack.c.b16 %v4768, %v4760
    %v5545 = vpack.c.b16 %v4769, %v4761
    %v5546 = vpack.c.b16 %v4770, %v4762
    %v5547 = vpack.c.b16 %v4771, %v4763
    %v5548 = vpack.c.b16 %v4772, %v4764
    %v5549 = vpack.c.b16 %v4773, %v4765
    %v5550 = vpack.c.b16 %v4774, %v4766
    %v5551 = vpack.c.b16 %v4783, %v4775
    %v5552 = vpack.c.b16 %v4784, %v4776
    %v5553 = vpack.c.b16 %v4785, %v4777
    %v5554 = vpack.c.b16 %v4786, %v4778
    %v5555 = vpack.c.b16 %v4787, %v4779
    %v5556 = vpack.c.b16 %v4788, %v4780
    %v5557 = vpack.c.b16 %v4789, %v4781
    %v5558 = vpack.c.b16 %v4790, %v4782
    %v5559 = vpack.c.b16 %v4799, %v4791
    %v5560 = vpack.c.b16 %v4800, %v4792
    %v5561 = vpack.c.b16 %v4801, %v4793
    %v5562 = vpack.c.b16 %v4802, %v4794
    %v5563 = vpack.c.b16 %v4803, %v4795
    %v5564 = vpack.c.b16 %v4804, %v4796
    %v5565 = vpack.c.b16 %v4805, %v4797
    %v5566 = vpack.c.b16 %v4806, %v4798
    %v5567 = vpack.c.b16 %v4815, %v4807
    %v5568 = vpack.c.b16 %v4816, %v4808
    %v5569 = vpack.c.b16 %v4817, %v4809
    %v5570 = vpack.c.b16 %v4818, %v4810
    %v5571 = vpack.c.b16 %v4819, %v4811
    %v5572 = vpack.c.b16 %v4820, %v4812
    %v5573 = vpack.c.b16 %v4821, %v4813
    %v5574 = vpack.c.b16 %v4822, %v4814
    %v5575 = vpack.c.b16 %v4831, %v4823
    %v5576 = vpack.c.b16 %v4832, %v4824
    %v5577 = vpack.c.b16 %v4833, %v4825
    %v5578 = vpack.c.b16 %v4834, %v4826
    %v5579 = vpack.c.b16 %v4835, %v4827
    %v5580 = vpack.c.b16 %v4836, %v4828
    %v5581 = vpack.c.b16 %v4837, %v4829
    %v5582 = vpack.c.b16 %v4838, %v4830
    %v5583 = vpack.c.b16 %v4847, %v4839
    %v5584 = vpack.c.b16 %v4848, %v4840
    %v5585 = vpack.c.b16 %v4849, %v4841
    %v5586 = vpack.c.b16 %v4850, %v4842
    %v5587 = vpack.c.b16 %v4851, %v4843
    %v5588 = vpack.c.b16 %v4852, %v4844
    %v5589 = vpack.c.b16 %v4853, %v4845
    %v5590 = vpack.c.b16 %v4854, %v4846
    %v5591 = vpack.c.b16 %v4863, %v4855
    %v5592 = vpack.c.b16 %v4864, %v4856
    %v5593 = vpack.c.b16 %v4865, %v4857
    %v5594 = vpack.c.b16 %v4866, %v4858
    %v5595 = vpack.c.b16 %v4867, %v4859
    %v5596 = vpack.c.b16 %v4868, %v4860
    %v5597 = vpack.c.b16 %v4869, %v4861
    %v5598 = vpack.c.b16 %v4870, %v4862
    %v5599 = vpack.c.b16 %v4879, %v4871
    %v5600 = vpack.c.b16 %v4880, %v4872
    %v5601 = vpack.c.b16 %v4881, %v4873
    %v5602 = vpack.c.b16 %v4882, %v4874
    %v5603 = vpack.c.b16 %v4883, %v4875
    %v5604 = vpack.c.b16 %v4884, %v4876
    %v5605 = vpack.c.b16 %v4885, %v4877
    %v5606 = vpack.c.b16 %v4886, %v4878
    %v5607 = vpack.c.b16 %v4895, %v4887
    %v5608 = vpack.c.b16 %v4896, %v4888
    %v5609 = vpack.c.b16 %v4897, %v4889
    %v5610 = vpack.c.b16 %v4898, %v4890
    %v5611 = vpack.c.b16 %v4899, %v4891
    %v5612 = vpack.c.b16 %v4900, %v4892
    %v5613 = vpack.c.b16 %v4901, %v4893
    %v5614 = vpack.c.b16 %v4902, %v4894
    %v5615 = vpack.c.b16 %v4911, %v4903
    %v5616 = vpack.c.b16 %v4912, %v4904
    %v5617 = vpack.c.b16 %v4913, %v4905
    %v5618 = vpack.c.b16 %v4914, %v4906
    %v5619 = vpack.c.b16 %v4915, %v4907
    %v5620 = vpack.c.b16 %v4916, %v4908
    %v5621 = vpack.c.b16 %v4917, %v4909
    %v5622 = vpack.c.b16 %v4918, %v4910
    %v5623 = vpack.c.b16 %v4927, %v4919
    %v5624 = vpack.c.b16 %v4928, %v4920
    %v5625 = vpack.c.b16 %v4929, %v4921
    %v5626 = vpack.c.b16 %v4930, %v4922
    %v5627 = vpack.c.b16 %v4931, %v4923
    %v5628 = vpack.c.b16 %v4932, %v4924
    %v5629 = vpack.c.b16 %v4933, %v4925
    %v5630 = vpack.c.b16 %v4934, %v4926
    %v5631 = vpack.c.b16 %v4943, %v4935
    %v5632 = vpack.c.b16 %v4944, %v4936
    %v5633 = vpack.c.b16 %v4945, %v4937
    %v5634 = vpack.c.b16 %v4946, %v4938
    %v5635 = vpack.c.b16 %v4947, %v4939
    %v5636 = vpack.c.b16 %v4948, %v4940
    %v5637 = vpack.c.b16 %v4949, %v4941
    %v5638 = vpack.c.b16 %v4950, %v4942
    %v5639 = vpack.c.b16 %v4959, %v4951
    %v5640 = vpack.c.b16 %v4960, %v4952
    %v5641 = vpack.c.b16 %v4961, %v4953
    %v5642 = vpack.c.b16 %v4962, %v4954
    %v5643 = vpack.c.b16 %v4963, %v4955
    %v5644 = vpack.c.b16 %v4964, %v4956
    %v5645 = vpack.c.b16 %v4965, %v4957
    %v5646 = vpack.c.b16 %v4966, %v4958
    %v5647 = vpack.c.b16 %v4975, %v4967
    %v5648 = vpack.c.b16 %v4976, %v4968
    %v5649 = vpack.c.b16 %v4977, %v4969
    %v5650 = vpack.c.b16 %v4978, %v4970
    %v5651 = vpack.c.b16 %v4979, %v4971
    %v5652 = vpack.c.b16 %v4980, %v4972
    %v5653 = vpack.c.b16 %v4981, %v4973
    %v5654 = vpack.c.b16 %v4982, %v4974
    %v5655 = vpack.c.b16 %v4991, %v4983
    %v5656 = vpack.c.b16 %v4992, %v4984
    %v5657 = vpack.c.b16 %v4993, %v4985
    %v5658 = vpack.c.b16 %v4994, %v4986
    %v5659 = vpack.c.b16 %v4995, %v4987
    %v5660 = vpack.c.b16 %v4996, %v4988
    %v5661 = vpack.c.b16 %v4997, %v4989
    %v5662 = vpack.c.b16 %v4998, %v4990
    %v5663 = vpack.c.b16 %v5007, %v4999
    %v5664 = vpack.c.b16 %v5008, %v5000
    %v5665 = vpack.c.b16 %v5009, %v5001
    %v5666 = vpack.c.b16 %v5010, %v5002
    %v5667 = vpack.c.b16 %v5011, %v5003
    %v5668 = vpack.c.b16 %v5012, %v5004
    %v5669 = vpack.c.b16 %v5013, %v5005
    %v5670 = vpack.c.b16 %v5014, %v5006
    %v5671 = vpack.c.b16 %v5023, %v5015
    %v5672 = vpack.c.b16 %v5024, %v5016
    %v5673 = vpack.c.b16 %v5025, %v5017
    %v5674 = vpack.c.b16 %v5026, %v5018
    %v5675 = vpack.c.b16 %v5027, %v5019
    %v5676 = vpack.c.b16 %v5028, %v5020
    %v5677 = vpack.c.b16 %v5029, %v5021
    %v5678 = vpack.c.b16 %v5030, %v5022
    %v5679 = vpack.c.b16 %v5039, %v5031
    %v5680 = vpack.c.b16 %v5040, %v5032
    %v5681 = vpack.c.b16 %v5041, %v5033
    %v5682 = vpack.c.b16 %v5042, %v5034
    %v5683 = vpack.c.b16 %v5043, %v5035
    %v5684 = vpack.c.b16 %v5044, %v5036
    %v5685 = vpack.c.b16 %v5045, %v5037
    %v5686 = vpack.c.b16 %v5046, %v5038
    %v5687 = vpack.c.b16 %v5055, %v5047
    %v5688 = vpack.c.b16 %v5056, %v5048
    %v5689 = vpack.c.b16 %v5057, %v5049
    %v5690 = vpack.c.b16 %v5058, %v5050
    %v5691 = vpack.c.b16 %v5059, %v5051
    %v5692 = vpack.c.b16 %v5060, %v5052
    %v5693 = vpack.c.b16 %v5061, %v5053
    %v5694 = vpack.c.b16 %v5062, %v5054
    %v5695 = vpack.c.b16 %v5071, %v5063
    %v5696 = vpack.c.b16 %v5072, %v5064
    %v5697 = vpack.c.b16 %v5073, %v5065
    %v5698 = vpack.c.b16 %v5074, %v5066
    %v5699 = vpack.c.b16 %v5075, %v5067
    %v5700 = vpack.c.b16 %v5076, %v5068
    %v5701 = vpack.c.b16 %v5077, %v5069
    %v5702 = vpack.c.b16 %v5078, %v5070
    %v5703 = vpack.c.b16 %v5087, %v5079
    %v5704 = vpack.c.b16 %v5088, %v5080
    %v5705 = vpack.c.b16 %v5089, %v5081
    %v5706 = vpack.c.b16 %v5090, %v5082
    %v5707 = vpack.c.b16 %v5091, %v5083
    %v5708 = vpack.c.b16 %v5092, %v5084
    %v5709 = vpack.c.b16 %v5093, %v5085
    %v5710 = vpack.c.b16 %v5094, %v5086
    %v5711 = vpack.c.b16 %v5103, %v5095
    %v5712 = vpack.c.b16 %v5104, %v5096
    %v5713 = vpack.c.b16 %v5105, %v5097
    %v5714 = vpack.c.b16 %v5106, %v5098
    %v5715 = vpack.c.b16 %v5107, %v5099
    %v5716 = vpack.c.b16 %v5108, %v5100
    %v5717 = vpack.c.b16 %v5109, %v5101
    %v5718 = vpack.c.b16 %v5110, %v5102
    %v5719 = vpack.c.b16 %v5119, %v5111
    %v5720 = vpack.c.b16 %v5120, %v5112
    %v5721 = vpack.c.b16 %v5121, %v5113
    %v5722 = vpack.c.b16 %v5122, %v5114
    %v5723 = vpack.c.b16 %v5123, %v5115
    %v5724 = vpack.c.b16 %v5124, %v5116
    %v5725 = vpack.c.b16 %v5125, %v5117
    %v5726 = vpack.c.b16 %v5126, %v5118
    %v5727 = vpack.c.b16 %v5135, %v5127
    %v5728 = vpack.c.b16 %v5136, %v5128
    %v5729 = vpack.c.b16 %v5137, %v5129
    %v5730 = vpack.c.b16 %v5138, %v5130
    %v5731 = vpack.c.b16 %v5139, %v5131
    %v5732 = vpack.c.b16 %v5140, %v5132
    %v5733 = vpack.c.b16 %v5141, %v5133
    %v5734 = vpack.c.b16 %v5142, %v5134
    %v5735 = vpack.c.b16 %v5151, %v5143
    %v5736 = vpack.c.b16 %v5152, %v5144
    %v5737 = vpack.c.b16 %v5153, %v5145
    %v5738 = vpack.c.b16 %v5154, %v5146
    %v5739 = vpack.c.b16 %v5155, %v5147
    %v5740 = vpack.c.b16 %v5156, %v5148
    %v5741 = vpack.c.b16 %v5157, %v5149
    %v5742 = vpack.c.b16 %v5158, %v5150
    %v5743 = vpack.c.b16 %v5167, %v5159
    %v5744 = vpack.c.b16 %v5168, %v5160
    %v5745 = vpack.c.b16 %v5169, %v5161
    %v5746 = vpack.c.b16 %v5170, %v5162
    %v5747 = vpack.c.b16 %v5171, %v5163
    %v5748 = vpack.c.b16 %v5172, %v5164
    %v5749 = vpack.c.b16 %v5173, %v5165
    %v5750 = vpack.c.b16 %v5174, %v5166
    %v5751 = vpack.c.b16 %v5183, %v5175
    %v5752 = vpack.c.b16 %v5184, %v5176
    %v5753 = vpack.c.b16 %v5185, %v5177
    %v5754 = vpack.c.b16 %v5186, %v5178
    %v5755 = vpack.c.b16 %v5187, %v5179
    %v5756 = vpack.c.b16 %v5188, %v5180
    %v5757 = vpack.c.b16 %v5189, %v5181
    %v5758 = vpack.c.b16 %v5190, %v5182
    %v5759 = vpack.c.b16 %v5199, %v5191
    %v5760 = vpack.c.b16 %v5200, %v5192
    %v5761 = vpack.c.b16 %v5201, %v5193
    %v5762 = vpack.c.b16 %v5202, %v5194
    %v5763 = vpack.c.b16 %v5203, %v5195
    %v5764 = vpack.c.b16 %v5204, %v5196
    %v5765 = vpack.c.b16 %v5205, %v5197
    %v5766 = vpack.c.b16 %v5206, %v5198
    %v5767 = vpack.c.b16 %v5215, %v5207
    %v5768 = vpack.c.b16 %v5216, %v5208
    %v5769 = vpack.c.b16 %v5217, %v5209
    %v5770 = vpack.c.b16 %v5218, %v5210
    %v5771 = vpack.c.b16 %v5219, %v5211
    %v5772 = vpack.c.b16 %v5220, %v5212
    %v5773 = vpack.c.b16 %v5221, %v5213
    %v5774 = vpack.c.b16 %v5222, %v5214
    %v5775 = vpack.c.b16 %v5231, %v5223
    %v5776 = vpack.c.b16 %v5232, %v5224
    %v5777 = vpack.c.b16 %v5233, %v5225
    %v5778 = vpack.c.b16 %v5234, %v5226
    %v5779 = vpack.c.b16 %v5235, %v5227
    %v5780 = vpack.c.b16 %v5236, %v5228
    %v5781 = vpack.c.b16 %v5237, %v5229
    %v5782 = vpack.c.b16 %v5238, %v5230
    %v5783 = vpack.c.b16 %v5247, %v5239
    %v5784 = vpack.c.b16 %v5248, %v5240
    %v5785 = vpack.c.b16 %v5249, %v5241
    %v5786 = vpack.c.b16 %v5250, %v5242
    %v5787 = vpack.c.b16 %v5251, %v5243
    %v5788 = vpack.c.b16 %v5252, %v5244
    %v5789 = vpack.c.b16 %v5253, %v5245
    %v5790 = vpack.c.b16 %v5254, %v5246
    %v5791 = vpack.c.b16 %v5263, %v5255
    %v5792 = vpack.c.b16 %v5264, %v5256
    %v5793 = vpack.c.b16 %v5265, %v5257
    %v5794 = vpack.c.b16 %v5266, %v5258
    %v5795 = vpack.c.b16 %v5267, %v5259
    %v5796 = vpack.c.b16 %v5268, %v5260
    %v5797 = vpack.c.b16 %v5269, %v5261
    %v5798 = vpack.c.b16 %v5270, %v5262
    %v5799 = vpack.c.b16 %v5279, %v5271
    %v5800 = vpack.c.b16 %v5280, %v5272
    %v5801 = vpack.c.b16 %v5281, %v5273
    %v5802 = vpack.c.b16 %v5282, %v5274
    %v5803 = vpack.c.b16 %v5283, %v5275
    %v5804 = vpack.c.b16 %v5284, %v5276
    %v5805 = vpack.c.b16 %v5285, %v5277
    %v5806 = vpack.c.b16 %v5286, %v5278
    %v5807 = vpack.c.b16 %v5295, %v5287
    %v5808 = vpack.c.b16 %v5296, %v5288
    %v5809 = vpack.c.b16 %v5297, %v5289
    %v5810 = vpack.c.b16 %v5298, %v5290
    %v5811 = vpack.c.b16 %v5299, %v5291
    %v5812 = vpack.c.b16 %v5300, %v5292
    %v5813 = vpack.c.b16 %v5301, %v5293
    %v5814 = vpack.c.b16 %v5302, %v5294
    %6327 = vmatprep.subr.bf16.mxu0 %v5360
    %6328 = vmatpush1.bf16.msra.mxu0 %v5359
    %6329 = vmatprep.subr.bf16.mxu0 %v5352
    %6330 = vmatpush1.bf16.msra.mxu0 %v5351
    %6331 = vmatprep.subr.bf16.mxu0 %v5344
    %6332 = vmatpush1.bf16.msra.mxu0 %v5343
    %6333 = vmatprep.subr.bf16.mxu0 %v5336
    %6334 = vmatpush1.bf16.msra.mxu0 %v5335
    %6335 = vmatprep.subr.bf16.mxu0 %v5328
    %6336 = vmatpush1.bf16.msra.mxu0 %v5327
    %6337 = vmatprep.subr.bf16.mxu0 %v5320
    %6338 = vmatpush1.bf16.msra.mxu0 %v5319
    %6339 = vmatprep.subr.bf16.mxu0 %v5312
    %6340 = vmatpush1.bf16.msra.mxu0 %v5311
    %6341 = vmatprep.subr.bf16.mxu0 %v5304
    %6342 = vmatpush1.bf16.msra.mxu0 %v5303
    %6343 = vmatprep.subr.bf16.mxu0 %v5424
    %6344 = vmatpush2.bf16.msra.mxu0 %v5423
    %6345 = vmatprep.subr.bf16.mxu0 %v5416
    %6346 = vmatpush2.bf16.msra.mxu0 %v5415
    %6347 = vmatprep.subr.bf16.mxu0 %v5408
    %6348 = vmatpush2.bf16.msra.mxu0 %v5407
    %6349 = vmatprep.subr.bf16.mxu0 %v5400
    %6350 = vmatpush2.bf16.msra.mxu0 %v5399
    %6351 = vmatprep.subr.bf16.mxu0 %v5392
    %6352 = vmatpush2.bf16.msra.mxu0 %v5391
    %6353 = vmatprep.subr.bf16.mxu0 %v5384
    %6354 = vmatpush2.bf16.msra.mxu0 %v5383
    %6355 = vmatprep.subr.bf16.mxu0 %v5376
    %6356 = vmatpush2.bf16.msra.mxu0 %v5375
    %6357 = vmatprep.subr.bf16.mxu0 %v5368
    %6358 = vmatpush2.bf16.msra.mxu0 %v5367
    %6359 = vmatprep.mubr.bf16.mxu0 %v3206
    %6360 = vmatmul.mubr.bf16.gmra.mxu0 %v3205
    %v6361 = vpop.f32.mrf.mxu0
    %v6362 = vadd.f32 %v3730, %v6361
    %v6363 = vpop.f32.mrf.mxu0
    %v6364 = vadd.f32 %v3734, %v6363
    %v6365 = vpop.f32.mrf.mxu0
    %v6366 = vpop.f32.mrf.mxu0
    %6367 = vdwg.mxu0
    %6368 = vmatprep.subr.bf16.mxu0 %v5488
    %6369 = vmatpush1.bf16.msra.mxu0 %v5487
    %6370 = vmatprep.subr.bf16.mxu0 %v5480
    %6371 = vmatpush1.bf16.msra.mxu0 %v5479
    %6372 = vmatprep.subr.bf16.mxu0 %v5472
    %6373 = vmatpush1.bf16.msra.mxu0 %v5471
    %6374 = vmatprep.subr.bf16.mxu0 %v5464
    %6375 = vmatpush1.bf16.msra.mxu0 %v5463
    %6376 = vmatprep.subr.bf16.mxu0 %v5456
    %6377 = vmatpush1.bf16.msra.mxu0 %v5455
    %6378 = vmatprep.subr.bf16.mxu0 %v5448
    %6379 = vmatpush1.bf16.msra.mxu0 %v5447
    %6380 = vmatprep.subr.bf16.mxu0 %v5440
    %6381 = vmatpush1.bf16.msra.mxu0 %v5439
    %6382 = vmatprep.subr.bf16.mxu0 %v5432
    %6383 = vmatpush1.bf16.msra.mxu0 %v5431
    %6384 = vmatprep.subr.bf16.mxu0 %v5552
    %6385 = vmatpush2.bf16.msra.mxu0 %v5551
    %6386 = vmatprep.subr.bf16.mxu0 %v5544
    %6387 = vmatpush2.bf16.msra.mxu0 %v5543
    %6388 = vmatprep.subr.bf16.mxu0 %v5536
    %6389 = vmatpush2.bf16.msra.mxu0 %v5535
    %6390 = vmatprep.subr.bf16.mxu0 %v5528
    %6391 = vmatpush2.bf16.msra.mxu0 %v5527
    %6392 = vmatprep.subr.bf16.mxu0 %v5520
    %6393 = vmatpush2.bf16.msra.mxu0 %v5519
    %6394 = vmatprep.subr.bf16.mxu0 %v5512
    %6395 = vmatpush2.bf16.msra.mxu0 %v5511
    %6396 = vmatprep.subr.bf16.mxu0 %v5504
    %6397 = vmatpush2.bf16.msra.mxu0 %v5503
    %6398 = vmatprep.subr.bf16.mxu0 %v5496
    %6399 = vmatpush2.bf16.msra.mxu0 %v5495
    %6400 = vmatprep.mubr.bf16.mxu0 %v3208
    %6401 = vmatmul.mubr.bf16.gmra.mxu0 %v3207
    %v6402 = vpop.f32.mrf.mxu0
    %v6403 = vadd.f32 %v6362, %v6402
    %v6404 = vpop.f32.mrf.mxu0
    %v6405 = vadd.f32 %v6364, %v6404
    %v6406 = vpop.f32.mrf.mxu0
    %v6407 = vpop.f32.mrf.mxu0
    %6408 = vdwg.mxu0
    %6409 = vmatprep.subr.bf16.mxu0 %v5616
    %6410 = vmatpush1.bf16.msra.mxu0 %v5615
    %6411 = vmatprep.subr.bf16.mxu0 %v5608
    %6412 = vmatpush1.bf16.msra.mxu0 %v5607
    %6413 = vmatprep.subr.bf16.mxu0 %v5600
    %6414 = vmatpush1.bf16.msra.mxu0 %v5599
    %6415 = vmatprep.subr.bf16.mxu0 %v5592
    %6416 = vmatpush1.bf16.msra.mxu0 %v5591
    %6417 = vmatprep.subr.bf16.mxu0 %v5584
    %6418 = vmatpush1.bf16.msra.mxu0 %v5583
    %6419 = vmatprep.subr.bf16.mxu0 %v5576
    %6420 = vmatpush1.bf16.msra.mxu0 %v5575
    %6421 = vmatprep.subr.bf16.mxu0 %v5568
    %6422 = vmatpush1.bf16.msra.mxu0 %v5567
    %6423 = vmatprep.subr.bf16.mxu0 %v5560
    %6424 = vmatpush1.bf16.msra.mxu0 %v5559
    %6425 = vmatprep.subr.bf16.mxu0 %v5680
    %6426 = vmatpush2.bf16.msra.mxu0 %v5679
    %6427 = vmatprep.subr.bf16.mxu0 %v5672
    %6428 = vmatpush2.bf16.msra.mxu0 %v5671
    %6429 = vmatprep.subr.bf16.mxu0 %v5664
    %6430 = vmatpush2.bf16.msra.mxu0 %v5663
    %6431 = vmatprep.subr.bf16.mxu0 %v5656
    %6432 = vmatpush2.bf16.msra.mxu0 %v5655
    %6433 = vmatprep.subr.bf16.mxu0 %v5648
    %6434 = vmatpush2.bf16.msra.mxu0 %v5647
    %6435 = vmatprep.subr.bf16.mxu0 %v5640
    %6436 = vmatpush2.bf16.msra.mxu0 %v5639
    %6437 = vmatprep.subr.bf16.mxu0 %v5632
    %6438 = vmatpush2.bf16.msra.mxu0 %v5631
    %6439 = vmatprep.subr.bf16.mxu0 %v5624
    %6440 = vmatpush2.bf16.msra.mxu0 %v5623
    %6441 = vmatprep.mubr.bf16.mxu0 %v3210
    %6442 = vmatmul.mubr.bf16.gmra.mxu0 %v3209
    %v6443 = vpop.f32.mrf.mxu0
    %v6444 = vadd.f32 %v6403, %v6443
    %v6445 = vpop.f32.mrf.mxu0
    %v6446 = vadd.f32 %v6405, %v6445
    %v6447 = vpop.f32.mrf.mxu0
    %v6448 = vpop.f32.mrf.mxu0
    %6449 = vdwg.mxu0
    %6450 = vmatprep.subr.bf16.mxu0 %v5744
    %6451 = vmatpush1.bf16.msra.mxu0 %v5743
    %6452 = vmatprep.subr.bf16.mxu0 %v5736
    %6453 = vmatpush1.bf16.msra.mxu0 %v5735
    %6454 = vmatprep.subr.bf16.mxu0 %v5728
    %6455 = vmatpush1.bf16.msra.mxu0 %v5727
    %6456 = vmatprep.subr.bf16.mxu0 %v5720
    %6457 = vmatpush1.bf16.msra.mxu0 %v5719
    %6458 = vmatprep.subr.bf16.mxu0 %v5712
    %6459 = vmatpush1.bf16.msra.mxu0 %v5711
    %6460 = vmatprep.subr.bf16.mxu0 %v5704
    %6461 = vmatpush1.bf16.msra.mxu0 %v5703
    %6462 = vmatprep.subr.bf16.mxu0 %v5696
    %6463 = vmatpush1.bf16.msra.mxu0 %v5695
    %6464 = vmatprep.subr.bf16.mxu0 %v5688
    %6465 = vmatpush1.bf16.msra.mxu0 %v5687
    %6466 = vmatprep.subr.bf16.mxu0 %v5808
    %6467 = vmatpush2.bf16.msra.mxu0 %v5807
    %6468 = vmatprep.subr.bf16.mxu0 %v5800
    %6469 = vmatpush2.bf16.msra.mxu0 %v5799
    %6470 = vmatprep.subr.bf16.mxu0 %v5792
    %6471 = vmatpush2.bf16.msra.mxu0 %v5791
    %6472 = vmatprep.subr.bf16.mxu0 %v5784
    %6473 = vmatpush2.bf16.msra.mxu0 %v5783
    %6474 = vmatprep.subr.bf16.mxu0 %v5776
    %6475 = vmatpush2.bf16.msra.mxu0 %v5775
    %6476 = vmatprep.subr.bf16.mxu0 %v5768
    %6477 = vmatpush2.bf16.msra.mxu0 %v5767
    %6478 = vmatprep.subr.bf16.mxu0 %v5760
    %6479 = vmatpush2.bf16.msra.mxu0 %v5759
    %6480 = vmatprep.subr.bf16.mxu0 %v5752
    %6481 = vmatpush2.bf16.msra.mxu0 %v5751
    %6482 = vmatprep.mubr.bf16.mxu0 %v3212
    %6483 = vmatmul.mubr.bf16.gmra.mxu0 %v3211
    %v6484 = vpop.f32.mrf.mxu0
    %v6485 = vadd.f32 %v6444, %v6484
    %v6486 = vpop.f32.mrf.mxu0
    %v6487 = vadd.f32 %v6446, %v6486
    %v6488 = vpop.f32.mrf.mxu0
    %v6489 = vpop.f32.mrf.mxu0
    %6490 = vdwg.mxu0
    %6491 = vmatprep.subr.bf16.mxu0 %v5362
    %6492 = vmatpush1.bf16.msra.mxu0 %v5361
    %6493 = vmatprep.subr.bf16.mxu0 %v5354
    %6494 = vmatpush1.bf16.msra.mxu0 %v5353
    %6495 = vmatprep.subr.bf16.mxu0 %v5346
    %6496 = vmatpush1.bf16.msra.mxu0 %v5345
    %6497 = vmatprep.subr.bf16.mxu0 %v5338
    %6498 = vmatpush1.bf16.msra.mxu0 %v5337
    %6499 = vmatprep.subr.bf16.mxu0 %v5330
    %6500 = vmatpush1.bf16.msra.mxu0 %v5329
    %6501 = vmatprep.subr.bf16.mxu0 %v5322
    %6502 = vmatpush1.bf16.msra.mxu0 %v5321
    %6503 = vmatprep.subr.bf16.mxu0 %v5314
    %6504 = vmatpush1.bf16.msra.mxu0 %v5313
    %6505 = vmatprep.subr.bf16.mxu0 %v5306
    %6506 = vmatpush1.bf16.msra.mxu0 %v5305
    %6507 = vmatprep.subr.bf16.mxu0 %v5426
    %6508 = vmatpush2.bf16.msra.mxu0 %v5425
    %6509 = vmatprep.subr.bf16.mxu0 %v5418
    %6510 = vmatpush2.bf16.msra.mxu0 %v5417
    %6511 = vmatprep.subr.bf16.mxu0 %v5410
    %6512 = vmatpush2.bf16.msra.mxu0 %v5409
    %6513 = vmatprep.subr.bf16.mxu0 %v5402
    %6514 = vmatpush2.bf16.msra.mxu0 %v5401
    %6515 = vmatprep.subr.bf16.mxu0 %v5394
    %6516 = vmatpush2.bf16.msra.mxu0 %v5393
    %6517 = vmatprep.subr.bf16.mxu0 %v5386
    %6518 = vmatpush2.bf16.msra.mxu0 %v5385
    %6519 = vmatprep.subr.bf16.mxu0 %v5378
    %6520 = vmatpush2.bf16.msra.mxu0 %v5377
    %6521 = vmatprep.subr.bf16.mxu0 %v5370
    %6522 = vmatpush2.bf16.msra.mxu0 %v5369
    %6523 = vmatprep.mubr.bf16.mxu0 %v3206
    %6524 = vmatmul.mubr.bf16.gmra.mxu0 %v3205
    %v6525 = vpop.f32.mrf.mxu0
    %v6526 = vadd.f32 %v3738, %v6525
    %v6527 = vpop.f32.mrf.mxu0
    %v6528 = vadd.f32 %v3742, %v6527
    %v6529 = vpop.f32.mrf.mxu0
    %v6530 = vpop.f32.mrf.mxu0
    %6531 = vdwg.mxu0
    %6532 = vmatprep.subr.bf16.mxu0 %v5490
    %6533 = vmatpush1.bf16.msra.mxu0 %v5489
    %6534 = vmatprep.subr.bf16.mxu0 %v5482
    %6535 = vmatpush1.bf16.msra.mxu0 %v5481
    %6536 = vmatprep.subr.bf16.mxu0 %v5474
    %6537 = vmatpush1.bf16.msra.mxu0 %v5473
    %6538 = vmatprep.subr.bf16.mxu0 %v5466
    %6539 = vmatpush1.bf16.msra.mxu0 %v5465
    %6540 = vmatprep.subr.bf16.mxu0 %v5458
    %6541 = vmatpush1.bf16.msra.mxu0 %v5457
    %6542 = vmatprep.subr.bf16.mxu0 %v5450
    %6543 = vmatpush1.bf16.msra.mxu0 %v5449
    %6544 = vmatprep.subr.bf16.mxu0 %v5442
    %6545 = vmatpush1.bf16.msra.mxu0 %v5441
    %6546 = vmatprep.subr.bf16.mxu0 %v5434
    %6547 = vmatpush1.bf16.msra.mxu0 %v5433
    %6548 = vmatprep.subr.bf16.mxu0 %v5554
    %6549 = vmatpush2.bf16.msra.mxu0 %v5553
    %6550 = vmatprep.subr.bf16.mxu0 %v5546
    %6551 = vmatpush2.bf16.msra.mxu0 %v5545
    %6552 = vmatprep.subr.bf16.mxu0 %v5538
    %6553 = vmatpush2.bf16.msra.mxu0 %v5537
    %6554 = vmatprep.subr.bf16.mxu0 %v5530
    %6555 = vmatpush2.bf16.msra.mxu0 %v5529
    %6556 = vmatprep.subr.bf16.mxu0 %v5522
    %6557 = vmatpush2.bf16.msra.mxu0 %v5521
    %6558 = vmatprep.subr.bf16.mxu0 %v5514
    %6559 = vmatpush2.bf16.msra.mxu0 %v5513
    %6560 = vmatprep.subr.bf16.mxu0 %v5506
    %6561 = vmatpush2.bf16.msra.mxu0 %v5505
    %6562 = vmatprep.subr.bf16.mxu0 %v5498
    %6563 = vmatpush2.bf16.msra.mxu0 %v5497
    %6564 = vmatprep.mubr.bf16.mxu0 %v3208
    %6565 = vmatmul.mubr.bf16.gmra.mxu0 %v3207
    %v6566 = vpop.f32.mrf.mxu0
    %v6567 = vadd.f32 %v6526, %v6566
    %v6568 = vpop.f32.mrf.mxu0
    %v6569 = vadd.f32 %v6528, %v6568
    %v6570 = vpop.f32.mrf.mxu0
    %v6571 = vpop.f32.mrf.mxu0
    %6572 = vdwg.mxu0
    %6573 = vmatprep.subr.bf16.mxu0 %v5618
    %6574 = vmatpush1.bf16.msra.mxu0 %v5617
    %6575 = vmatprep.subr.bf16.mxu0 %v5610
    %6576 = vmatpush1.bf16.msra.mxu0 %v5609
    %6577 = vmatprep.subr.bf16.mxu0 %v5602
    %6578 = vmatpush1.bf16.msra.mxu0 %v5601
    %6579 = vmatprep.subr.bf16.mxu0 %v5594
    %6580 = vmatpush1.bf16.msra.mxu0 %v5593
    %6581 = vmatprep.subr.bf16.mxu0 %v5586
    %6582 = vmatpush1.bf16.msra.mxu0 %v5585
    %6583 = vmatprep.subr.bf16.mxu0 %v5578
    %6584 = vmatpush1.bf16.msra.mxu0 %v5577
    %6585 = vmatprep.subr.bf16.mxu0 %v5570
    %6586 = vmatpush1.bf16.msra.mxu0 %v5569
    %6587 = vmatprep.subr.bf16.mxu0 %v5562
    %6588 = vmatpush1.bf16.msra.mxu0 %v5561
    %6589 = vmatprep.subr.bf16.mxu0 %v5682
    %6590 = vmatpush2.bf16.msra.mxu0 %v5681
    %6591 = vmatprep.subr.bf16.mxu0 %v5674
    %6592 = vmatpush2.bf16.msra.mxu0 %v5673
    %6593 = vmatprep.subr.bf16.mxu0 %v5666
    %6594 = vmatpush2.bf16.msra.mxu0 %v5665
    %6595 = vmatprep.subr.bf16.mxu0 %v5658
    %6596 = vmatpush2.bf16.msra.mxu0 %v5657
    %6597 = vmatprep.subr.bf16.mxu0 %v5650
    %6598 = vmatpush2.bf16.msra.mxu0 %v5649
    %6599 = vmatprep.subr.bf16.mxu0 %v5642
    %6600 = vmatpush2.bf16.msra.mxu0 %v5641
    %6601 = vmatprep.subr.bf16.mxu0 %v5634
    %6602 = vmatpush2.bf16.msra.mxu0 %v5633
    %6603 = vmatprep.subr.bf16.mxu0 %v5626
    %6604 = vmatpush2.bf16.msra.mxu0 %v5625
    %6605 = vmatprep.mubr.bf16.mxu0 %v3210
    %6606 = vmatmul.mubr.bf16.gmra.mxu0 %v3209
    %v6607 = vpop.f32.mrf.mxu0
    %v6608 = vadd.f32 %v6567, %v6607
    %v6609 = vpop.f32.mrf.mxu0
    %v6610 = vadd.f32 %v6569, %v6609
    %v6611 = vpop.f32.mrf.mxu0
    %v6612 = vpop.f32.mrf.mxu0
    %6613 = vdwg.mxu0
    %6614 = vmatprep.subr.bf16.mxu0 %v5746
    %6615 = vmatpush1.bf16.msra.mxu0 %v5745
    %6616 = vmatprep.subr.bf16.mxu0 %v5738
    %6617 = vmatpush1.bf16.msra.mxu0 %v5737
    %6618 = vmatprep.subr.bf16.mxu0 %v5730
    %6619 = vmatpush1.bf16.msra.mxu0 %v5729
    %6620 = vmatprep.subr.bf16.mxu0 %v5722
    %6621 = vmatpush1.bf16.msra.mxu0 %v5721
    %6622 = vmatprep.subr.bf16.mxu0 %v5714
    %6623 = vmatpush1.bf16.msra.mxu0 %v5713
    %6624 = vmatprep.subr.bf16.mxu0 %v5706
    %6625 = vmatpush1.bf16.msra.mxu0 %v5705
    %6626 = vmatprep.subr.bf16.mxu0 %v5698
    %6627 = vmatpush1.bf16.msra.mxu0 %v5697
    %6628 = vmatprep.subr.bf16.mxu0 %v5690
    %6629 = vmatpush1.bf16.msra.mxu0 %v5689
    %6630 = vmatprep.subr.bf16.mxu0 %v5810
    %6631 = vmatpush2.bf16.msra.mxu0 %v5809
    %6632 = vmatprep.subr.bf16.mxu0 %v5802
    %6633 = vmatpush2.bf16.msra.mxu0 %v5801
    %6634 = vmatprep.subr.bf16.mxu0 %v5794
    %6635 = vmatpush2.bf16.msra.mxu0 %v5793
    %6636 = vmatprep.subr.bf16.mxu0 %v5786
    %6637 = vmatpush2.bf16.msra.mxu0 %v5785
    %6638 = vmatprep.subr.bf16.mxu0 %v5778
    %6639 = vmatpush2.bf16.msra.mxu0 %v5777
    %6640 = vmatprep.subr.bf16.mxu0 %v5770
    %6641 = vmatpush2.bf16.msra.mxu0 %v5769
    %6642 = vmatprep.subr.bf16.mxu0 %v5762
    %6643 = vmatpush2.bf16.msra.mxu0 %v5761
    %6644 = vmatprep.subr.bf16.mxu0 %v5754
    %6645 = vmatpush2.bf16.msra.mxu0 %v5753
    %6646 = vmatprep.mubr.bf16.mxu0 %v3212
    %6647 = vmatmul.mubr.bf16.gmra.mxu0 %v3211
    %v6648 = vpop.f32.mrf.mxu0
    %v6649 = vadd.f32 %v6608, %v6648
    %v6650 = vpop.f32.mrf.mxu0
    %v6651 = vadd.f32 %v6610, %v6650
    %v6652 = vpop.f32.mrf.mxu0
    %v6653 = vpop.f32.mrf.mxu0
    %6654 = vdwg.mxu0
    %6655 = vmatprep.subr.bf16.mxu0 %v5364
    %6656 = vmatpush1.bf16.msra.mxu0 %v5363
    %6657 = vmatprep.subr.bf16.mxu0 %v5356
    %6658 = vmatpush1.bf16.msra.mxu0 %v5355
    %6659 = vmatprep.subr.bf16.mxu0 %v5348
    %6660 = vmatpush1.bf16.msra.mxu0 %v5347
    %6661 = vmatprep.subr.bf16.mxu0 %v5340
    %6662 = vmatpush1.bf16.msra.mxu0 %v5339
    %6663 = vmatprep.subr.bf16.mxu0 %v5332
    %6664 = vmatpush1.bf16.msra.mxu0 %v5331
    %6665 = vmatprep.subr.bf16.mxu0 %v5324
    %6666 = vmatpush1.bf16.msra.mxu0 %v5323
    %6667 = vmatprep.subr.bf16.mxu0 %v5316
    %6668 = vmatpush1.bf16.msra.mxu0 %v5315
    %6669 = vmatprep.subr.bf16.mxu0 %v5308
    %6670 = vmatpush1.bf16.msra.mxu0 %v5307
    %6671 = vmatprep.subr.bf16.mxu0 %v5428
    %6672 = vmatpush2.bf16.msra.mxu0 %v5427
    %6673 = vmatprep.subr.bf16.mxu0 %v5420
    %6674 = vmatpush2.bf16.msra.mxu0 %v5419
    %6675 = vmatprep.subr.bf16.mxu0 %v5412
    %6676 = vmatpush2.bf16.msra.mxu0 %v5411
    %6677 = vmatprep.subr.bf16.mxu0 %v5404
    %6678 = vmatpush2.bf16.msra.mxu0 %v5403
    %6679 = vmatprep.subr.bf16.mxu0 %v5396
    %6680 = vmatpush2.bf16.msra.mxu0 %v5395
    %6681 = vmatprep.subr.bf16.mxu0 %v5388
    %6682 = vmatpush2.bf16.msra.mxu0 %v5387
    %6683 = vmatprep.subr.bf16.mxu0 %v5380
    %6684 = vmatpush2.bf16.msra.mxu0 %v5379
    %6685 = vmatprep.subr.bf16.mxu0 %v5372
    %6686 = vmatpush2.bf16.msra.mxu0 %v5371
    %6687 = vmatprep.mubr.bf16.mxu0 %v3206
    %6688 = vmatmul.mubr.bf16.gmra.mxu0 %v3205
    %v6689 = vpop.f32.mrf.mxu0
    %v6690 = vadd.f32 %v3746, %v6689
    %v6691 = vpop.f32.mrf.mxu0
    %v6692 = vadd.f32 %v3750, %v6691
    %v6693 = vpop.f32.mrf.mxu0
    %v6694 = vpop.f32.mrf.mxu0
    %6695 = vdwg.mxu0
    %6696 = vmatprep.subr.bf16.mxu0 %v5492
    %6697 = vmatpush1.bf16.msra.mxu0 %v5491
    %6698 = vmatprep.subr.bf16.mxu0 %v5484
    %6699 = vmatpush1.bf16.msra.mxu0 %v5483
    %6700 = vmatprep.subr.bf16.mxu0 %v5476
    %6701 = vmatpush1.bf16.msra.mxu0 %v5475
    %6702 = vmatprep.subr.bf16.mxu0 %v5468
    %6703 = vmatpush1.bf16.msra.mxu0 %v5467
    %6704 = vmatprep.subr.bf16.mxu0 %v5460
    %6705 = vmatpush1.bf16.msra.mxu0 %v5459
    %6706 = vmatprep.subr.bf16.mxu0 %v5452
    %6707 = vmatpush1.bf16.msra.mxu0 %v5451
    %6708 = vmatprep.subr.bf16.mxu0 %v5444
    %6709 = vmatpush1.bf16.msra.mxu0 %v5443
    %6710 = vmatprep.subr.bf16.mxu0 %v5436
    %6711 = vmatpush1.bf16.msra.mxu0 %v5435
    %6712 = vmatprep.subr.bf16.mxu0 %v5556
    %6713 = vmatpush2.bf16.msra.mxu0 %v5555
    %6714 = vmatprep.subr.bf16.mxu0 %v5548
    %6715 = vmatpush2.bf16.msra.mxu0 %v5547
    %6716 = vmatprep.subr.bf16.mxu0 %v5540
    %6717 = vmatpush2.bf16.msra.mxu0 %v5539
    %6718 = vmatprep.subr.bf16.mxu0 %v5532
    %6719 = vmatpush2.bf16.msra.mxu0 %v5531
    %6720 = vmatprep.subr.bf16.mxu0 %v5524
    %6721 = vmatpush2.bf16.msra.mxu0 %v5523
    %6722 = vmatprep.subr.bf16.mxu0 %v5516
    %6723 = vmatpush2.bf16.msra.mxu0 %v5515
    %6724 = vmatprep.subr.bf16.mxu0 %v5508
    %6725 = vmatpush2.bf16.msra.mxu0 %v5507
    %6726 = vmatprep.subr.bf16.mxu0 %v5500
    %6727 = vmatpush2.bf16.msra.mxu0 %v5499
    %6728 = vmatprep.mubr.bf16.mxu0 %v3208
    %6729 = vmatmul.mubr.bf16.gmra.mxu0 %v3207
    %v6730 = vpop.f32.mrf.mxu0
    %v6731 = vadd.f32 %v6690, %v6730
    %v6732 = vpop.f32.mrf.mxu0
    %v6733 = vadd.f32 %v6692, %v6732
    %v6734 = vpop.f32.mrf.mxu0
    %v6735 = vpop.f32.mrf.mxu0
    %6736 = vdwg.mxu0
    %6737 = vmatprep.subr.bf16.mxu0 %v5620
    %6738 = vmatpush1.bf16.msra.mxu0 %v5619
    %6739 = vmatprep.subr.bf16.mxu0 %v5612
    %6740 = vmatpush1.bf16.msra.mxu0 %v5611
    %6741 = vmatprep.subr.bf16.mxu0 %v5604
    %6742 = vmatpush1.bf16.msra.mxu0 %v5603
    %6743 = vmatprep.subr.bf16.mxu0 %v5596
    %6744 = vmatpush1.bf16.msra.mxu0 %v5595
    %6745 = vmatprep.subr.bf16.mxu0 %v5588
    %6746 = vmatpush1.bf16.msra.mxu0 %v5587
    %6747 = vmatprep.subr.bf16.mxu0 %v5580
    %6748 = vmatpush1.bf16.msra.mxu0 %v5579
    %6749 = vmatprep.subr.bf16.mxu0 %v5572
    %6750 = vmatpush1.bf16.msra.mxu0 %v5571
    %6751 = vmatprep.subr.bf16.mxu0 %v5564
    %6752 = vmatpush1.bf16.msra.mxu0 %v5563
    %6753 = vmatprep.subr.bf16.mxu0 %v5684
    %6754 = vmatpush2.bf16.msra.mxu0 %v5683
    %6755 = vmatprep.subr.bf16.mxu0 %v5676
    %6756 = vmatpush2.bf16.msra.mxu0 %v5675
    %6757 = vmatprep.subr.bf16.mxu0 %v5668
    %6758 = vmatpush2.bf16.msra.mxu0 %v5667
    %6759 = vmatprep.subr.bf16.mxu0 %v5660
    %6760 = vmatpush2.bf16.msra.mxu0 %v5659
    %6761 = vmatprep.subr.bf16.mxu0 %v5652
    %6762 = vmatpush2.bf16.msra.mxu0 %v5651
    %6763 = vmatprep.subr.bf16.mxu0 %v5644
    %6764 = vmatpush2.bf16.msra.mxu0 %v5643
    %6765 = vmatprep.subr.bf16.mxu0 %v5636
    %6766 = vmatpush2.bf16.msra.mxu0 %v5635
    %6767 = vmatprep.subr.bf16.mxu0 %v5628
    %6768 = vmatpush2.bf16.msra.mxu0 %v5627
    %6769 = vmatprep.mubr.bf16.mxu0 %v3210
    %6770 = vmatmul.mubr.bf16.gmra.mxu0 %v3209
    %v6771 = vpop.f32.mrf.mxu0
    %v6772 = vadd.f32 %v6731, %v6771
    %v6773 = vpop.f32.mrf.mxu0
    %v6774 = vadd.f32 %v6733, %v6773
    %v6775 = vpop.f32.mrf.mxu0
    %v6776 = vpop.f32.mrf.mxu0
    %6777 = vdwg.mxu0
    %6778 = vmatprep.subr.bf16.mxu0 %v5748
    %6779 = vmatpush1.bf16.msra.mxu0 %v5747
    %6780 = vmatprep.subr.bf16.mxu0 %v5740
    %6781 = vmatpush1.bf16.msra.mxu0 %v5739
    %6782 = vmatprep.subr.bf16.mxu0 %v5732
    %6783 = vmatpush1.bf16.msra.mxu0 %v5731
    %6784 = vmatprep.subr.bf16.mxu0 %v5724
    %6785 = vmatpush1.bf16.msra.mxu0 %v5723
    %6786 = vmatprep.subr.bf16.mxu0 %v5716
    %6787 = vmatpush1.bf16.msra.mxu0 %v5715
    %6788 = vmatprep.subr.bf16.mxu0 %v5708
    %6789 = vmatpush1.bf16.msra.mxu0 %v5707
    %6790 = vmatprep.subr.bf16.mxu0 %v5700
    %6791 = vmatpush1.bf16.msra.mxu0 %v5699
    %6792 = vmatprep.subr.bf16.mxu0 %v5692
    %6793 = vmatpush1.bf16.msra.mxu0 %v5691
    %6794 = vmatprep.subr.bf16.mxu0 %v5812
    %6795 = vmatpush2.bf16.msra.mxu0 %v5811
    %6796 = vmatprep.subr.bf16.mxu0 %v5804
    %6797 = vmatpush2.bf16.msra.mxu0 %v5803
    %6798 = vmatprep.subr.bf16.mxu0 %v5796
    %6799 = vmatpush2.bf16.msra.mxu0 %v5795
    %6800 = vmatprep.subr.bf16.mxu0 %v5788
    %6801 = vmatpush2.bf16.msra.mxu0 %v5787
    %6802 = vmatprep.subr.bf16.mxu0 %v5780
    %6803 = vmatpush2.bf16.msra.mxu0 %v5779
    %6804 = vmatprep.subr.bf16.mxu0 %v5772
    %6805 = vmatpush2.bf16.msra.mxu0 %v5771
    %6806 = vmatprep.subr.bf16.mxu0 %v5764
    %6807 = vmatpush2.bf16.msra.mxu0 %v5763
    %6808 = vmatprep.subr.bf16.mxu0 %v5756
    %6809 = vmatpush2.bf16.msra.mxu0 %v5755
    %6810 = vmatprep.mubr.bf16.mxu0 %v3212
    %6811 = vmatmul.mubr.bf16.gmra.mxu0 %v3211
    %v6812 = vpop.f32.mrf.mxu0
    %v6813 = vadd.f32 %v6772, %v6812
    %v6814 = vpop.f32.mrf.mxu0
    %v6815 = vadd.f32 %v6774, %v6814
    %v6816 = vpop.f32.mrf.mxu0
    %v6817 = vpop.f32.mrf.mxu0
    %6818 = vdwg.mxu0
    %6819 = vmatprep.subr.bf16.mxu0 %v5366
    %6820 = vmatpush1.bf16.msra.mxu0 %v5365
    %6821 = vmatprep.subr.bf16.mxu0 %v5358
    %6822 = vmatpush1.bf16.msra.mxu0 %v5357
    %6823 = vmatprep.subr.bf16.mxu0 %v5350
    %6824 = vmatpush1.bf16.msra.mxu0 %v5349
    %6825 = vmatprep.subr.bf16.mxu0 %v5342
    %6826 = vmatpush1.bf16.msra.mxu0 %v5341
    %6827 = vmatprep.subr.bf16.mxu0 %v5334
    %6828 = vmatpush1.bf16.msra.mxu0 %v5333
    %6829 = vmatprep.subr.bf16.mxu0 %v5326
    %6830 = vmatpush1.bf16.msra.mxu0 %v5325
    %6831 = vmatprep.subr.bf16.mxu0 %v5318
    %6832 = vmatpush1.bf16.msra.mxu0 %v5317
    %6833 = vmatprep.subr.bf16.mxu0 %v5310
    %6834 = vmatpush1.bf16.msra.mxu0 %v5309
    %6835 = vmatprep.subr.bf16.mxu0 %v5430
    %6836 = vmatpush2.bf16.msra.mxu0 %v5429
    %6837 = vmatprep.subr.bf16.mxu0 %v5422
    %6838 = vmatpush2.bf16.msra.mxu0 %v5421
    %6839 = vmatprep.subr.bf16.mxu0 %v5414
    %6840 = vmatpush2.bf16.msra.mxu0 %v5413
    %6841 = vmatprep.subr.bf16.mxu0 %v5406
    %6842 = vmatpush2.bf16.msra.mxu0 %v5405
    %6843 = vmatprep.subr.bf16.mxu0 %v5398
    %6844 = vmatpush2.bf16.msra.mxu0 %v5397
    %6845 = vmatprep.subr.bf16.mxu0 %v5390
    %6846 = vmatpush2.bf16.msra.mxu0 %v5389
    %6847 = vmatprep.subr.bf16.mxu0 %v5382
    %6848 = vmatpush2.bf16.msra.mxu0 %v5381
    %6849 = vmatprep.subr.bf16.mxu0 %v5374
    %6850 = vmatpush2.bf16.msra.mxu0 %v5373
    %6851 = vmatprep.mubr.bf16.mxu0 %v3206
    %6852 = vmatmul.mubr.bf16.gmra.mxu0 %v3205
    %v6853 = vpop.f32.mrf.mxu0
    %v6854 = vadd.f32 %v3754, %v6853
    %v6855 = vpop.f32.mrf.mxu0
    %v6856 = vadd.f32 %v3758, %v6855
    %v6857 = vpop.f32.mrf.mxu0
    %v6858 = vpop.f32.mrf.mxu0
    %6859 = vdwg.mxu0
    %6860 = vmatprep.subr.bf16.mxu0 %v5494
    %6861 = vmatpush1.bf16.msra.mxu0 %v5493
    %6862 = vmatprep.subr.bf16.mxu0 %v5486
    %6863 = vmatpush1.bf16.msra.mxu0 %v5485
    %6864 = vmatprep.subr.bf16.mxu0 %v5478
    %6865 = vmatpush1.bf16.msra.mxu0 %v5477
    %6866 = vmatprep.subr.bf16.mxu0 %v5470
    %6867 = vmatpush1.bf16.msra.mxu0 %v5469
    %6868 = vmatprep.subr.bf16.mxu0 %v5462
    %6869 = vmatpush1.bf16.msra.mxu0 %v5461
    %6870 = vmatprep.subr.bf16.mxu0 %v5454
    %6871 = vmatpush1.bf16.msra.mxu0 %v5453
    %6872 = vmatprep.subr.bf16.mxu0 %v5446
    %6873 = vmatpush1.bf16.msra.mxu0 %v5445
    %6874 = vmatprep.subr.bf16.mxu0 %v5438
    %6875 = vmatpush1.bf16.msra.mxu0 %v5437
    %6876 = vmatprep.subr.bf16.mxu0 %v5558
    %6877 = vmatpush2.bf16.msra.mxu0 %v5557
    %6878 = vmatprep.subr.bf16.mxu0 %v5550
    %6879 = vmatpush2.bf16.msra.mxu0 %v5549
    %6880 = vmatprep.subr.bf16.mxu0 %v5542
    %6881 = vmatpush2.bf16.msra.mxu0 %v5541
    %6882 = vmatprep.subr.bf16.mxu0 %v5534
    %6883 = vmatpush2.bf16.msra.mxu0 %v5533
    %6884 = vmatprep.subr.bf16.mxu0 %v5526
    %6885 = vmatpush2.bf16.msra.mxu0 %v5525
    %6886 = vmatprep.subr.bf16.mxu0 %v5518
    %6887 = vmatpush2.bf16.msra.mxu0 %v5517
    %6888 = vmatprep.subr.bf16.mxu0 %v5510
    %6889 = vmatpush2.bf16.msra.mxu0 %v5509
    %6890 = vmatprep.subr.bf16.mxu0 %v5502
    %6891 = vmatpush2.bf16.msra.mxu0 %v5501
    %6892 = vmatprep.mubr.bf16.mxu0 %v3208
    %6893 = vmatmul.mubr.bf16.gmra.mxu0 %v3207
    %v6894 = vpop.f32.mrf.mxu0
    %v6895 = vadd.f32 %v6854, %v6894
    %v6896 = vpop.f32.mrf.mxu0
    %v6897 = vadd.f32 %v6856, %v6896
    %v6898 = vpop.f32.mrf.mxu0
    %v6899 = vpop.f32.mrf.mxu0
    %6900 = vdwg.mxu0
    %6901 = vmatprep.subr.bf16.mxu0 %v5622
    %6902 = vmatpush1.bf16.msra.mxu0 %v5621
    %6903 = vmatprep.subr.bf16.mxu0 %v5614
    %6904 = vmatpush1.bf16.msra.mxu0 %v5613
    %6905 = vmatprep.subr.bf16.mxu0 %v5606
    %6906 = vmatpush1.bf16.msra.mxu0 %v5605
    %6907 = vmatprep.subr.bf16.mxu0 %v5598
    %6908 = vmatpush1.bf16.msra.mxu0 %v5597
    %6909 = vmatprep.subr.bf16.mxu0 %v5590
    %6910 = vmatpush1.bf16.msra.mxu0 %v5589
    %6911 = vmatprep.subr.bf16.mxu0 %v5582
    %6912 = vmatpush1.bf16.msra.mxu0 %v5581
    %6913 = vmatprep.subr.bf16.mxu0 %v5574
    %6914 = vmatpush1.bf16.msra.mxu0 %v5573
    %6915 = vmatprep.subr.bf16.mxu0 %v5566
    %6916 = vmatpush1.bf16.msra.mxu0 %v5565
    %6917 = vmatprep.subr.bf16.mxu0 %v5686
    %6918 = vmatpush2.bf16.msra.mxu0 %v5685
    %6919 = vmatprep.subr.bf16.mxu0 %v5678
    %6920 = vmatpush2.bf16.msra.mxu0 %v5677
    %6921 = vmatprep.subr.bf16.mxu0 %v5670
    %6922 = vmatpush2.bf16.msra.mxu0 %v5669
    %6923 = vmatprep.subr.bf16.mxu0 %v5662
    %6924 = vmatpush2.bf16.msra.mxu0 %v5661
    %6925 = vmatprep.subr.bf16.mxu0 %v5654
    %6926 = vmatpush2.bf16.msra.mxu0 %v5653
    %6927 = vmatprep.subr.bf16.mxu0 %v5646
    %6928 = vmatpush2.bf16.msra.mxu0 %v5645
    %6929 = vmatprep.subr.bf16.mxu0 %v5638
    %6930 = vmatpush2.bf16.msra.mxu0 %v5637
    %6931 = vmatprep.subr.bf16.mxu0 %v5630
    %6932 = vmatpush2.bf16.msra.mxu0 %v5629
    %6933 = vmatprep.mubr.bf16.mxu0 %v3210
    %6934 = vmatmul.mubr.bf16.gmra.mxu0 %v3209
    %v6935 = vpop.f32.mrf.mxu0
    %v6936 = vadd.f32 %v6895, %v6935
    %v6937 = vpop.f32.mrf.mxu0
    %v6938 = vadd.f32 %v6897, %v6937
    %v6939 = vpop.f32.mrf.mxu0
    %v6940 = vpop.f32.mrf.mxu0
    %6941 = vdwg.mxu0
    %6942 = vmatprep.subr.bf16.mxu0 %v5750
    %6943 = vmatpush1.bf16.msra.mxu0 %v5749
    %6944 = vmatprep.subr.bf16.mxu0 %v5742
    %6945 = vmatpush1.bf16.msra.mxu0 %v5741
    %6946 = vmatprep.subr.bf16.mxu0 %v5734
    %6947 = vmatpush1.bf16.msra.mxu0 %v5733
    %6948 = vmatprep.subr.bf16.mxu0 %v5726
    %6949 = vmatpush1.bf16.msra.mxu0 %v5725
    %6950 = vmatprep.subr.bf16.mxu0 %v5718
    %6951 = vmatpush1.bf16.msra.mxu0 %v5717
    %6952 = vmatprep.subr.bf16.mxu0 %v5710
    %6953 = vmatpush1.bf16.msra.mxu0 %v5709
    %6954 = vmatprep.subr.bf16.mxu0 %v5702
    %6955 = vmatpush1.bf16.msra.mxu0 %v5701
    %6956 = vmatprep.subr.bf16.mxu0 %v5694
    %6957 = vmatpush1.bf16.msra.mxu0 %v5693
    %6958 = vmatprep.subr.bf16.mxu0 %v5814
    %6959 = vmatpush2.bf16.msra.mxu0 %v5813
    %6960 = vmatprep.subr.bf16.mxu0 %v5806
    %6961 = vmatpush2.bf16.msra.mxu0 %v5805
    %6962 = vmatprep.subr.bf16.mxu0 %v5798
    %6963 = vmatpush2.bf16.msra.mxu0 %v5797
    %6964 = vmatprep.subr.bf16.mxu0 %v5790
    %6965 = vmatpush2.bf16.msra.mxu0 %v5789
    %6966 = vmatprep.subr.bf16.mxu0 %v5782
    %6967 = vmatpush2.bf16.msra.mxu0 %v5781
    %6968 = vmatprep.subr.bf16.mxu0 %v5774
    %6969 = vmatpush2.bf16.msra.mxu0 %v5773
    %6970 = vmatprep.subr.bf16.mxu0 %v5766
    %6971 = vmatpush2.bf16.msra.mxu0 %v5765
    %6972 = vmatprep.subr.bf16.mxu0 %v5758
    %6973 = vmatpush2.bf16.msra.mxu0 %v5757
    %6974 = vmatprep.mubr.bf16.mxu0 %v3212
    %6975 = vmatmul.mubr.bf16.gmra.mxu0 %v3211
    %v6976 = vpop.f32.mrf.mxu0
    %v6977 = vadd.f32 %v6936, %v6976
    %v6978 = vpop.f32.mrf.mxu0
    %v6979 = vadd.f32 %v6938, %v6978
    %v6980 = vpop.f32.mrf.mxu0
    %v6981 = vpop.f32.mrf.mxu0
    %6982 = vdwg.mxu0
    %v6983 = vmax.f32 %v6485, 0.0
    %v6984 = vmax.f32 %v6487, 0.0
    %v6985 = vmax.f32 %v6649, 0.0
    %v6986 = vmax.f32 %v6651, 0.0
    %v6987 = vmax.f32 %v6813, 0.0
    %v6988 = vmax.f32 %v6815, 0.0
    %v6989 = vmax.f32 %v6977, 0.0
    %v6990 = vmax.f32 %v6979, 0.0
    %v6991 = vpack.c.bf16 %v6983, %v6983
    %v6992 = vpack.c.bf16 %v6984, %v6984
    %v6993 = vpack.c.bf16 %v6985, %v6985
    %v6994 = vpack.c.bf16 %v6986, %v6986
    %v6995 = vpack.c.bf16 %v6987, %v6987
    %v6996 = vpack.c.bf16 %v6988, %v6988
    %v6997 = vpack.c.bf16 %v6989, %v6989
    %v6998 = vpack.c.bf16 %v6990, %v6990
    %v6999 = vld [vmem:[#allocation11] sm:$0xf]
    %v7000 = vld [vmem:[#allocation11 + $0x4] sm:$0xf]
    %v7001 = vld [vmem:[#allocation11 + $0x8] sm:$0xf]
    %v7002 = vld [vmem:[#allocation11 + $0xc] sm:$0xf]
    %v7003 = vld [vmem:[#allocation11 + $0x10] sm:$0xf]
    %v7004 = vld [vmem:[#allocation11 + $0x14] sm:$0xf]
    %v7005 = vld [vmem:[#allocation11 + $0x18] sm:$0xf]
    %v7006 = vld [vmem:[#allocation11 + $0x1c] sm:$0xf]
    %v7007 = vld [vmem:[#allocation11 + $0x20] sm:$0xf]
    %v7008 = vld [vmem:[#allocation11 + $0x24] sm:$0xf]
    %v7009 = vld [vmem:[#allocation11 + $0x28] sm:$0xf]
    %v7010 = vld [vmem:[#allocation11 + $0x2c] sm:$0xf]
    %v7011 = vld [vmem:[#allocation11 + $0x30] sm:$0xf]
    %v7012 = vld [vmem:[#allocation11 + $0x34] sm:$0xf]
    %v7013 = vld [vmem:[#allocation11 + $0x38] sm:$0xf]
    %v7014 = vld [vmem:[#allocation11 + $0x3c] sm:$0xf]
    %v7015 = vld [vmem:[#allocation11 + $0x40] sm:$0xf]
    %v7016 = vld [vmem:[#allocation11 + $0x44] sm:$0xf]
    %v7017 = vld [vmem:[#allocation11 + $0x48] sm:$0xf]
    %v7018 = vld [vmem:[#allocation11 + $0x4c] sm:$0xf]
    %v7019 = vld [vmem:[#allocation11 + $0x50] sm:$0xf]
    %v7020 = vld [vmem:[#allocation11 + $0x54] sm:$0xf]
    %v7021 = vld [vmem:[#allocation11 + $0x58] sm:$0xf]
    %v7022 = vld [vmem:[#allocation11 + $0x5c] sm:$0xf]
    %v7023 = vld [vmem:[#allocation11 + $0x60] sm:$0xf]
    %v7024 = vld [vmem:[#allocation11 + $0x64] sm:$0xf]
    %v7025 = vld [vmem:[#allocation11 + $0x68] sm:$0xf]
    %v7026 = vld [vmem:[#allocation11 + $0x6c] sm:$0xf]
    %v7027 = vld [vmem:[#allocation11 + $0x70] sm:$0xf]
    %v7028 = vld [vmem:[#allocation11 + $0x74] sm:$0xf]
    %v7029 = vld [vmem:[#allocation11 + $0x78] sm:$0xf]
    %v7030 = vld [vmem:[#allocation11 + $0x7c] sm:$0xf]
    %v7031 = vld [vmem:[#allocation11 + $0x80] sm:$0xf]
    %v7032 = vld [vmem:[#allocation11 + $0x84] sm:$0xf]
    %v7033 = vld [vmem:[#allocation11 + $0x88] sm:$0xf]
    %v7034 = vld [vmem:[#allocation11 + $0x8c] sm:$0xf]
    %v7035 = vld [vmem:[#allocation11 + $0x90] sm:$0xf]
    %v7036 = vld [vmem:[#allocation11 + $0x94] sm:$0xf]
    %v7037 = vld [vmem:[#allocation11 + $0x98] sm:$0xf]
    %v7038 = vld [vmem:[#allocation11 + $0x9c] sm:$0xf]
    %v7039 = vld [vmem:[#allocation11 + $0xa0] sm:$0xf]
    %v7040 = vld [vmem:[#allocation11 + $0xa4] sm:$0xf]
    %v7041 = vld [vmem:[#allocation11 + $0xa8] sm:$0xf]
    %v7042 = vld [vmem:[#allocation11 + $0xac] sm:$0xf]
    %v7043 = vld [vmem:[#allocation11 + $0xb0] sm:$0xf]
    %v7044 = vld [vmem:[#allocation11 + $0xb4] sm:$0xf]
    %v7045 = vld [vmem:[#allocation11 + $0xb8] sm:$0xf]
    %v7046 = vld [vmem:[#allocation11 + $0xbc] sm:$0xf]
    %v7047 = vld [vmem:[#allocation11 + $0xc0] sm:$0xf]
    %v7048 = vld [vmem:[#allocation11 + $0xc4] sm:$0xf]
    %v7049 = vld [vmem:[#allocation11 + $0xc8] sm:$0xf]
    %v7050 = vld [vmem:[#allocation11 + $0xcc] sm:$0xf]
    %v7051 = vld [vmem:[#allocation11 + $0xd0] sm:$0xf]
    %v7052 = vld [vmem:[#allocation11 + $0xd4] sm:$0xf]
    %v7053 = vld [vmem:[#allocation11 + $0xd8] sm:$0xf]
    %v7054 = vld [vmem:[#allocation11 + $0xdc] sm:$0xf]
    %v7055 = vld [vmem:[#allocation11 + $0xe0] sm:$0xf]
    %v7056 = vld [vmem:[#allocation11 + $0xe4] sm:$0xf]
    %v7057 = vld [vmem:[#allocation11 + $0xe8] sm:$0xf]
    %v7058 = vld [vmem:[#allocation11 + $0xec] sm:$0xf]
    %v7059 = vld [vmem:[#allocation11 + $0xf0] sm:$0xf]
    %v7060 = vld [vmem:[#allocation11 + $0xf4] sm:$0xf]
    %v7061 = vld [vmem:[#allocation11 + $0xf8] sm:$0xf]
    %v7062 = vld [vmem:[#allocation11 + $0xfc] sm:$0xf]
    %v7063 = vld [vmem:[#allocation11 + $0x100] sm:$0xf]
    %v7064 = vld [vmem:[#allocation11 + $0x104] sm:$0xf]
    %v7065 = vld [vmem:[#allocation11 + $0x108] sm:$0xf]
    %v7066 = vld [vmem:[#allocation11 + $0x10c] sm:$0xf]
    %v7067 = vld [vmem:[#allocation11 + $0x110] sm:$0xf]
    %v7068 = vld [vmem:[#allocation11 + $0x114] sm:$0xf]
    %v7069 = vld [vmem:[#allocation11 + $0x118] sm:$0xf]
    %v7070 = vld [vmem:[#allocation11 + $0x11c] sm:$0xf]
    %v7071 = vld [vmem:[#allocation11 + $0x120] sm:$0xf]
    %v7072 = vld [vmem:[#allocation11 + $0x124] sm:$0xf]
    %v7073 = vld [vmem:[#allocation11 + $0x128] sm:$0xf]
    %v7074 = vld [vmem:[#allocation11 + $0x12c] sm:$0xf]
    %v7075 = vld [vmem:[#allocation11 + $0x130] sm:$0xf]
    %v7076 = vld [vmem:[#allocation11 + $0x134] sm:$0xf]
    %v7077 = vld [vmem:[#allocation11 + $0x138] sm:$0xf]
    %v7078 = vld [vmem:[#allocation11 + $0x13c] sm:$0xf]
    %v7079 = vld [vmem:[#allocation11 + $0x140] sm:$0xf]
    %v7080 = vld [vmem:[#allocation11 + $0x144] sm:$0xf]
    %v7081 = vld [vmem:[#allocation11 + $0x148] sm:$0xf]
    %v7082 = vld [vmem:[#allocation11 + $0x14c] sm:$0xf]
    %v7083 = vld [vmem:[#allocation11 + $0x150] sm:$0xf]
    %v7084 = vld [vmem:[#allocation11 + $0x154] sm:$0xf]
    %v7085 = vld [vmem:[#allocation11 + $0x158] sm:$0xf]
    %v7086 = vld [vmem:[#allocation11 + $0x15c] sm:$0xf]
    %v7087 = vld [vmem:[#allocation11 + $0x160] sm:$0xf]
    %v7088 = vld [vmem:[#allocation11 + $0x164] sm:$0xf]
    %v7089 = vld [vmem:[#allocation11 + $0x168] sm:$0xf]
    %v7090 = vld [vmem:[#allocation11 + $0x16c] sm:$0xf]
    %v7091 = vld [vmem:[#allocation11 + $0x170] sm:$0xf]
    %v7092 = vld [vmem:[#allocation11 + $0x174] sm:$0xf]
    %v7093 = vld [vmem:[#allocation11 + $0x178] sm:$0xf]
    %v7094 = vld [vmem:[#allocation11 + $0x17c] sm:$0xf]
    %v7095 = vld [vmem:[#allocation11 + $0x180] sm:$0xf]
    %v7096 = vld [vmem:[#allocation11 + $0x184] sm:$0xf]
    %v7097 = vld [vmem:[#allocation11 + $0x188] sm:$0xf]
    %v7098 = vld [vmem:[#allocation11 + $0x18c] sm:$0xf]
    %v7099 = vld [vmem:[#allocation11 + $0x190] sm:$0xf]
    %v7100 = vld [vmem:[#allocation11 + $0x194] sm:$0xf]
    %v7101 = vld [vmem:[#allocation11 + $0x198] sm:$0xf]
    %v7102 = vld [vmem:[#allocation11 + $0x19c] sm:$0xf]
    %v7103 = vld [vmem:[#allocation11 + $0x1a0] sm:$0xf]
    %v7104 = vld [vmem:[#allocation11 + $0x1a4] sm:$0xf]
    %v7105 = vld [vmem:[#allocation11 + $0x1a8] sm:$0xf]
    %v7106 = vld [vmem:[#allocation11 + $0x1ac] sm:$0xf]
    %v7107 = vld [vmem:[#allocation11 + $0x1b0] sm:$0xf]
    %v7108 = vld [vmem:[#allocation11 + $0x1b4] sm:$0xf]
    %v7109 = vld [vmem:[#allocation11 + $0x1b8] sm:$0xf]
    %v7110 = vld [vmem:[#allocation11 + $0x1bc] sm:$0xf]
    %v7111 = vld [vmem:[#allocation11 + $0x1c0] sm:$0xf]
    %v7112 = vld [vmem:[#allocation11 + $0x1c4] sm:$0xf]
    %v7113 = vld [vmem:[#allocation11 + $0x1c8] sm:$0xf]
    %v7114 = vld [vmem:[#allocation11 + $0x1cc] sm:$0xf]
    %v7115 = vld [vmem:[#allocation11 + $0x1d0] sm:$0xf]
    %v7116 = vld [vmem:[#allocation11 + $0x1d4] sm:$0xf]
    %v7117 = vld [vmem:[#allocation11 + $0x1d8] sm:$0xf]
    %v7118 = vld [vmem:[#allocation11 + $0x1dc] sm:$0xf]
    %v7119 = vld [vmem:[#allocation11 + $0x1e0] sm:$0xf]
    %v7120 = vld [vmem:[#allocation11 + $0x1e4] sm:$0xf]
    %v7121 = vld [vmem:[#allocation11 + $0x1e8] sm:$0xf]
    %v7122 = vld [vmem:[#allocation11 + $0x1ec] sm:$0xf]
    %v7123 = vld [vmem:[#allocation11 + $0x1f0] sm:$0xf]
    %v7124 = vld [vmem:[#allocation11 + $0x1f4] sm:$0xf]
    %v7125 = vld [vmem:[#allocation11 + $0x1f8] sm:$0xf]
    %v7126 = vld [vmem:[#allocation11 + $0x1fc] sm:$0xf]
    %v7127 = vld [vmem:[#allocation13] sm:$0x1]
    %v7129 = vlaneseq
    %v7130 = vshrl.u32 %v7129, 7
    %v7131 = vsub.s32 0, %v7130
    %v7132 = vrot.slane %v7127, %v7131
    %v7262 = vunpack.c.l.b16 %v6999
    %v7263 = vunpack.c.l.b16 %v7000
    %v7264 = vunpack.c.l.b16 %v7001
    %v7265 = vunpack.c.l.b16 %v7002
    %v7266 = vunpack.c.l.b16 %v7003
    %v7267 = vunpack.c.l.b16 %v7004
    %v7268 = vunpack.c.l.b16 %v7005
    %v7269 = vunpack.c.l.b16 %v7006
    %v7270 = vunpack.c.l.b16 %v7007
    %v7271 = vunpack.c.l.b16 %v7008
    %v7272 = vunpack.c.l.b16 %v7009
    %v7273 = vunpack.c.l.b16 %v7010
    %v7274 = vunpack.c.l.b16 %v7011
    %v7275 = vunpack.c.l.b16 %v7012
    %v7276 = vunpack.c.l.b16 %v7013
    %v7277 = vunpack.c.l.b16 %v7014
    %v7278 = vunpack.c.l.b16 %v7015
    %v7279 = vunpack.c.l.b16 %v7016
    %v7280 = vunpack.c.l.b16 %v7017
    %v7281 = vunpack.c.l.b16 %v7018
    %v7282 = vunpack.c.l.b16 %v7019
    %v7283 = vunpack.c.l.b16 %v7020
    %v7284 = vunpack.c.l.b16 %v7021
    %v7285 = vunpack.c.l.b16 %v7022
    %v7286 = vunpack.c.l.b16 %v7023
    %v7287 = vunpack.c.l.b16 %v7024
    %v7288 = vunpack.c.l.b16 %v7025
    %v7289 = vunpack.c.l.b16 %v7026
    %v7290 = vunpack.c.l.b16 %v7027
    %v7291 = vunpack.c.l.b16 %v7028
    %v7292 = vunpack.c.l.b16 %v7029
    %v7293 = vunpack.c.l.b16 %v7030
    %v7294 = vunpack.c.l.b16 %v7031
    %v7295 = vunpack.c.l.b16 %v7032
    %v7296 = vunpack.c.l.b16 %v7033
    %v7297 = vunpack.c.l.b16 %v7034
    %v7298 = vunpack.c.l.b16 %v7035
    %v7299 = vunpack.c.l.b16 %v7036
    %v7300 = vunpack.c.l.b16 %v7037
    %v7301 = vunpack.c.l.b16 %v7038
    %v7302 = vunpack.c.l.b16 %v7039
    %v7303 = vunpack.c.l.b16 %v7040
    %v7304 = vunpack.c.l.b16 %v7041
    %v7305 = vunpack.c.l.b16 %v7042
    %v7306 = vunpack.c.l.b16 %v7043
    %v7307 = vunpack.c.l.b16 %v7044
    %v7308 = vunpack.c.l.b16 %v7045
    %v7309 = vunpack.c.l.b16 %v7046
    %v7310 = vunpack.c.l.b16 %v7047
    %v7311 = vunpack.c.l.b16 %v7048
    %v7312 = vunpack.c.l.b16 %v7049
    %v7313 = vunpack.c.l.b16 %v7050
    %v7314 = vunpack.c.l.b16 %v7051
    %v7315 = vunpack.c.l.b16 %v7052
    %v7316 = vunpack.c.l.b16 %v7053
    %v7317 = vunpack.c.l.b16 %v7054
    %v7318 = vunpack.c.l.b16 %v7055
    %v7319 = vunpack.c.l.b16 %v7056
    %v7320 = vunpack.c.l.b16 %v7057
    %v7321 = vunpack.c.l.b16 %v7058
    %v7322 = vunpack.c.l.b16 %v7059
    %v7323 = vunpack.c.l.b16 %v7060
    %v7324 = vunpack.c.l.b16 %v7061
    %v7325 = vunpack.c.l.b16 %v7062
    %v7326 = vunpack.c.l.b16 %v7063
    %v7327 = vunpack.c.l.b16 %v7064
    %v7328 = vunpack.c.l.b16 %v7065
    %v7329 = vunpack.c.l.b16 %v7066
    %v7330 = vunpack.c.l.b16 %v7067
    %v7331 = vunpack.c.l.b16 %v7068
    %v7332 = vunpack.c.l.b16 %v7069
    %v7333 = vunpack.c.l.b16 %v7070
    %v7334 = vunpack.c.l.b16 %v7071
    %v7335 = vunpack.c.l.b16 %v7072
    %v7336 = vunpack.c.l.b16 %v7073
    %v7337 = vunpack.c.l.b16 %v7074
    %v7338 = vunpack.c.l.b16 %v7075
    %v7339 = vunpack.c.l.b16 %v7076
    %v7340 = vunpack.c.l.b16 %v7077
    %v7341 = vunpack.c.l.b16 %v7078
    %v7342 = vunpack.c.l.b16 %v7079
    %v7343 = vunpack.c.l.b16 %v7080
    %v7344 = vunpack.c.l.b16 %v7081
    %v7345 = vunpack.c.l.b16 %v7082
    %v7346 = vunpack.c.l.b16 %v7083
    %v7347 = vunpack.c.l.b16 %v7084
    %v7348 = vunpack.c.l.b16 %v7085
    %v7349 = vunpack.c.l.b16 %v7086
    %v7350 = vunpack.c.l.b16 %v7087
    %v7351 = vunpack.c.l.b16 %v7088
    %v7352 = vunpack.c.l.b16 %v7089
    %v7353 = vunpack.c.l.b16 %v7090
    %v7354 = vunpack.c.l.b16 %v7091
    %v7355 = vunpack.c.l.b16 %v7092
    %v7356 = vunpack.c.l.b16 %v7093
    %v7357 = vunpack.c.l.b16 %v7094
    %v7358 = vunpack.c.l.b16 %v7095
    %v7359 = vunpack.c.l.b16 %v7096
    %v7360 = vunpack.c.l.b16 %v7097
    %v7361 = vunpack.c.l.b16 %v7098
    %v7362 = vunpack.c.l.b16 %v7099
    %v7363 = vunpack.c.l.b16 %v7100
    %v7364 = vunpack.c.l.b16 %v7101
    %v7365 = vunpack.c.l.b16 %v7102
    %v7366 = vunpack.c.l.b16 %v7103
    %v7367 = vunpack.c.l.b16 %v7104
    %v7368 = vunpack.c.l.b16 %v7105
    %v7369 = vunpack.c.l.b16 %v7106
    %v7370 = vunpack.c.l.b16 %v7107
    %v7371 = vunpack.c.l.b16 %v7108
    %v7372 = vunpack.c.l.b16 %v7109
    %v7373 = vunpack.c.l.b16 %v7110
    %v7374 = vunpack.c.l.b16 %v7111
    %v7375 = vunpack.c.l.b16 %v7112
    %v7376 = vunpack.c.l.b16 %v7113
    %v7377 = vunpack.c.l.b16 %v7114
    %v7378 = vunpack.c.l.b16 %v7115
    %v7379 = vunpack.c.l.b16 %v7116
    %v7380 = vunpack.c.l.b16 %v7117
    %v7381 = vunpack.c.l.b16 %v7118
    %v7382 = vunpack.c.l.b16 %v7119
    %v7383 = vunpack.c.l.b16 %v7120
    %v7384 = vunpack.c.l.b16 %v7121
    %v7385 = vunpack.c.l.b16 %v7122
    %v7386 = vunpack.c.l.b16 %v7123
    %v7387 = vunpack.c.l.b16 %v7124
    %v7388 = vunpack.c.l.b16 %v7125
    %v7389 = vunpack.c.l.b16 %v7126
    %v7390 = vpack.c.b16 %v7263, %v7262
    %v7391 = vpack.c.b16 %v7265, %v7264
    %v7392 = vpack.c.b16 %v7267, %v7266
    %v7393 = vpack.c.b16 %v7269, %v7268
    %v7394 = vpack.c.b16 %v7271, %v7270
    %v7395 = vpack.c.b16 %v7273, %v7272
    %v7396 = vpack.c.b16 %v7275, %v7274
    %v7397 = vpack.c.b16 %v7277, %v7276
    %v7398 = vpack.c.b16 %v7279, %v7278
    %v7399 = vpack.c.b16 %v7281, %v7280
    %v7400 = vpack.c.b16 %v7283, %v7282
    %v7401 = vpack.c.b16 %v7285, %v7284
    %v7402 = vpack.c.b16 %v7287, %v7286
    %v7403 = vpack.c.b16 %v7289, %v7288
    %v7404 = vpack.c.b16 %v7291, %v7290
    %v7405 = vpack.c.b16 %v7293, %v7292
    %v7406 = vpack.c.b16 %v7295, %v7294
    %v7407 = vpack.c.b16 %v7297, %v7296
    %v7408 = vpack.c.b16 %v7299, %v7298
    %v7409 = vpack.c.b16 %v7301, %v7300
    %v7410 = vpack.c.b16 %v7303, %v7302
    %v7411 = vpack.c.b16 %v7305, %v7304
    %v7412 = vpack.c.b16 %v7307, %v7306
    %v7413 = vpack.c.b16 %v7309, %v7308
    %v7414 = vpack.c.b16 %v7311, %v7310
    %v7415 = vpack.c.b16 %v7313, %v7312
    %v7416 = vpack.c.b16 %v7315, %v7314
    %v7417 = vpack.c.b16 %v7317, %v7316
    %v7418 = vpack.c.b16 %v7319, %v7318
    %v7419 = vpack.c.b16 %v7321, %v7320
    %v7420 = vpack.c.b16 %v7323, %v7322
    %v7421 = vpack.c.b16 %v7325, %v7324
    %v7422 = vpack.c.b16 %v7327, %v7326
    %v7423 = vpack.c.b16 %v7329, %v7328
    %v7424 = vpack.c.b16 %v7331, %v7330
    %v7425 = vpack.c.b16 %v7333, %v7332
    %v7426 = vpack.c.b16 %v7335, %v7334
    %v7427 = vpack.c.b16 %v7337, %v7336
    %v7428 = vpack.c.b16 %v7339, %v7338
    %v7429 = vpack.c.b16 %v7341, %v7340
    %v7430 = vpack.c.b16 %v7343, %v7342
    %v7431 = vpack.c.b16 %v7345, %v7344
    %v7432 = vpack.c.b16 %v7347, %v7346
    %v7433 = vpack.c.b16 %v7349, %v7348
    %v7434 = vpack.c.b16 %v7351, %v7350
    %v7435 = vpack.c.b16 %v7353, %v7352
    %v7436 = vpack.c.b16 %v7355, %v7354
    %v7437 = vpack.c.b16 %v7357, %v7356
    %v7438 = vpack.c.b16 %v7359, %v7358
    %v7439 = vpack.c.b16 %v7361, %v7360
    %v7440 = vpack.c.b16 %v7363, %v7362
    %v7441 = vpack.c.b16 %v7365, %v7364
    %v7442 = vpack.c.b16 %v7367, %v7366
    %v7443 = vpack.c.b16 %v7369, %v7368
    %v7444 = vpack.c.b16 %v7371, %v7370
    %v7445 = vpack.c.b16 %v7373, %v7372
    %v7446 = vpack.c.b16 %v7375, %v7374
    %v7447 = vpack.c.b16 %v7377, %v7376
    %v7448 = vpack.c.b16 %v7379, %v7378
    %v7449 = vpack.c.b16 %v7381, %v7380
    %v7450 = vpack.c.b16 %v7383, %v7382
    %v7451 = vpack.c.b16 %v7385, %v7384
    %v7452 = vpack.c.b16 %v7387, %v7386
    %v7453 = vpack.c.b16 %v7389, %v7388
    %7518 = vmatprep.subr.bf16.mxu0 0
    %7519 = vmatpush1.bf16.msra.mxu0 %v7397
    %7520 = vmatprep.subr.bf16.mxu0 0
    %7521 = vmatpush1.bf16.msra.mxu0 %v7396
    %7522 = vmatprep.subr.bf16.mxu0 0
    %7523 = vmatpush1.bf16.msra.mxu0 %v7395
    %7524 = vmatprep.subr.bf16.mxu0 0
    %7525 = vmatpush1.bf16.msra.mxu0 %v7394
    %7526 = vmatprep.subr.bf16.mxu0 0
    %7527 = vmatpush1.bf16.msra.mxu0 %v7393
    %7528 = vmatprep.subr.bf16.mxu0 0
    %7529 = vmatpush1.bf16.msra.mxu0 %v7392
    %7530 = vmatprep.subr.bf16.mxu0 0
    %7531 = vmatpush1.bf16.msra.mxu0 %v7391
    %7532 = vmatprep.subr.bf16.mxu0 0
    %7533 = vmatpush1.bf16.msra.mxu0 %v7390
    %7534 = vmatprep.subr.bf16.mxu0 0
    %7535 = vmatpush2.bf16.msra.mxu0 %v7405
    %7536 = vmatprep.subr.bf16.mxu0 0
    %7537 = vmatpush2.bf16.msra.mxu0 %v7404
    %7538 = vmatprep.subr.bf16.mxu0 0
    %7539 = vmatpush2.bf16.msra.mxu0 %v7403
    %7540 = vmatprep.subr.bf16.mxu0 0
    %7541 = vmatpush2.bf16.msra.mxu0 %v7402
    %7542 = vmatprep.subr.bf16.mxu0 0
    %7543 = vmatpush2.bf16.msra.mxu0 %v7401
    %7544 = vmatprep.subr.bf16.mxu0 0
    %7545 = vmatpush2.bf16.msra.mxu0 %v7400
    %7546 = vmatprep.subr.bf16.mxu0 0
    %7547 = vmatpush2.bf16.msra.mxu0 %v7399
    %7548 = vmatprep.subr.bf16.mxu0 0
    %7549 = vmatpush2.bf16.msra.mxu0 %v7398
    %7550 = vmatprep.mubr.bf16.mxu0 %v6992
    %7551 = vmatmul.mubr.bf16.gmra.mxu0 %v6991
    %v7552 = vpop.f32.mrf.mxu0
    %v7553 = vadd.f32 %v7132, %v7552
    %v7554 = vpop.f32.mrf.mxu0
    %v7555 = vpop.f32.mrf.mxu0
    %v7556 = vpop.f32.mrf.mxu0
    %7557 = vdwg.mxu0
    %7558 = vmatprep.subr.bf16.mxu0 0
    %7559 = vmatpush1.bf16.msra.mxu0 %v7413
    %7560 = vmatprep.subr.bf16.mxu0 0
    %7561 = vmatpush1.bf16.msra.mxu0 %v7412
    %7562 = vmatprep.subr.bf16.mxu0 0
    %7563 = vmatpush1.bf16.msra.mxu0 %v7411
    %7564 = vmatprep.subr.bf16.mxu0 0
    %7565 = vmatpush1.bf16.msra.mxu0 %v7410
    %7566 = vmatprep.subr.bf16.mxu0 0
    %7567 = vmatpush1.bf16.msra.mxu0 %v7409
    %7568 = vmatprep.subr.bf16.mxu0 0
    %7569 = vmatpush1.bf16.msra.mxu0 %v7408
    %7570 = vmatprep.subr.bf16.mxu0 0
    %7571 = vmatpush1.bf16.msra.mxu0 %v7407
    %7572 = vmatprep.subr.bf16.mxu0 0
    %7573 = vmatpush1.bf16.msra.mxu0 %v7406
    %7574 = vmatprep.subr.bf16.mxu0 0
    %7575 = vmatpush2.bf16.msra.mxu0 %v7421
    %7576 = vmatprep.subr.bf16.mxu0 0
    %7577 = vmatpush2.bf16.msra.mxu0 %v7420
    %7578 = vmatprep.subr.bf16.mxu0 0
    %7579 = vmatpush2.bf16.msra.mxu0 %v7419
    %7580 = vmatprep.subr.bf16.mxu0 0
    %7581 = vmatpush2.bf16.msra.mxu0 %v7418
    %7582 = vmatprep.subr.bf16.mxu0 0
    %7583 = vmatpush2.bf16.msra.mxu0 %v7417
    %7584 = vmatprep.subr.bf16.mxu0 0
    %7585 = vmatpush2.bf16.msra.mxu0 %v7416
    %7586 = vmatprep.subr.bf16.mxu0 0
    %7587 = vmatpush2.bf16.msra.mxu0 %v7415
    %7588 = vmatprep.subr.bf16.mxu0 0
    %7589 = vmatpush2.bf16.msra.mxu0 %v7414
    %7590 = vmatprep.mubr.bf16.mxu0 %v6994
    %7591 = vmatmul.mubr.bf16.gmra.mxu0 %v6993
    %v7592 = vpop.f32.mrf.mxu0
    %v7593 = vadd.f32 %v7553, %v7592
    %v7594 = vpop.f32.mrf.mxu0
    %v7595 = vpop.f32.mrf.mxu0
    %v7596 = vpop.f32.mrf.mxu0
    %7597 = vdwg.mxu0
    %7598 = vmatprep.subr.bf16.mxu0 0
    %7599 = vmatpush1.bf16.msra.mxu0 %v7429
    %7600 = vmatprep.subr.bf16.mxu0 0
    %7601 = vmatpush1.bf16.msra.mxu0 %v7428
    %7602 = vmatprep.subr.bf16.mxu0 0
    %7603 = vmatpush1.bf16.msra.mxu0 %v7427
    %7604 = vmatprep.subr.bf16.mxu0 0
    %7605 = vmatpush1.bf16.msra.mxu0 %v7426
    %7606 = vmatprep.subr.bf16.mxu0 0
    %7607 = vmatpush1.bf16.msra.mxu0 %v7425
    %7608 = vmatprep.subr.bf16.mxu0 0
    %7609 = vmatpush1.bf16.msra.mxu0 %v7424
    %7610 = vmatprep.subr.bf16.mxu0 0
    %7611 = vmatpush1.bf16.msra.mxu0 %v7423
    %7612 = vmatprep.subr.bf16.mxu0 0
    %7613 = vmatpush1.bf16.msra.mxu0 %v7422
    %7614 = vmatprep.subr.bf16.mxu0 0
    %7615 = vmatpush2.bf16.msra.mxu0 %v7437
    %7616 = vmatprep.subr.bf16.mxu0 0
    %7617 = vmatpush2.bf16.msra.mxu0 %v7436
    %7618 = vmatprep.subr.bf16.mxu0 0
    %7619 = vmatpush2.bf16.msra.mxu0 %v7435
    %7620 = vmatprep.subr.bf16.mxu0 0
    %7621 = vmatpush2.bf16.msra.mxu0 %v7434
    %7622 = vmatprep.subr.bf16.mxu0 0
    %7623 = vmatpush2.bf16.msra.mxu0 %v7433
    %7624 = vmatprep.subr.bf16.mxu0 0
    %7625 = vmatpush2.bf16.msra.mxu0 %v7432
    %7626 = vmatprep.subr.bf16.mxu0 0
    %7627 = vmatpush2.bf16.msra.mxu0 %v7431
    %7628 = vmatprep.subr.bf16.mxu0 0
    %7629 = vmatpush2.bf16.msra.mxu0 %v7430
    %7630 = vmatprep.mubr.bf16.mxu0 %v6996
    %7631 = vmatmul.mubr.bf16.gmra.mxu0 %v6995
    %v7632 = vpop.f32.mrf.mxu0
    %v7633 = vadd.f32 %v7593, %v7632
    %v7634 = vpop.f32.mrf.mxu0
    %v7635 = vpop.f32.mrf.mxu0
    %v7636 = vpop.f32.mrf.mxu0
    %7637 = vdwg.mxu0
    %7638 = vmatprep.subr.bf16.mxu0 0
    %7639 = vmatpush1.bf16.msra.mxu0 %v7445
    %7640 = vmatprep.subr.bf16.mxu0 0
    %7641 = vmatpush1.bf16.msra.mxu0 %v7444
    %7642 = vmatprep.subr.bf16.mxu0 0
    %7643 = vmatpush1.bf16.msra.mxu0 %v7443
    %7644 = vmatprep.subr.bf16.mxu0 0
    %7645 = vmatpush1.bf16.msra.mxu0 %v7442
    %7646 = vmatprep.subr.bf16.mxu0 0
    %7647 = vmatpush1.bf16.msra.mxu0 %v7441
    %7648 = vmatprep.subr.bf16.mxu0 0
    %7649 = vmatpush1.bf16.msra.mxu0 %v7440
    %7650 = vmatprep.subr.bf16.mxu0 0
    %7651 = vmatpush1.bf16.msra.mxu0 %v7439
    %7652 = vmatprep.subr.bf16.mxu0 0
    %7653 = vmatpush1.bf16.msra.mxu0 %v7438
    %7654 = vmatprep.subr.bf16.mxu0 0
    %7655 = vmatpush2.bf16.msra.mxu0 %v7453
    %7656 = vmatprep.subr.bf16.mxu0 0
    %7657 = vmatpush2.bf16.msra.mxu0 %v7452
    %7658 = vmatprep.subr.bf16.mxu0 0
    %7659 = vmatpush2.bf16.msra.mxu0 %v7451
    %7660 = vmatprep.subr.bf16.mxu0 0
    %7661 = vmatpush2.bf16.msra.mxu0 %v7450
    %7662 = vmatprep.subr.bf16.mxu0 0
    %7663 = vmatpush2.bf16.msra.mxu0 %v7449
    %7664 = vmatprep.subr.bf16.mxu0 0
    %7665 = vmatpush2.bf16.msra.mxu0 %v7448
    %7666 = vmatprep.subr.bf16.mxu0 0
    %7667 = vmatpush2.bf16.msra.mxu0 %v7447
    %7668 = vmatprep.subr.bf16.mxu0 0
    %7669 = vmatpush2.bf16.msra.mxu0 %v7446
    %7670 = vmatprep.mubr.bf16.mxu0 %v6998
    %7671 = vmatmul.mubr.bf16.gmra.mxu0 %v6997
    %v7672 = vpop.f32.mrf.mxu0
    %v7673 = vadd.f32 %v7633, %v7672
    %v7674 = vpop.f32.mrf.mxu0
    %v7675 = vpop.f32.mrf.mxu0
    %v7676 = vpop.f32.mrf.mxu0
    %7677 = vdwg.mxu0
    %7678 = vst [vmem:[#allocation14] sm:$0xff] %v7673
    // Predicated region
    $region58: #{tpu_custom_call.1} parent=1 // pred_check
      _
    $region59: #{tpu_custom_call.1} parent=1 // pred_check_branch
      %7680 = sbr.rel (0) target = $region61
    $region60: #{tpu_custom_call.1} parent=1 // pred_region
      %s7682 = ssub.s32 128, 128
      %7683 = vsyncadd [#allocation4], %s7682
      %s7685 = sshll.u32 [#allocation14], 4
      %s7686 = int_to_ptr.vmem [resolvable:$true] %s7685
      %7688 = dma.vmem_to_hbm [thread:$0]  %s7686, 128, %s7, [#allocation4]
    $region61: #{tpu_custom_call.1} parent=1 // pred_fallthru
      _
    // Predicated region
    $region62: #{tpu_custom_call.1} parent=1 // pred_check
      _
    $region63: #{tpu_custom_call.1} parent=1 // pred_check_branch
      %7690 = sbr.rel (0) target = $region65
    $region64: #{tpu_custom_call.1} parent=1 // pred_region
      %7691 = dma.done [#allocation4], 128
    $region65: #{tpu_custom_call.1} parent=1 // pred_fallthru
      _
    %7692 = vsyncpa [#allocation3], 1
    %7693 = vsyncpa [#allocation6], 1
    %7694 = vsyncpa [#allocation9], 1
    %7695 = vsyncpa [#allocation12], 1
    %7696 = vsyncpa [#allocation4], 1

</llo_original>
